<compile_context>
chip_gen: v5e
topology: v5e:2x2
jax: 0.10.0
libtpu: 0.0.40
codegen_flags: <defaults>
</compile_context>

<pallas_src>
import math

import jax
import jax.numpy as jnp
from jax import lax
from jax.experimental import pallas as pl
from jax.experimental.pallas import tpu as pltpu  # noqa: F401  (TPU backend)

# ---- small, module-consistent shapes ----
B = 2          # batch
T = 8          # target sequence length
S = 16         # memory sequence length
D_IN = 8       # tgt_input_dim
D_OUT = 8      # tgt_output_dim
D_MODEL = 32
D_FF = 64
N_HEADS = 4
DK = D_MODEL // N_HEADS
N_LAYERS = 2
EPS = 1e-6
OUT_PAD = 128  # lane-dense padded output width
APPROX = True  # EUP approximate reciprocal for softmax / LayerNorm divide

BT = B * T
BS = B * S
CROSS_OFF = ((BT + 127) // 128) * 128           # lane offset of cross bias slab

# ---- W_dm lane layout (every block is 128 lanes wide) ----
LANES_SELF = 4 * D_MODEL                        # wq|wk|wv|wo_self
LANES_CROSS = 2 * D_MODEL + D_FF                # wq_c|wo_c|w1
BLK = LANES_SELF + LANES_CROSS                  # per-layer stride (256)
OFF_KV = N_LAYERS * BLK                         # fused cross K/V (all layers)
OFF_EMB = OFF_KV + 2 * D_MODEL * N_LAYERS       # embed weight (128-lane block)
OFF_OUT = OFF_EMB + 128                         # output weight (lane-dense)
W_DM_LANES = OFF_OUT + OUT_PAD                  # 896

# ---- vec row layout ----
ROW_KV = 2 * N_LAYERS                           # fused cross K/V bias
ROW_MISC = ROW_KV + 1                           # b2[0]|b2[1]|final_g|final_b
ROW_LN = ROW_MISC + 1                           # + 3*l + n
ROW_OUTB = ROW_LN + 3 * N_LAYERS                # padded output bias
VEC_ROWS = ROW_OUTB + 1                         # 13

assert LANES_SELF == 128 and LANES_CROSS == 128
assert 2 * D_MODEL * N_LAYERS == 128            # fused cross-KV block width
assert (N_LAYERS + 2) * D_MODEL <= 128          # b2's + final LN fit one row


# ------------------------- fused Pallas kernel -------------------------

def decoder_kernel(tgt_ref, mem_ref, pe_ref, bias_ref, wdm_ref, wff_ref,
                   vec_ref, o_ref):
    f32 = jnp.float32
    D = D_MODEL

    def layer_norm(y, g, b):
        mean = jnp.mean(y, axis=-1, keepdims=True)
        diff = y - mean
        # torch.Tensor.std default is unbiased (N-1); eps is added to std.
        var = jnp.sum(diff * diff, axis=-1, keepdims=True) * (1.0 / (D - 1))
        inv = pl.reciprocal(jnp.sqrt(var) + EPS, approx=APPROX)
        return g * diff * inv + b

    def attention(q, k, v, bias, wo, bo):
        # q: [R, D] (1/sqrt(DK) already folded into the Q projection),
        # k/v: [C, D], bias: [R, C] additive (0 allowed / -1e9 blocked,
        # cross-batch blocks already masked out).
        acc = None
        for h in range(N_HEADS):                      # static 4-wide loop
            sl = slice(h * DK, (h + 1) * DK)
            # q @ k^T without materializing a transpose (contract DK on both)
            sc = lax.dot_general(q[:, sl], k[:, sl],
                                 dimension_numbers=(((1,), (1,)), ((), ())),
                                 preferred_element_type=f32) + bias
            sc = sc - jnp.max(sc, axis=-1, keepdims=True)
            p = jnp.exp(sc)
            p = p * pl.reciprocal(jnp.sum(p, axis=-1, keepdims=True),
                                  approx=APPROX)
            head = jnp.dot(p, v[:, sl], preferred_element_type=f32)      # [R, DK]
            # fold the head straight into Wo (no concatenate)
            part = jnp.dot(head, wo[sl, :], preferred_element_type=f32)  # [R, D]
            acc = part if acc is None else acc + part
        return acc + bo

    # ---- embed + (embed bias + positional encoding) ----
    x = (jnp.dot(tgt_ref[...], wdm_ref[0:D_IN, OFF_EMB:OFF_EMB + D],
                 preferred_element_type=f32) + pe_ref[...])              # [B*T, D]
    mem = mem_ref[...]                                                   # [B*S, D]
    self_bias = bias_ref[:, 0:BT]                                        # [B*T, B*T]
    cross_bias = bias_ref[:, CROSS_OFF:CROSS_OFF + BS]                   # [B*T, B*S]

    # ---- cross-attention K/V for ALL layers in one 128-lane matmul ----
    kv_all = (jnp.dot(mem, wdm_ref[:, OFF_KV:OFF_KV + 2 * D * N_LAYERS],
                      preferred_element_type=f32)
              + vec_ref[ROW_KV:ROW_KV + 1, 0:2 * D * N_LAYERS])          # [B*S, 128]

    # ---- N transformer blocks (statically unrolled) ----
    for l in range(N_LAYERS):
        so = BLK * l                     # self block lane offset
        co = so + LANES_SELF             # cross/ffn block lane offset
        rs = 2 * l                       # self bias row
        rc = 2 * l + 1                   # cross/ffn bias row

        # self-attention (fused QKV projection)
        qkv = (jnp.dot(x, wdm_ref[:, so:so + 3 * D], preferred_element_type=f32)
               + vec_ref[rs:rs + 1, 0:3 * D])
        sa = attention(qkv[:, 0:D], qkv[:, D:2 * D], qkv[:, 2 * D:3 * D],
                       self_bias,
                       wdm_ref[:, so + 3 * D:so + 4 * D],
                       vec_ref[rs:rs + 1, 3 * D:4 * D])
        r = ROW_LN + 3 * l
        x = layer_norm(x + sa, vec_ref[r:r + 1, 0:D], vec_ref[r:r + 1, D:2 * D])

        # cross-attention (K/V precomputed for all layers above)
        qc = (jnp.dot(x, wdm_ref[:, co:co + D], preferred_element_type=f32)
              + vec_ref[rc:rc + 1, 0:D])
        kc = kv_all[:, 2 * D * l:2 * D * l + D]
        vc = kv_all[:, 2 * D * l + D:2 * D * l + 2 * D]
        ca = attention(qc, kc, vc, cross_bias,
                       wdm_ref[:, co + D:co + 2 * D],
                       vec_ref[rc:rc + 1, D:2 * D])
        r = ROW_LN + 3 * l + 1
        x = layer_norm(x + ca, vec_ref[r:r + 1, 0:D], vec_ref[r:r + 1, D:2 * D])

        # feed-forward
        h1 = jnp.maximum(
            jnp.dot(x, wdm_ref[:, co + 2 * D:co + 2 * D + D_FF],
                    preferred_element_type=f32)
            + vec_ref[rc:rc + 1, 2 * D:2 * D + D_FF], 0.0)
        ffn = (jnp.dot(h1, wff_ref[:, D * l:D * (l + 1)],
                       preferred_element_type=f32)
               + vec_ref[ROW_MISC:ROW_MISC + 1, D * l:D * (l + 1)])
        r = ROW_LN + 3 * l + 2
        x = layer_norm(x + ffn, vec_ref[r:r + 1, 0:D], vec_ref[r:r + 1, D:2 * D])

    # ---- final LayerNorm + lane-dense (zero-padded) output projection ----
    y = layer_norm(
        x,
        vec_ref[ROW_MISC:ROW_MISC + 1, N_LAYERS * D:(N_LAYERS + 1) * D],
        vec_ref[ROW_MISC:ROW_MISC + 1, (N_LAYERS + 1) * D:(N_LAYERS + 2) * D])
    o_ref[...] = (jnp.dot(y, wdm_ref[:, OFF_OUT:OFF_OUT + OUT_PAD],
                          preferred_element_type=f32)
                  + vec_ref[ROW_OUTB:ROW_OUTB + 1, :])


# ------------------------- init-time layout prep (NOT in the jit path) ----------

def positional_encoding(seq_len, d_model):
    position = jnp.arange(seq_len, dtype=jnp.float32)[:, None]
    div_term = jnp.exp(jnp.arange(0, d_model, 2, dtype=jnp.float32)
                       * (-math.log(10000.0) / d_model))
    pe = jnp.zeros((seq_len, d_model), jnp.float32)
    pe = pe.at[:, 0::2].set(jnp.sin(position * div_term))
    pe = pe.at[:, 1::2].set(jnp.cos(position * div_term))
    return pe


def make_add_term(params, with_pe):
    """embed bias + (optional) positional encoding, tiled to [B*T, D_MODEL]."""
    pe = (positional_encoding(T, D_MODEL) if with_pe
          else jnp.zeros((T, D_MODEL), jnp.float32))
    return (jnp.tile(pe, (B, 1)) + params['embed_b']).astype(jnp.float32)


def build_attn_bias(tgt_mask, m_mask):
    """Merged additive-bias slab [B*T, CROSS_OFF + B*S]: self bias at lanes
    [0, B*T), cross bias at lanes [CROSS_OFF, CROSS_OFF+B*S).  0 where the key
    is in the same batch AND mask!=0, else -1e9 (block-diagonal over batch)."""
    def blockdiag_bias(mask):
        Bx, Tq, Tk = mask.shape
        allowed = (mask != 0).astype(jnp.float32)
        eye = jnp.eye(Bx, dtype=jnp.float32)
        full = jnp.einsum('bB,bqk->bqBk', eye, allowed).reshape(Bx * Tq, Bx * Tk)
        return jnp.where(full > 0, 0.0, -1e9).astype(jnp.float32)

    sb = blockdiag_bias(tgt_mask)                       # [B*T, B*T]
    cb = blockdiag_bias(m_mask)                         # [B*T, B*S]
    slab = jnp.full((BT, CROSS_OFF + BS), -1e9, jnp.float32)
    slab = slab.at[:, :BT].set(sb)
    slab = slab.at[:, CROSS_OFF:CROSS_OFF + BS].set(cb)
    return slab


def pack_params(params):
    """Pack the torch-style params into 3 lane-aligned kernel slabs (run once)."""
    scale = 1.0 / math.sqrt(DK)
    L = params['layers']

    dm_blocks, vec_rows = [], []
    for lp in L:
        wq, wk, wv, wo = lp['w_self']
        bq, bk, bv, bo = lp['b_self']
        dm_blocks.append(jnp.concatenate([wq * scale, wk, wv, wo], axis=1))
        vec_rows.append(jnp.concatenate([bq * scale, bk, bv, bo], axis=1))
        wqc, _, _, woc = lp['w_cross']
        bqc, _, _, boc = lp['b_cross']
        dm_blocks.append(jnp.concatenate([wqc * scale, woc, lp['w1']], axis=1))
        vec_rows.append(jnp.concatenate([bqc * scale, boc, lp['b1']], axis=1))

    # fused cross-attention K/V (all layers) -> one 128-lane block / bias row
    dm_blocks.append(jnp.concatenate(
        [jnp.concatenate([lp['w_cross'][1], lp['w_cross'][2]], axis=1)
         for lp in L], axis=1))
    vec_rows.append(jnp.concatenate(
        [jnp.concatenate([lp['b_cross'][1], lp['b_cross'][2]], axis=1)
         for lp in L], axis=1))

    # b2 (all layers) | final LN gamma | final LN beta  (exactly 128 lanes)
    vec_rows.append(jnp.concatenate(
        [lp['b2'] for lp in L] + [params['final_g'], params['final_b']], axis=1))

    # embed weight (rows 0:D_IN), zero-padded to a 128-lane block
    dm_blocks.append(jnp.zeros((D_MODEL, 128), jnp.float32)
                     .at[:D_IN, :D_MODEL].set(params['embed_w']))
    # output weight, zero-padded lane-dense to OUT_PAD lanes
    dm_blocks.append(jnp.zeros((D_MODEL, OUT_PAD), jnp.float32)
                     .at[:, :D_OUT].set(params['out_w']))

    # per-norm LayerNorm gamma/beta rows
    for lp in L:
        for n in range(3):
            vec_rows.append(jnp.concatenate(
                [lp['ln_g'][n], lp['ln_b'][n],
                 jnp.zeros((1, 128 - 2 * D_MODEL), jnp.float32)], axis=1))

    # padded output bias
    vec_rows.append(jnp.zeros((1, OUT_PAD), jnp.float32)
                    .at[:, :D_OUT].set(params['out_b']))

    w_dm = jnp.concatenate(dm_blocks, axis=1)            # [D_MODEL, 896]
    w_ff = jnp.concatenate([lp['w2'] for lp in L], axis=1)  # [D_FF, L*D_MODEL]
    vec = jnp.concatenate(vec_rows, axis=0)              # [13, 128]
    assert w_dm.shape == (D_MODEL, W_DM_LANES)
    assert vec.shape == (VEC_ROWS, 128)
    return w_dm, w_ff, vec


# ------------------------- jitted forward (kernel call only) -------------------------

@jax.jit
def trans_decoder_forward(tgt, memory, add_term, bias, w_dm, w_ff, vec):
    tgt_flat = tgt.reshape(BT, D_IN)
    mem_flat = memory.reshape(BS, D_MODEL)
    out = pl.pallas_call(
        decoder_kernel,
        out_shape=jax.ShapeDtypeStruct((BT, OUT_PAD), jnp.float32),
    )(tgt_flat, mem_flat, add_term, bias, w_dm, w_ff, vec)
    return out[:, :D_OUT].reshape(B, T, D_OUT)


# ------------------------- params (torch-style layout) -------------------------

def init_params(key):
    keys = iter(jax.random.split(key, 8 + 8 * N_LAYERS))

    def nrm(shape, scale=0.05):
        return scale * jax.random.normal(next(keys), shape, dtype=jnp.float32)

    params = {
        # weights stored as [in, out] (torch Linear weight transposed)
        'embed_w': nrm((D_IN, D_MODEL)),
        'embed_b': nrm((1, D_MODEL)),
        'out_w': nrm((D_MODEL, D_OUT)),
        'out_b': nrm((1, D_OUT)),
        'final_g': jnp.ones((1, D_MODEL), jnp.float32),
        'final_b': jnp.zeros((1, D_MODEL), jnp.float32),
        'layers': [],
    }
    for _ in range(N_LAYERS):
        params['layers'].append({
            'w_self': nrm((4, D_MODEL, D_MODEL)),   # q, k, v, o projections
            'b_self': nrm((4, 1, D_MODEL)),
            'w_cross': nrm((4, D_MODEL, D_MODEL)),
            'b_cross': nrm((4, 1, D_MODEL)),
            'ln_g': jnp.ones((3, 1, D_MODEL), jnp.float32),
            'ln_b': jnp.zeros((3, 1, D_MODEL), jnp.float32),
            'w1': nrm((D_MODEL, D_FF)),
            'b1': nrm((1, D_FF)),
            'w2': nrm((D_FF, D_MODEL)),
            'b2': nrm((1, D_MODEL)),
        })
    return params


# ------------------------- pure-JAX reference (verification) -------------------------

def _ref_ln(x, g, b):
    mean = jnp.mean(x, axis=-1, keepdims=True)
    diff = x - mean
    var = jnp.sum(diff * diff, axis=-1, keepdims=True) / (x.shape[-1] - 1)
    return g * diff / (jnp.sqrt(var) + EPS) + b


def _ref_mha(q_in, kv_in, mask, w, b):
    q = q_in @ w[0] + b[0]
    k = kv_in @ w[1] + b[1]
    v = kv_in @ w[2] + b[2]
    Bx, Tq, _ = q.shape
    Tk = k.shape[1]
    qh = q.reshape(Bx, Tq, N_HEADS, DK).transpose(0, 2, 1, 3)
    kh = k.reshape(Bx, Tk, N_HEADS, DK).transpose(0, 2, 1, 3)
    vh = v.reshape(Bx, Tk, N_HEADS, DK).transpose(0, 2, 1, 3)
    sc = jnp.einsum('bhqd,bhkd->bhqk', qh, kh) / math.sqrt(DK)
    sc = jnp.where(mask[:, None] == 0, -1e9, sc)
    p = jax.nn.softmax(sc, axis=-1)
    o = jnp.einsum('bhqk,bhkd->bhqd', p, vh).transpose(0, 2, 1, 3)
    return o.reshape(Bx, Tq, D_MODEL) @ w[3] + b[3]


def ref_forward(memory, m_mask, tgt, tgt_mask, with_pe, params):
    x = tgt @ params['embed_w'] + params['embed_b']
    if with_pe:
        x = x + positional_encoding(tgt.shape[1], D_MODEL)[None]
    for lp in params['layers']:
        x = _ref_ln(x + _ref_mha(x, x, tgt_mask, lp['w_self'], lp['b_self']),
                    lp['ln_g'][0], lp['ln_b'][0])
        x = _ref_ln(x + _ref_mha(x, memory, m_mask, lp['w_cross'], lp['b_cross']),
                    lp['ln_g'][1], lp['ln_b'][1])
        ffn = jnp.maximum(x @ lp['w1'] + lp['b1'], 0.0) @ lp['w2'] + lp['b2']
        x = _ref_ln(x + ffn, lp['ln_g'][2], lp['ln_b'][2])
    x = _ref_ln(x, params['final_g'], params['final_b'])
    return x @ params['out_w'] + params['out_b']


# ------------------------- main -------------------------

if __name__ == "__main__":
    key = jax.random.PRNGKey(0)
    kparam, km, kt = jax.random.split(key, 3)
    params = init_params(kparam)

    memory = jax.random.normal(km, (B, S, D_MODEL), dtype=jnp.float32)
    tgt = jax.random.normal(kt, (B, T, D_IN), dtype=jnp.float32)
    tgt_mask = jnp.ones((B, T, T), jnp.float32)
    m_mask = jnp.ones((B, T, S), jnp.float32).at[1, :, S // 2:].set(0.0)

    # --- one-time packing (init-time; deliberately outside the jitted forward) ---
    w_dm, w_ff, vec = pack_params(params)
    bias = build_attn_bias(tgt_mask, m_mask)
    add_term = make_add_term(params, with_pe=True)
    w_dm, w_ff, vec, bias, add_term = jax.block_until_ready(
        (w_dm, w_ff, vec, bias, add_term))

    out = trans_decoder_forward(tgt, memory, add_term, bias, w_dm, w_ff, vec)
    out = jax.block_until_ready(out)

    assert out.shape == (B, T, D_OUT)
    assert bool(jnp.all(jnp.isfinite(out)))
    ref = ref_forward(memory, m_mask, tgt, tgt_mask, True, params)
    assert float(jnp.max(jnp.abs(out - ref))) < 1e-2

    print("KERNEL_OK")
</pallas_src>

<mosaic_0001>
module attributes {stable_mosaic.version = 11 : i64} {
  func.func @decoder_kernel(%arg0: memref<16x8xf32, #tpu.memory_space<vmem>>, %arg1: memref<32x32xf32, #tpu.memory_space<vmem>>, %arg2: memref<16x32xf32, #tpu.memory_space<vmem>>, %arg3: memref<16x160xf32, #tpu.memory_space<vmem>>, %arg4: memref<32x896xf32, #tpu.memory_space<vmem>>, %arg5: memref<64x64xf32, #tpu.memory_space<vmem>>, %arg6: memref<13x128xf32, #tpu.memory_space<vmem>>, %arg7: memref<16x128xf32, #tpu.memory_space<vmem>>) attributes {dimension_semantics = [], scalar_prefetch = 0 : i64, scratch_operands = 0 : i64, tpu.core_type = #tpu.core_type<tc>} {
    %c0 = arith.constant 0 : index
    %c0_0 = arith.constant 0 : index
    %0 = vector.load %arg0[%c0, %c0_0] : memref<16x8xf32, #tpu.memory_space<vmem>>, vector<16x8xf32>
    %c0_1 = arith.constant 0 : index
    %c640 = arith.constant 640 : index
    %1 = vector.load %arg4[%c0_1, %c640] : memref<32x896xf32, #tpu.memory_space<vmem>>, vector<8x32xf32>
    %cst = arith.constant dense<0.000000e+00> : vector<16x32xf32>
    %2 = tpu.matmul %0, %1, %cst {dimension_numbers = #tpu.dot_dimension_numbers<[1], [0], [0], [1], [0, 0, 1, 1], [], []>} : vector<16x8xf32>, vector<8x32xf32>, vector<16x32xf32> -> vector<16x32xf32>
    %c0_2 = arith.constant 0 : index
    %c0_3 = arith.constant 0 : index
    %3 = vector.load %arg2[%c0_2, %c0_3] : memref<16x32xf32, #tpu.memory_space<vmem>>, vector<16x32xf32>
    %4 = arith.addf %2, %3 : vector<16x32xf32>
    %c0_4 = arith.constant 0 : index
    %c0_5 = arith.constant 0 : index
    %5 = vector.load %arg1[%c0_4, %c0_5] : memref<32x32xf32, #tpu.memory_space<vmem>>, vector<32x32xf32>
    %c0_6 = arith.constant 0 : index
    %c0_7 = arith.constant 0 : index
    %6 = vector.load %arg3[%c0_6, %c0_7] : memref<16x160xf32, #tpu.memory_space<vmem>>, vector<16x16xf32>
    %c0_8 = arith.constant 0 : index
    %c128 = arith.constant 128 : index
    %7 = vector.load %arg3[%c0_8, %c128] : memref<16x160xf32, #tpu.memory_space<vmem>>, vector<16x32xf32>
    %c0_9 = arith.constant 0 : index
    %c512 = arith.constant 512 : index
    %8 = vector.load %arg4[%c0_9, %c512] : memref<32x896xf32, #tpu.memory_space<vmem>>, vector<32x128xf32>
    %cst_10 = arith.constant dense<0.000000e+00> : vector<32x128xf32>
    %9 = tpu.matmul %5, %8, %cst_10 {dimension_numbers = #tpu.dot_dimension_numbers<[1], [0], [0], [1], [0, 0, 1, 1], [], []>} : vector<32x32xf32>, vector<32x128xf32>, vector<32x128xf32> -> vector<32x128xf32>
    %c4 = arith.constant 4 : index
    %c0_11 = arith.constant 0 : index
    %10 = vector.load %arg6[%c4, %c0_11] : memref<13x128xf32, #tpu.memory_space<vmem>>, vector<1x128xf32>
    %11 = vector.broadcast %10 : vector<1x128xf32> to vector<32x128xf32>
    %12 = arith.addf %9, %11 : vector<32x128xf32>
    %c0_12 = arith.constant 0 : index
    %c0_13 = arith.constant 0 : index
    %13 = vector.load %arg4[%c0_12, %c0_13] : memref<32x896xf32, #tpu.memory_space<vmem>>, vector<32x96xf32>
    %cst_14 = arith.constant dense<0.000000e+00> : vector<16x96xf32>
    %14 = tpu.matmul %4, %13, %cst_14 {dimension_numbers = #tpu.dot_dimension_numbers<[1], [0], [0], [1], [0, 0, 1, 1], [], []>} : vector<16x32xf32>, vector<32x96xf32>, vector<16x96xf32> -> vector<16x96xf32>
    %c0_15 = arith.constant 0 : index
    %c0_16 = arith.constant 0 : index
    %15 = vector.load %arg6[%c0_15, %c0_16] : memref<13x128xf32, #tpu.memory_space<vmem>>, vector<1x96xf32>
    %16 = vector.broadcast %15 : vector<1x96xf32> to vector<16x96xf32>
    %17 = arith.addf %14, %16 : vector<16x96xf32>
    %18 = vector.extract_strided_slice %17 {offsets = [0, 0], sizes = [16, 32], strides = [1, 1]} : vector<16x96xf32> to vector<16x32xf32>
    %19 = vector.extract_strided_slice %17 {offsets = [0, 32], sizes = [16, 32], strides = [1, 1]} : vector<16x96xf32> to vector<16x32xf32>
    %20 = vector.extract_strided_slice %17 {offsets = [0, 64], sizes = [16, 32], strides = [1, 1]} : vector<16x96xf32> to vector<16x32xf32>
    %c0_17 = arith.constant 0 : index
    %c96 = arith.constant 96 : index
    %21 = vector.load %arg4[%c0_17, %c96] : memref<32x896xf32, #tpu.memory_space<vmem>>, vector<32x32xf32>
    %c0_18 = arith.constant 0 : index
    %c96_19 = arith.constant 96 : index
    %22 = vector.load %arg6[%c0_18, %c96_19] : memref<13x128xf32, #tpu.memory_space<vmem>>, vector<1x32xf32>
    %23 = vector.extract_strided_slice %18 {offsets = [0, 0], sizes = [16, 8], strides = [1, 1]} : vector<16x32xf32> to vector<16x8xf32>
    %24 = vector.extract_strided_slice %19 {offsets = [0, 0], sizes = [16, 8], strides = [1, 1]} : vector<16x32xf32> to vector<16x8xf32>
    %cst_20 = arith.constant dense<0.000000e+00> : vector<16x16xf32>
    %25 = tpu.matmul %23, %24, %cst_20 {dimension_numbers = #tpu.dot_dimension_numbers<[1], [1], [0], [0], [0, 0, 1, 0], [], []>} : vector<16x8xf32>, vector<16x8xf32>, vector<16x16xf32> -> vector<16x16xf32>
    %26 = arith.addf %25, %6 : vector<16x16xf32>
    %cst_21 = arith.constant dense<0xFF800000> : vector<16xf32>
    %27 = vector.multi_reduction <maximumf>, %26, %cst_21 [1] : vector<16x16xf32> to vector<16xf32>
    %28 = vector.shape_cast %27 : vector<16xf32> to vector<16x1xf32>
    %29 = vector.broadcast %28 : vector<16x1xf32> to vector<16x16xf32>
    %30 = arith.subf %26, %29 : vector<16x16xf32>
    %31 = math.exp %30 : vector<16x16xf32>
    %cst_22 = arith.constant dense<0.000000e+00> : vector<16xf32>
    %32 = vector.multi_reduction <add>, %31, %cst_22 [1] : vector<16x16xf32> to vector<16xf32>
    %33 = vector.shape_cast %32 : vector<16xf32> to vector<16x1xf32>
    %34 = tpu.reciprocal %33 {approx = true} : vector<16x1xf32> -> vector<16x1xf32>
    %35 = vector.broadcast %34 : vector<16x1xf32> to vector<16x16xf32>
    %36 = arith.mulf %31, %35 : vector<16x16xf32>
    %37 = vector.extract_strided_slice %20 {offsets = [0, 0], sizes = [16, 8], strides = [1, 1]} : vector<16x32xf32> to vector<16x8xf32>
    %cst_23 = arith.constant dense<0.000000e+00> : vector<16x8xf32>
    %38 = tpu.matmul %36, %37, %cst_23 {dimension_numbers = #tpu.dot_dimension_numbers<[1], [0], [0], [1], [0, 0, 1, 1], [], []>} : vector<16x16xf32>, vector<16x8xf32>, vector<16x8xf32> -> vector<16x8xf32>
    %39 = vector.extract_strided_slice %21 {offsets = [0, 0], sizes = [8, 32], strides = [1, 1]} : vector<32x32xf32> to vector<8x32xf32>
    %cst_24 = arith.constant dense<0.000000e+00> : vector<16x32xf32>
    %40 = tpu.matmul %38, %39, %cst_24 {dimension_numbers = #tpu.dot_dimension_numbers<[1], [0], [0], [1], [0, 0, 1, 1], [], []>} : vector<16x8xf32>, vector<8x32xf32>, vector<16x32xf32> -> vector<16x32xf32>
    %41 = vector.extract_strided_slice %18 {offsets = [0, 8], sizes = [16, 8], strides = [1, 1]} : vector<16x32xf32> to vector<16x8xf32>
    %42 = vector.extract_strided_slice %19 {offsets = [0, 8], sizes = [16, 8], strides = [1, 1]} : vector<16x32xf32> to vector<16x8xf32>
    %cst_25 = arith.constant dense<0.000000e+00> : vector<16x16xf32>
    %43 = tpu.matmul %41, %42, %cst_25 {dimension_numbers = #tpu.dot_dimension_numbers<[1], [1], [0], [0], [0, 0, 1, 0], [], []>} : vector<16x8xf32>, vector<16x8xf32>, vector<16x16xf32> -> vector<16x16xf32>
    %44 = arith.addf %43, %6 : vector<16x16xf32>
    %cst_26 = arith.constant dense<0xFF800000> : vector<16xf32>
    %45 = vector.multi_reduction <maximumf>, %44, %cst_26 [1] : vector<16x16xf32> to vector<16xf32>
    %46 = vector.shape_cast %45 : vector<16xf32> to vector<16x1xf32>
    %47 = vector.broadcast %46 : vector<16x1xf32> to vector<16x16xf32>
    %48 = arith.subf %44, %47 : vector<16x16xf32>
    %49 = math.exp %48 : vector<16x16xf32>
    %cst_27 = arith.constant dense<0.000000e+00> : vector<16xf32>
    %50 = vector.multi_reduction <add>, %49, %cst_27 [1] : vector<16x16xf32> to vector<16xf32>
    %51 = vector.shape_cast %50 : vector<16xf32> to vector<16x1xf32>
    %52 = tpu.reciprocal %51 {approx = true} : vector<16x1xf32> -> vector<16x1xf32>
    %53 = vector.broadcast %52 : vector<16x1xf32> to vector<16x16xf32>
    %54 = arith.mulf %49, %53 : vector<16x16xf32>
    %55 = vector.extract_strided_slice %20 {offsets = [0, 8], sizes = [16, 8], strides = [1, 1]} : vector<16x32xf32> to vector<16x8xf32>
    %cst_28 = arith.constant dense<0.000000e+00> : vector<16x8xf32>
    %56 = tpu.matmul %54, %55, %cst_28 {dimension_numbers = #tpu.dot_dimension_numbers<[1], [0], [0], [1], [0, 0, 1, 1], [], []>} : vector<16x16xf32>, vector<16x8xf32>, vector<16x8xf32> -> vector<16x8xf32>
    %57 = vector.extract_strided_slice %21 {offsets = [8, 0], sizes = [8, 32], strides = [1, 1]} : vector<32x32xf32> to vector<8x32xf32>
    %cst_29 = arith.constant dense<0.000000e+00> : vector<16x32xf32>
    %58 = tpu.matmul %56, %57, %cst_29 {dimension_numbers = #tpu.dot_dimension_numbers<[1], [0], [0], [1], [0, 0, 1, 1], [], []>} : vector<16x8xf32>, vector<8x32xf32>, vector<16x32xf32> -> vector<16x32xf32>
    %59 = arith.addf %40, %58 : vector<16x32xf32>
    %60 = vector.extract_strided_slice %18 {offsets = [0, 16], sizes = [16, 8], strides = [1, 1]} : vector<16x32xf32> to vector<16x8xf32>
    %61 = vector.extract_strided_slice %19 {offsets = [0, 16], sizes = [16, 8], strides = [1, 1]} : vector<16x32xf32> to vector<16x8xf32>
    %cst_30 = arith.constant dense<0.000000e+00> : vector<16x16xf32>
    %62 = tpu.matmul %60, %61, %cst_30 {dimension_numbers = #tpu.dot_dimension_numbers<[1], [1], [0], [0], [0, 0, 1, 0], [], []>} : vector<16x8xf32>, vector<16x8xf32>, vector<16x16xf32> -> vector<16x16xf32>
    %63 = arith.addf %62, %6 : vector<16x16xf32>
    %cst_31 = arith.constant dense<0xFF800000> : vector<16xf32>
    %64 = vector.multi_reduction <maximumf>, %63, %cst_31 [1] : vector<16x16xf32> to vector<16xf32>
    %65 = vector.shape_cast %64 : vector<16xf32> to vector<16x1xf32>
    %66 = vector.broadcast %65 : vector<16x1xf32> to vector<16x16xf32>
    %67 = arith.subf %63, %66 : vector<16x16xf32>
    %68 = math.exp %67 : vector<16x16xf32>
    %cst_32 = arith.constant dense<0.000000e+00> : vector<16xf32>
    %69 = vector.multi_reduction <add>, %68, %cst_32 [1] : vector<16x16xf32> to vector<16xf32>
    %70 = vector.shape_cast %69 : vector<16xf32> to vector<16x1xf32>
    %71 = tpu.reciprocal %70 {approx = true} : vector<16x1xf32> -> vector<16x1xf32>
    %72 = vector.broadcast %71 : vector<16x1xf32> to vector<16x16xf32>
    %73 = arith.mulf %68, %72 : vector<16x16xf32>
    %74 = vector.extract_strided_slice %20 {offsets = [0, 16], sizes = [16, 8], strides = [1, 1]} : vector<16x32xf32> to vector<16x8xf32>
    %cst_33 = arith.constant dense<0.000000e+00> : vector<16x8xf32>
    %75 = tpu.matmul %73, %74, %cst_33 {dimension_numbers = #tpu.dot_dimension_numbers<[1], [0], [0], [1], [0, 0, 1, 1], [], []>} : vector<16x16xf32>, vector<16x8xf32>, vector<16x8xf32> -> vector<16x8xf32>
    %76 = vector.extract_strided_slice %21 {offsets = [16, 0], sizes = [8, 32], strides = [1, 1]} : vector<32x32xf32> to vector<8x32xf32>
    %cst_34 = arith.constant dense<0.000000e+00> : vector<16x32xf32>
    %77 = tpu.matmul %75, %76, %cst_34 {dimension_numbers = #tpu.dot_dimension_numbers<[1], [0], [0], [1], [0, 0, 1, 1], [], []>} : vector<16x8xf32>, vector<8x32xf32>, vector<16x32xf32> -> vector<16x32xf32>
    %78 = arith.addf %59, %77 : vector<16x32xf32>
    %79 = vector.extract_strided_slice %18 {offsets = [0, 24], sizes = [16, 8], strides = [1, 1]} : vector<16x32xf32> to vector<16x8xf32>
    %80 = vector.extract_strided_slice %19 {offsets = [0, 24], sizes = [16, 8], strides = [1, 1]} : vector<16x32xf32> to vector<16x8xf32>
    %cst_35 = arith.constant dense<0.000000e+00> : vector<16x16xf32>
    %81 = tpu.matmul %79, %80, %cst_35 {dimension_numbers = #tpu.dot_dimension_numbers<[1], [1], [0], [0], [0, 0, 1, 0], [], []>} : vector<16x8xf32>, vector<16x8xf32>, vector<16x16xf32> -> vector<16x16xf32>
    %82 = arith.addf %81, %6 : vector<16x16xf32>
    %cst_36 = arith.constant dense<0xFF800000> : vector<16xf32>
    %83 = vector.multi_reduction <maximumf>, %82, %cst_36 [1] : vector<16x16xf32> to vector<16xf32>
    %84 = vector.shape_cast %83 : vector<16xf32> to vector<16x1xf32>
    %85 = vector.broadcast %84 : vector<16x1xf32> to vector<16x16xf32>
    %86 = arith.subf %82, %85 : vector<16x16xf32>
    %87 = math.exp %86 : vector<16x16xf32>
    %cst_37 = arith.constant dense<0.000000e+00> : vector<16xf32>
    %88 = vector.multi_reduction <add>, %87, %cst_37 [1] : vector<16x16xf32> to vector<16xf32>
    %89 = vector.shape_cast %88 : vector<16xf32> to vector<16x1xf32>
    %90 = tpu.reciprocal %89 {approx = true} : vector<16x1xf32> -> vector<16x1xf32>
    %91 = vector.broadcast %90 : vector<16x1xf32> to vector<16x16xf32>
    %92 = arith.mulf %87, %91 : vector<16x16xf32>
    %93 = vector.extract_strided_slice %20 {offsets = [0, 24], sizes = [16, 8], strides = [1, 1]} : vector<16x32xf32> to vector<16x8xf32>
    %cst_38 = arith.constant dense<0.000000e+00> : vector<16x8xf32>
    %94 = tpu.matmul %92, %93, %cst_38 {dimension_numbers = #tpu.dot_dimension_numbers<[1], [0], [0], [1], [0, 0, 1, 1], [], []>} : vector<16x16xf32>, vector<16x8xf32>, vector<16x8xf32> -> vector<16x8xf32>
    %95 = vector.extract_strided_slice %21 {offsets = [24, 0], sizes = [8, 32], strides = [1, 1]} : vector<32x32xf32> to vector<8x32xf32>
    %cst_39 = arith.constant dense<0.000000e+00> : vector<16x32xf32>
    %96 = tpu.matmul %94, %95, %cst_39 {dimension_numbers = #tpu.dot_dimension_numbers<[1], [0], [0], [1], [0, 0, 1, 1], [], []>} : vector<16x8xf32>, vector<8x32xf32>, vector<16x32xf32> -> vector<16x32xf32>
    %97 = arith.addf %78, %96 : vector<16x32xf32>
    %98 = vector.broadcast %22 : vector<1x32xf32> to vector<16x32xf32>
    %99 = arith.addf %97, %98 : vector<16x32xf32>
    %100 = arith.addf %4, %99 : vector<16x32xf32>
    %c6 = arith.constant 6 : index
    %c0_40 = arith.constant 0 : index
    %101 = vector.load %arg6[%c6, %c0_40] : memref<13x128xf32, #tpu.memory_space<vmem>>, vector<1x32xf32>
    %c6_41 = arith.constant 6 : index
    %c32 = arith.constant 32 : index
    %102 = vector.load %arg6[%c6_41, %c32] : memref<13x128xf32, #tpu.memory_space<vmem>>, vector<1x32xf32>
    %cst_42 = arith.constant dense<0.000000e+00> : vector<16xf32>
    %103 = vector.multi_reduction <add>, %100, %cst_42 [1] : vector<16x32xf32> to vector<16xf32>
    %104 = vector.shape_cast %103 : vector<16xf32> to vector<16x1xf32>
    %cst_43 = arith.constant 3.200000e+01 : f32
    %105 = vector.broadcast %cst_43 : f32 to vector<16x1xf32>
    %106 = arith.divf %104, %105 : vector<16x1xf32>
    %107 = vector.broadcast %106 : vector<16x1xf32> to vector<16x32xf32>
    %108 = arith.subf %100, %107 : vector<16x32xf32>
    %109 = arith.mulf %108, %108 : vector<16x32xf32>
    %cst_44 = arith.constant dense<0.000000e+00> : vector<16xf32>
    %110 = vector.multi_reduction <add>, %109, %cst_44 [1] : vector<16x32xf32> to vector<16xf32>
    %111 = vector.shape_cast %110 : vector<16xf32> to vector<16x1xf32>
    %cst_45 = arith.constant 0.0322580636 : f32
    %112 = vector.broadcast %cst_45 : f32 to vector<16x1xf32>
    %113 = arith.mulf %111, %112 : vector<16x1xf32>
    %114 = math.sqrt %113 : vector<16x1xf32>
    %cst_46 = arith.constant 9.99999997E-7 : f32
    %115 = vector.broadcast %cst_46 : f32 to vector<16x1xf32>
    %116 = arith.addf %114, %115 : vector<16x1xf32>
    %117 = tpu.reciprocal %116 {approx = true} : vector<16x1xf32> -> vector<16x1xf32>
    %118 = vector.broadcast %101 : vector<1x32xf32> to vector<16x32xf32>
    %119 = arith.mulf %118, %108 : vector<16x32xf32>
    %120 = vector.broadcast %117 : vector<16x1xf32> to vector<16x32xf32>
    %121 = arith.mulf %119, %120 : vector<16x32xf32>
    %122 = vector.broadcast %102 : vector<1x32xf32> to vector<16x32xf32>
    %123 = arith.addf %121, %122 : vector<16x32xf32>
    %c0_47 = arith.constant 0 : index
    %c128_48 = arith.constant 128 : index
    %124 = vector.load %arg4[%c0_47, %c128_48] : memref<32x896xf32, #tpu.memory_space<vmem>>, vector<32x32xf32>
    %cst_49 = arith.constant dense<0.000000e+00> : vector<16x32xf32>
    %125 = tpu.matmul %123, %124, %cst_49 {dimension_numbers = #tpu.dot_dimension_numbers<[1], [0], [0], [1], [0, 0, 1, 1], [], []>} : vector<16x32xf32>, vector<32x32xf32>, vector<16x32xf32> -> vector<16x32xf32>
    %c1 = arith.constant 1 : index
    %c0_50 = arith.constant 0 : index
    %126 = vector.load %arg6[%c1, %c0_50] : memref<13x128xf32, #tpu.memory_space<vmem>>, vector<1x32xf32>
    %127 = vector.broadcast %126 : vector<1x32xf32> to vector<16x32xf32>
    %128 = arith.addf %125, %127 : vector<16x32xf32>
    %129 = vector.extract_strided_slice %12 {offsets = [0, 0], sizes = [32, 32], strides = [1, 1]} : vector<32x128xf32> to vector<32x32xf32>
    %130 = vector.extract_strided_slice %12 {offsets = [0, 32], sizes = [32, 32], strides = [1, 1]} : vector<32x128xf32> to vector<32x32xf32>
    %c0_51 = arith.constant 0 : index
    %c160 = arith.constant 160 : index
    %131 = vector.load %arg4[%c0_51, %c160] : memref<32x896xf32, #tpu.memory_space<vmem>>, vector<32x32xf32>
    %c1_52 = arith.constant 1 : index
    %c32_53 = arith.constant 32 : index
    %132 = vector.load %arg6[%c1_52, %c32_53] : memref<13x128xf32, #tpu.memory_space<vmem>>, vector<1x32xf32>
    %133 = vector.extract_strided_slice %128 {offsets = [0, 0], sizes = [16, 8], strides = [1, 1]} : vector<16x32xf32> to vector<16x8xf32>
    %134 = vector.extract_strided_slice %129 {offsets = [0, 0], sizes = [32, 8], strides = [1, 1]} : vector<32x32xf32> to vector<32x8xf32>
    %cst_54 = arith.constant dense<0.000000e+00> : vector<16x32xf32>
    %135 = tpu.matmul %133, %134, %cst_54 {dimension_numbers = #tpu.dot_dimension_numbers<[1], [1], [0], [0], [0, 0, 1, 0], [], []>} : vector<16x8xf32>, vector<32x8xf32>, vector<16x32xf32> -> vector<16x32xf32>
    %136 = arith.addf %135, %7 : vector<16x32xf32>
    %cst_55 = arith.constant dense<0xFF800000> : vector<16xf32>
    %137 = vector.multi_reduction <maximumf>, %136, %cst_55 [1] : vector<16x32xf32> to vector<16xf32>
    %138 = vector.shape_cast %137 : vector<16xf32> to vector<16x1xf32>
    %139 = vector.broadcast %138 : vector<16x1xf32> to vector<16x32xf32>
    %140 = arith.subf %136, %139 : vector<16x32xf32>
    %141 = math.exp %140 : vector<16x32xf32>
    %cst_56 = arith.constant dense<0.000000e+00> : vector<16xf32>
    %142 = vector.multi_reduction <add>, %141, %cst_56 [1] : vector<16x32xf32> to vector<16xf32>
    %143 = vector.shape_cast %142 : vector<16xf32> to vector<16x1xf32>
    %144 = tpu.reciprocal %143 {approx = true} : vector<16x1xf32> -> vector<16x1xf32>
    %145 = vector.broadcast %144 : vector<16x1xf32> to vector<16x32xf32>
    %146 = arith.mulf %141, %145 : vector<16x32xf32>
    %147 = vector.extract_strided_slice %130 {offsets = [0, 0], sizes = [32, 8], strides = [1, 1]} : vector<32x32xf32> to vector<32x8xf32>
    %cst_57 = arith.constant dense<0.000000e+00> : vector<16x8xf32>
    %148 = tpu.matmul %146, %147, %cst_57 {dimension_numbers = #tpu.dot_dimension_numbers<[1], [0], [0], [1], [0, 0, 1, 1], [], []>} : vector<16x32xf32>, vector<32x8xf32>, vector<16x8xf32> -> vector<16x8xf32>
    %149 = vector.extract_strided_slice %131 {offsets = [0, 0], sizes = [8, 32], strides = [1, 1]} : vector<32x32xf32> to vector<8x32xf32>
    %cst_58 = arith.constant dense<0.000000e+00> : vector<16x32xf32>
    %150 = tpu.matmul %148, %149, %cst_58 {dimension_numbers = #tpu.dot_dimension_numbers<[1], [0], [0], [1], [0, 0, 1, 1], [], []>} : vector<16x8xf32>, vector<8x32xf32>, vector<16x32xf32> -> vector<16x32xf32>
    %151 = vector.extract_strided_slice %128 {offsets = [0, 8], sizes = [16, 8], strides = [1, 1]} : vector<16x32xf32> to vector<16x8xf32>
    %152 = vector.extract_strided_slice %129 {offsets = [0, 8], sizes = [32, 8], strides = [1, 1]} : vector<32x32xf32> to vector<32x8xf32>
    %cst_59 = arith.constant dense<0.000000e+00> : vector<16x32xf32>
    %153 = tpu.matmul %151, %152, %cst_59 {dimension_numbers = #tpu.dot_dimension_numbers<[1], [1], [0], [0], [0, 0, 1, 0], [], []>} : vector<16x8xf32>, vector<32x8xf32>, vector<16x32xf32> -> vector<16x32xf32>
    %154 = arith.addf %153, %7 : vector<16x32xf32>
    %cst_60 = arith.constant dense<0xFF800000> : vector<16xf32>
    %155 = vector.multi_reduction <maximumf>, %154, %cst_60 [1] : vector<16x32xf32> to vector<16xf32>
    %156 = vector.shape_cast %155 : vector<16xf32> to vector<16x1xf32>
    %157 = vector.broadcast %156 : vector<16x1xf32> to vector<16x32xf32>
    %158 = arith.subf %154, %157 : vector<16x32xf32>
    %159 = math.exp %158 : vector<16x32xf32>
    %cst_61 = arith.constant dense<0.000000e+00> : vector<16xf32>
    %160 = vector.multi_reduction <add>, %159, %cst_61 [1] : vector<16x32xf32> to vector<16xf32>
    %161 = vector.shape_cast %160 : vector<16xf32> to vector<16x1xf32>
    %162 = tpu.reciprocal %161 {approx = true} : vector<16x1xf32> -> vector<16x1xf32>
    %163 = vector.broadcast %162 : vector<16x1xf32> to vector<16x32xf32>
    %164 = arith.mulf %159, %163 : vector<16x32xf32>
    %165 = vector.extract_strided_slice %130 {offsets = [0, 8], sizes = [32, 8], strides = [1, 1]} : vector<32x32xf32> to vector<32x8xf32>
    %cst_62 = arith.constant dense<0.000000e+00> : vector<16x8xf32>
    %166 = tpu.matmul %164, %165, %cst_62 {dimension_numbers = #tpu.dot_dimension_numbers<[1], [0], [0], [1], [0, 0, 1, 1], [], []>} : vector<16x32xf32>, vector<32x8xf32>, vector<16x8xf32> -> vector<16x8xf32>
    %167 = vector.extract_strided_slice %131 {offsets = [8, 0], sizes = [8, 32], strides = [1, 1]} : vector<32x32xf32> to vector<8x32xf32>
    %cst_63 = arith.constant dense<0.000000e+00> : vector<16x32xf32>
    %168 = tpu.matmul %166, %167, %cst_63 {dimension_numbers = #tpu.dot_dimension_numbers<[1], [0], [0], [1], [0, 0, 1, 1], [], []>} : vector<16x8xf32>, vector<8x32xf32>, vector<16x32xf32> -> vector<16x32xf32>
    %169 = arith.addf %150, %168 : vector<16x32xf32>
    %170 = vector.extract_strided_slice %128 {offsets = [0, 16], sizes = [16, 8], strides = [1, 1]} : vector<16x32xf32> to vector<16x8xf32>
    %171 = vector.extract_strided_slice %129 {offsets = [0, 16], sizes = [32, 8], strides = [1, 1]} : vector<32x32xf32> to vector<32x8xf32>
    %cst_64 = arith.constant dense<0.000000e+00> : vector<16x32xf32>
    %172 = tpu.matmul %170, %171, %cst_64 {dimension_numbers = #tpu.dot_dimension_numbers<[1], [1], [0], [0], [0, 0, 1, 0], [], []>} : vector<16x8xf32>, vector<32x8xf32>, vector<16x32xf32> -> vector<16x32xf32>
    %173 = arith.addf %172, %7 : vector<16x32xf32>
    %cst_65 = arith.constant dense<0xFF800000> : vector<16xf32>
    %174 = vector.multi_reduction <maximumf>, %173, %cst_65 [1] : vector<16x32xf32> to vector<16xf32>
    %175 = vector.shape_cast %174 : vector<16xf32> to vector<16x1xf32>
    %176 = vector.broadcast %175 : vector<16x1xf32> to vector<16x32xf32>
    %177 = arith.subf %173, %176 : vector<16x32xf32>
    %178 = math.exp %177 : vector<16x32xf32>
    %cst_66 = arith.constant dense<0.000000e+00> : vector<16xf32>
    %179 = vector.multi_reduction <add>, %178, %cst_66 [1] : vector<16x32xf32> to vector<16xf32>
    %180 = vector.shape_cast %179 : vector<16xf32> to vector<16x1xf32>
    %181 = tpu.reciprocal %180 {approx = true} : vector<16x1xf32> -> vector<16x1xf32>
    %182 = vector.broadcast %181 : vector<16x1xf32> to vector<16x32xf32>
    %183 = arith.mulf %178, %182 : vector<16x32xf32>
    %184 = vector.extract_strided_slice %130 {offsets = [0, 16], sizes = [32, 8], strides = [1, 1]} : vector<32x32xf32> to vector<32x8xf32>
    %cst_67 = arith.constant dense<0.000000e+00> : vector<16x8xf32>
    %185 = tpu.matmul %183, %184, %cst_67 {dimension_numbers = #tpu.dot_dimension_numbers<[1], [0], [0], [1], [0, 0, 1, 1], [], []>} : vector<16x32xf32>, vector<32x8xf32>, vector<16x8xf32> -> vector<16x8xf32>
    %186 = vector.extract_strided_slice %131 {offsets = [16, 0], sizes = [8, 32], strides = [1, 1]} : vector<32x32xf32> to vector<8x32xf32>
    %cst_68 = arith.constant dense<0.000000e+00> : vector<16x32xf32>
    %187 = tpu.matmul %185, %186, %cst_68 {dimension_numbers = #tpu.dot_dimension_numbers<[1], [0], [0], [1], [0, 0, 1, 1], [], []>} : vector<16x8xf32>, vector<8x32xf32>, vector<16x32xf32> -> vector<16x32xf32>
    %188 = arith.addf %169, %187 : vector<16x32xf32>
    %189 = vector.extract_strided_slice %128 {offsets = [0, 24], sizes = [16, 8], strides = [1, 1]} : vector<16x32xf32> to vector<16x8xf32>
    %190 = vector.extract_strided_slice %129 {offsets = [0, 24], sizes = [32, 8], strides = [1, 1]} : vector<32x32xf32> to vector<32x8xf32>
    %cst_69 = arith.constant dense<0.000000e+00> : vector<16x32xf32>
    %191 = tpu.matmul %189, %190, %cst_69 {dimension_numbers = #tpu.dot_dimension_numbers<[1], [1], [0], [0], [0, 0, 1, 0], [], []>} : vector<16x8xf32>, vector<32x8xf32>, vector<16x32xf32> -> vector<16x32xf32>
    %192 = arith.addf %191, %7 : vector<16x32xf32>
    %cst_70 = arith.constant dense<0xFF800000> : vector<16xf32>
    %193 = vector.multi_reduction <maximumf>, %192, %cst_70 [1] : vector<16x32xf32> to vector<16xf32>
    %194 = vector.shape_cast %193 : vector<16xf32> to vector<16x1xf32>
    %195 = vector.broadcast %194 : vector<16x1xf32> to vector<16x32xf32>
    %196 = arith.subf %192, %195 : vector<16x32xf32>
    %197 = math.exp %196 : vector<16x32xf32>
    %cst_71 = arith.constant dense<0.000000e+00> : vector<16xf32>
    %198 = vector.multi_reduction <add>, %197, %cst_71 [1] : vector<16x32xf32> to vector<16xf32>
    %199 = vector.shape_cast %198 : vector<16xf32> to vector<16x1xf32>
    %200 = tpu.reciprocal %199 {approx = true} : vector<16x1xf32> -> vector<16x1xf32>
    %201 = vector.broadcast %200 : vector<16x1xf32> to vector<16x32xf32>
    %202 = arith.mulf %197, %201 : vector<16x32xf32>
    %203 = vector.extract_strided_slice %130 {offsets = [0, 24], sizes = [32, 8], strides = [1, 1]} : vector<32x32xf32> to vector<32x8xf32>
    %cst_72 = arith.constant dense<0.000000e+00> : vector<16x8xf32>
    %204 = tpu.matmul %202, %203, %cst_72 {dimension_numbers = #tpu.dot_dimension_numbers<[1], [0], [0], [1], [0, 0, 1, 1], [], []>} : vector<16x32xf32>, vector<32x8xf32>, vector<16x8xf32> -> vector<16x8xf32>
    %205 = vector.extract_strided_slice %131 {offsets = [24, 0], sizes = [8, 32], strides = [1, 1]} : vector<32x32xf32> to vector<8x32xf32>
    %cst_73 = arith.constant dense<0.000000e+00> : vector<16x32xf32>
    %206 = tpu.matmul %204, %205, %cst_73 {dimension_numbers = #tpu.dot_dimension_numbers<[1], [0], [0], [1], [0, 0, 1, 1], [], []>} : vector<16x8xf32>, vector<8x32xf32>, vector<16x32xf32> -> vector<16x32xf32>
    %207 = arith.addf %188, %206 : vector<16x32xf32>
    %208 = vector.broadcast %132 : vector<1x32xf32> to vector<16x32xf32>
    %209 = arith.addf %207, %208 : vector<16x32xf32>
    %210 = arith.addf %123, %209 : vector<16x32xf32>
    %c7 = arith.constant 7 : index
    %c0_74 = arith.constant 0 : index
    %211 = vector.load %arg6[%c7, %c0_74] : memref<13x128xf32, #tpu.memory_space<vmem>>, vector<1x32xf32>
    %c7_75 = arith.constant 7 : index
    %c32_76 = arith.constant 32 : index
    %212 = vector.load %arg6[%c7_75, %c32_76] : memref<13x128xf32, #tpu.memory_space<vmem>>, vector<1x32xf32>
    %cst_77 = arith.constant dense<0.000000e+00> : vector<16xf32>
    %213 = vector.multi_reduction <add>, %210, %cst_77 [1] : vector<16x32xf32> to vector<16xf32>
    %214 = vector.shape_cast %213 : vector<16xf32> to vector<16x1xf32>
    %cst_78 = arith.constant 3.200000e+01 : f32
    %215 = vector.broadcast %cst_78 : f32 to vector<16x1xf32>
    %216 = arith.divf %214, %215 : vector<16x1xf32>
    %217 = vector.broadcast %216 : vector<16x1xf32> to vector<16x32xf32>
    %218 = arith.subf %210, %217 : vector<16x32xf32>
    %219 = arith.mulf %218, %218 : vector<16x32xf32>
    %cst_79 = arith.constant dense<0.000000e+00> : vector<16xf32>
    %220 = vector.multi_reduction <add>, %219, %cst_79 [1] : vector<16x32xf32> to vector<16xf32>
    %221 = vector.shape_cast %220 : vector<16xf32> to vector<16x1xf32>
    %cst_80 = arith.constant 0.0322580636 : f32
    %222 = vector.broadcast %cst_80 : f32 to vector<16x1xf32>
    %223 = arith.mulf %221, %222 : vector<16x1xf32>
    %224 = math.sqrt %223 : vector<16x1xf32>
    %cst_81 = arith.constant 9.99999997E-7 : f32
    %225 = vector.broadcast %cst_81 : f32 to vector<16x1xf32>
    %226 = arith.addf %224, %225 : vector<16x1xf32>
    %227 = tpu.reciprocal %226 {approx = true} : vector<16x1xf32> -> vector<16x1xf32>
    %228 = vector.broadcast %211 : vector<1x32xf32> to vector<16x32xf32>
    %229 = arith.mulf %228, %218 : vector<16x32xf32>
    %230 = vector.broadcast %227 : vector<16x1xf32> to vector<16x32xf32>
    %231 = arith.mulf %229, %230 : vector<16x32xf32>
    %232 = vector.broadcast %212 : vector<1x32xf32> to vector<16x32xf32>
    %233 = arith.addf %231, %232 : vector<16x32xf32>
    %c0_82 = arith.constant 0 : index
    %c192 = arith.constant 192 : index
    %234 = vector.load %arg4[%c0_82, %c192] : memref<32x896xf32, #tpu.memory_space<vmem>>, vector<32x64xf32>
    %cst_83 = arith.constant dense<0.000000e+00> : vector<16x64xf32>
    %235 = tpu.matmul %233, %234, %cst_83 {dimension_numbers = #tpu.dot_dimension_numbers<[1], [0], [0], [1], [0, 0, 1, 1], [], []>} : vector<16x32xf32>, vector<32x64xf32>, vector<16x64xf32> -> vector<16x64xf32>
    %c1_84 = arith.constant 1 : index
    %c64 = arith.constant 64 : index
    %236 = vector.load %arg6[%c1_84, %c64] : memref<13x128xf32, #tpu.memory_space<vmem>>, vector<1x64xf32>
    %237 = vector.broadcast %236 : vector<1x64xf32> to vector<16x64xf32>
    %238 = arith.addf %235, %237 : vector<16x64xf32>
    %cst_85 = arith.constant 0.000000e+00 : f32
    %239 = vector.broadcast %cst_85 : f32 to vector<16x64xf32>
    %240 = arith.maximumf %238, %239 : vector<16x64xf32>
    %c0_86 = arith.constant 0 : index
    %c0_87 = arith.constant 0 : index
    %241 = vector.load %arg5[%c0_86, %c0_87] : memref<64x64xf32, #tpu.memory_space<vmem>>, vector<64x32xf32>
    %cst_88 = arith.constant dense<0.000000e+00> : vector<16x32xf32>
    %242 = tpu.matmul %240, %241, %cst_88 {dimension_numbers = #tpu.dot_dimension_numbers<[1], [0], [0], [1], [0, 0, 1, 1], [], []>} : vector<16x64xf32>, vector<64x32xf32>, vector<16x32xf32> -> vector<16x32xf32>
    %c5 = arith.constant 5 : index
    %c0_89 = arith.constant 0 : index
    %243 = vector.load %arg6[%c5, %c0_89] : memref<13x128xf32, #tpu.memory_space<vmem>>, vector<1x32xf32>
    %244 = vector.broadcast %243 : vector<1x32xf32> to vector<16x32xf32>
    %245 = arith.addf %242, %244 : vector<16x32xf32>
    %246 = arith.addf %233, %245 : vector<16x32xf32>
    %c8 = arith.constant 8 : index
    %c0_90 = arith.constant 0 : index
    %247 = vector.load %arg6[%c8, %c0_90] : memref<13x128xf32, #tpu.memory_space<vmem>>, vector<1x32xf32>
    %c8_91 = arith.constant 8 : index
    %c32_92 = arith.constant 32 : index
    %248 = vector.load %arg6[%c8_91, %c32_92] : memref<13x128xf32, #tpu.memory_space<vmem>>, vector<1x32xf32>
    %cst_93 = arith.constant dense<0.000000e+00> : vector<16xf32>
    %249 = vector.multi_reduction <add>, %246, %cst_93 [1] : vector<16x32xf32> to vector<16xf32>
    %250 = vector.shape_cast %249 : vector<16xf32> to vector<16x1xf32>
    %cst_94 = arith.constant 3.200000e+01 : f32
    %251 = vector.broadcast %cst_94 : f32 to vector<16x1xf32>
    %252 = arith.divf %250, %251 : vector<16x1xf32>
    %253 = vector.broadcast %252 : vector<16x1xf32> to vector<16x32xf32>
    %254 = arith.subf %246, %253 : vector<16x32xf32>
    %255 = arith.mulf %254, %254 : vector<16x32xf32>
    %cst_95 = arith.constant dense<0.000000e+00> : vector<16xf32>
    %256 = vector.multi_reduction <add>, %255, %cst_95 [1] : vector<16x32xf32> to vector<16xf32>
    %257 = vector.shape_cast %256 : vector<16xf32> to vector<16x1xf32>
    %cst_96 = arith.constant 0.0322580636 : f32
    %258 = vector.broadcast %cst_96 : f32 to vector<16x1xf32>
    %259 = arith.mulf %257, %258 : vector<16x1xf32>
    %260 = math.sqrt %259 : vector<16x1xf32>
    %cst_97 = arith.constant 9.99999997E-7 : f32
    %261 = vector.broadcast %cst_97 : f32 to vector<16x1xf32>
    %262 = arith.addf %260, %261 : vector<16x1xf32>
    %263 = tpu.reciprocal %262 {approx = true} : vector<16x1xf32> -> vector<16x1xf32>
    %264 = vector.broadcast %247 : vector<1x32xf32> to vector<16x32xf32>
    %265 = arith.mulf %264, %254 : vector<16x32xf32>
    %266 = vector.broadcast %263 : vector<16x1xf32> to vector<16x32xf32>
    %267 = arith.mulf %265, %266 : vector<16x32xf32>
    %268 = vector.broadcast %248 : vector<1x32xf32> to vector<16x32xf32>
    %269 = arith.addf %267, %268 : vector<16x32xf32>
    %c0_98 = arith.constant 0 : index
    %c256 = arith.constant 256 : index
    %270 = vector.load %arg4[%c0_98, %c256] : memref<32x896xf32, #tpu.memory_space<vmem>>, vector<32x96xf32>
    %cst_99 = arith.constant dense<0.000000e+00> : vector<16x96xf32>
    %271 = tpu.matmul %269, %270, %cst_99 {dimension_numbers = #tpu.dot_dimension_numbers<[1], [0], [0], [1], [0, 0, 1, 1], [], []>} : vector<16x32xf32>, vector<32x96xf32>, vector<16x96xf32> -> vector<16x96xf32>
    %c2 = arith.constant 2 : index
    %c0_100 = arith.constant 0 : index
    %272 = vector.load %arg6[%c2, %c0_100] : memref<13x128xf32, #tpu.memory_space<vmem>>, vector<1x96xf32>
    %273 = vector.broadcast %272 : vector<1x96xf32> to vector<16x96xf32>
    %274 = arith.addf %271, %273 : vector<16x96xf32>
    %275 = vector.extract_strided_slice %274 {offsets = [0, 0], sizes = [16, 32], strides = [1, 1]} : vector<16x96xf32> to vector<16x32xf32>
    %276 = vector.extract_strided_slice %274 {offsets = [0, 32], sizes = [16, 32], strides = [1, 1]} : vector<16x96xf32> to vector<16x32xf32>
    %277 = vector.extract_strided_slice %274 {offsets = [0, 64], sizes = [16, 32], strides = [1, 1]} : vector<16x96xf32> to vector<16x32xf32>
    %c0_101 = arith.constant 0 : index
    %c352 = arith.constant 352 : index
    %278 = vector.load %arg4[%c0_101, %c352] : memref<32x896xf32, #tpu.memory_space<vmem>>, vector<32x32xf32>
    %c2_102 = arith.constant 2 : index
    %c96_103 = arith.constant 96 : index
    %279 = vector.load %arg6[%c2_102, %c96_103] : memref<13x128xf32, #tpu.memory_space<vmem>>, vector<1x32xf32>
    %280 = vector.extract_strided_slice %275 {offsets = [0, 0], sizes = [16, 8], strides = [1, 1]} : vector<16x32xf32> to vector<16x8xf32>
    %281 = vector.extract_strided_slice %276 {offsets = [0, 0], sizes = [16, 8], strides = [1, 1]} : vector<16x32xf32> to vector<16x8xf32>
    %cst_104 = arith.constant dense<0.000000e+00> : vector<16x16xf32>
    %282 = tpu.matmul %280, %281, %cst_104 {dimension_numbers = #tpu.dot_dimension_numbers<[1], [1], [0], [0], [0, 0, 1, 0], [], []>} : vector<16x8xf32>, vector<16x8xf32>, vector<16x16xf32> -> vector<16x16xf32>
    %283 = arith.addf %282, %6 : vector<16x16xf32>
    %cst_105 = arith.constant dense<0xFF800000> : vector<16xf32>
    %284 = vector.multi_reduction <maximumf>, %283, %cst_105 [1] : vector<16x16xf32> to vector<16xf32>
    %285 = vector.shape_cast %284 : vector<16xf32> to vector<16x1xf32>
    %286 = vector.broadcast %285 : vector<16x1xf32> to vector<16x16xf32>
    %287 = arith.subf %283, %286 : vector<16x16xf32>
    %288 = math.exp %287 : vector<16x16xf32>
    %cst_106 = arith.constant dense<0.000000e+00> : vector<16xf32>
    %289 = vector.multi_reduction <add>, %288, %cst_106 [1] : vector<16x16xf32> to vector<16xf32>
    %290 = vector.shape_cast %289 : vector<16xf32> to vector<16x1xf32>
    %291 = tpu.reciprocal %290 {approx = true} : vector<16x1xf32> -> vector<16x1xf32>
    %292 = vector.broadcast %291 : vector<16x1xf32> to vector<16x16xf32>
    %293 = arith.mulf %288, %292 : vector<16x16xf32>
    %294 = vector.extract_strided_slice %277 {offsets = [0, 0], sizes = [16, 8], strides = [1, 1]} : vector<16x32xf32> to vector<16x8xf32>
    %cst_107 = arith.constant dense<0.000000e+00> : vector<16x8xf32>
    %295 = tpu.matmul %293, %294, %cst_107 {dimension_numbers = #tpu.dot_dimension_numbers<[1], [0], [0], [1], [0, 0, 1, 1], [], []>} : vector<16x16xf32>, vector<16x8xf32>, vector<16x8xf32> -> vector<16x8xf32>
    %296 = vector.extract_strided_slice %278 {offsets = [0, 0], sizes = [8, 32], strides = [1, 1]} : vector<32x32xf32> to vector<8x32xf32>
    %cst_108 = arith.constant dense<0.000000e+00> : vector<16x32xf32>
    %297 = tpu.matmul %295, %296, %cst_108 {dimension_numbers = #tpu.dot_dimension_numbers<[1], [0], [0], [1], [0, 0, 1, 1], [], []>} : vector<16x8xf32>, vector<8x32xf32>, vector<16x32xf32> -> vector<16x32xf32>
    %298 = vector.extract_strided_slice %275 {offsets = [0, 8], sizes = [16, 8], strides = [1, 1]} : vector<16x32xf32> to vector<16x8xf32>
    %299 = vector.extract_strided_slice %276 {offsets = [0, 8], sizes = [16, 8], strides = [1, 1]} : vector<16x32xf32> to vector<16x8xf32>
    %cst_109 = arith.constant dense<0.000000e+00> : vector<16x16xf32>
    %300 = tpu.matmul %298, %299, %cst_109 {dimension_numbers = #tpu.dot_dimension_numbers<[1], [1], [0], [0], [0, 0, 1, 0], [], []>} : vector<16x8xf32>, vector<16x8xf32>, vector<16x16xf32> -> vector<16x16xf32>
    %301 = arith.addf %300, %6 : vector<16x16xf32>
    %cst_110 = arith.constant dense<0xFF800000> : vector<16xf32>
    %302 = vector.multi_reduction <maximumf>, %301, %cst_110 [1] : vector<16x16xf32> to vector<16xf32>
    %303 = vector.shape_cast %302 : vector<16xf32> to vector<16x1xf32>
    %304 = vector.broadcast %303 : vector<16x1xf32> to vector<16x16xf32>
    %305 = arith.subf %301, %304 : vector<16x16xf32>
    %306 = math.exp %305 : vector<16x16xf32>
    %cst_111 = arith.constant dense<0.000000e+00> : vector<16xf32>
    %307 = vector.multi_reduction <add>, %306, %cst_111 [1] : vector<16x16xf32> to vector<16xf32>
    %308 = vector.shape_cast %307 : vector<16xf32> to vector<16x1xf32>
    %309 = tpu.reciprocal %308 {approx = true} : vector<16x1xf32> -> vector<16x1xf32>
    %310 = vector.broadcast %309 : vector<16x1xf32> to vector<16x16xf32>
    %311 = arith.mulf %306, %310 : vector<16x16xf32>
    %312 = vector.extract_strided_slice %277 {offsets = [0, 8], sizes = [16, 8], strides = [1, 1]} : vector<16x32xf32> to vector<16x8xf32>
    %cst_112 = arith.constant dense<0.000000e+00> : vector<16x8xf32>
    %313 = tpu.matmul %311, %312, %cst_112 {dimension_numbers = #tpu.dot_dimension_numbers<[1], [0], [0], [1], [0, 0, 1, 1], [], []>} : vector<16x16xf32>, vector<16x8xf32>, vector<16x8xf32> -> vector<16x8xf32>
    %314 = vector.extract_strided_slice %278 {offsets = [8, 0], sizes = [8, 32], strides = [1, 1]} : vector<32x32xf32> to vector<8x32xf32>
    %cst_113 = arith.constant dense<0.000000e+00> : vector<16x32xf32>
    %315 = tpu.matmul %313, %314, %cst_113 {dimension_numbers = #tpu.dot_dimension_numbers<[1], [0], [0], [1], [0, 0, 1, 1], [], []>} : vector<16x8xf32>, vector<8x32xf32>, vector<16x32xf32> -> vector<16x32xf32>
    %316 = arith.addf %297, %315 : vector<16x32xf32>
    %317 = vector.extract_strided_slice %275 {offsets = [0, 16], sizes = [16, 8], strides = [1, 1]} : vector<16x32xf32> to vector<16x8xf32>
    %318 = vector.extract_strided_slice %276 {offsets = [0, 16], sizes = [16, 8], strides = [1, 1]} : vector<16x32xf32> to vector<16x8xf32>
    %cst_114 = arith.constant dense<0.000000e+00> : vector<16x16xf32>
    %319 = tpu.matmul %317, %318, %cst_114 {dimension_numbers = #tpu.dot_dimension_numbers<[1], [1], [0], [0], [0, 0, 1, 0], [], []>} : vector<16x8xf32>, vector<16x8xf32>, vector<16x16xf32> -> vector<16x16xf32>
    %320 = arith.addf %319, %6 : vector<16x16xf32>
    %cst_115 = arith.constant dense<0xFF800000> : vector<16xf32>
    %321 = vector.multi_reduction <maximumf>, %320, %cst_115 [1] : vector<16x16xf32> to vector<16xf32>
    %322 = vector.shape_cast %321 : vector<16xf32> to vector<16x1xf32>
    %323 = vector.broadcast %322 : vector<16x1xf32> to vector<16x16xf32>
    %324 = arith.subf %320, %323 : vector<16x16xf32>
    %325 = math.exp %324 : vector<16x16xf32>
    %cst_116 = arith.constant dense<0.000000e+00> : vector<16xf32>
    %326 = vector.multi_reduction <add>, %325, %cst_116 [1] : vector<16x16xf32> to vector<16xf32>
    %327 = vector.shape_cast %326 : vector<16xf32> to vector<16x1xf32>
    %328 = tpu.reciprocal %327 {approx = true} : vector<16x1xf32> -> vector<16x1xf32>
    %329 = vector.broadcast %328 : vector<16x1xf32> to vector<16x16xf32>
    %330 = arith.mulf %325, %329 : vector<16x16xf32>
    %331 = vector.extract_strided_slice %277 {offsets = [0, 16], sizes = [16, 8], strides = [1, 1]} : vector<16x32xf32> to vector<16x8xf32>
    %cst_117 = arith.constant dense<0.000000e+00> : vector<16x8xf32>
    %332 = tpu.matmul %330, %331, %cst_117 {dimension_numbers = #tpu.dot_dimension_numbers<[1], [0], [0], [1], [0, 0, 1, 1], [], []>} : vector<16x16xf32>, vector<16x8xf32>, vector<16x8xf32> -> vector<16x8xf32>
    %333 = vector.extract_strided_slice %278 {offsets = [16, 0], sizes = [8, 32], strides = [1, 1]} : vector<32x32xf32> to vector<8x32xf32>
    %cst_118 = arith.constant dense<0.000000e+00> : vector<16x32xf32>
    %334 = tpu.matmul %332, %333, %cst_118 {dimension_numbers = #tpu.dot_dimension_numbers<[1], [0], [0], [1], [0, 0, 1, 1], [], []>} : vector<16x8xf32>, vector<8x32xf32>, vector<16x32xf32> -> vector<16x32xf32>
    %335 = arith.addf %316, %334 : vector<16x32xf32>
    %336 = vector.extract_strided_slice %275 {offsets = [0, 24], sizes = [16, 8], strides = [1, 1]} : vector<16x32xf32> to vector<16x8xf32>
    %337 = vector.extract_strided_slice %276 {offsets = [0, 24], sizes = [16, 8], strides = [1, 1]} : vector<16x32xf32> to vector<16x8xf32>
    %cst_119 = arith.constant dense<0.000000e+00> : vector<16x16xf32>
    %338 = tpu.matmul %336, %337, %cst_119 {dimension_numbers = #tpu.dot_dimension_numbers<[1], [1], [0], [0], [0, 0, 1, 0], [], []>} : vector<16x8xf32>, vector<16x8xf32>, vector<16x16xf32> -> vector<16x16xf32>
    %339 = arith.addf %338, %6 : vector<16x16xf32>
    %cst_120 = arith.constant dense<0xFF800000> : vector<16xf32>
    %340 = vector.multi_reduction <maximumf>, %339, %cst_120 [1] : vector<16x16xf32> to vector<16xf32>
    %341 = vector.shape_cast %340 : vector<16xf32> to vector<16x1xf32>
    %342 = vector.broadcast %341 : vector<16x1xf32> to vector<16x16xf32>
    %343 = arith.subf %339, %342 : vector<16x16xf32>
    %344 = math.exp %343 : vector<16x16xf32>
    %cst_121 = arith.constant dense<0.000000e+00> : vector<16xf32>
    %345 = vector.multi_reduction <add>, %344, %cst_121 [1] : vector<16x16xf32> to vector<16xf32>
    %346 = vector.shape_cast %345 : vector<16xf32> to vector<16x1xf32>
    %347 = tpu.reciprocal %346 {approx = true} : vector<16x1xf32> -> vector<16x1xf32>
    %348 = vector.broadcast %347 : vector<16x1xf32> to vector<16x16xf32>
    %349 = arith.mulf %344, %348 : vector<16x16xf32>
    %350 = vector.extract_strided_slice %277 {offsets = [0, 24], sizes = [16, 8], strides = [1, 1]} : vector<16x32xf32> to vector<16x8xf32>
    %cst_122 = arith.constant dense<0.000000e+00> : vector<16x8xf32>
    %351 = tpu.matmul %349, %350, %cst_122 {dimension_numbers = #tpu.dot_dimension_numbers<[1], [0], [0], [1], [0, 0, 1, 1], [], []>} : vector<16x16xf32>, vector<16x8xf32>, vector<16x8xf32> -> vector<16x8xf32>
    %352 = vector.extract_strided_slice %278 {offsets = [24, 0], sizes = [8, 32], strides = [1, 1]} : vector<32x32xf32> to vector<8x32xf32>
    %cst_123 = arith.constant dense<0.000000e+00> : vector<16x32xf32>
    %353 = tpu.matmul %351, %352, %cst_123 {dimension_numbers = #tpu.dot_dimension_numbers<[1], [0], [0], [1], [0, 0, 1, 1], [], []>} : vector<16x8xf32>, vector<8x32xf32>, vector<16x32xf32> -> vector<16x32xf32>
    %354 = arith.addf %335, %353 : vector<16x32xf32>
    %355 = vector.broadcast %279 : vector<1x32xf32> to vector<16x32xf32>
    %356 = arith.addf %354, %355 : vector<16x32xf32>
    %357 = arith.addf %269, %356 : vector<16x32xf32>
    %c9 = arith.constant 9 : index
    %c0_124 = arith.constant 0 : index
    %358 = vector.load %arg6[%c9, %c0_124] : memref<13x128xf32, #tpu.memory_space<vmem>>, vector<1x32xf32>
    %c9_125 = arith.constant 9 : index
    %c32_126 = arith.constant 32 : index
    %359 = vector.load %arg6[%c9_125, %c32_126] : memref<13x128xf32, #tpu.memory_space<vmem>>, vector<1x32xf32>
    %cst_127 = arith.constant dense<0.000000e+00> : vector<16xf32>
    %360 = vector.multi_reduction <add>, %357, %cst_127 [1] : vector<16x32xf32> to vector<16xf32>
    %361 = vector.shape_cast %360 : vector<16xf32> to vector<16x1xf32>
    %cst_128 = arith.constant 3.200000e+01 : f32
    %362 = vector.broadcast %cst_128 : f32 to vector<16x1xf32>
    %363 = arith.divf %361, %362 : vector<16x1xf32>
    %364 = vector.broadcast %363 : vector<16x1xf32> to vector<16x32xf32>
    %365 = arith.subf %357, %364 : vector<16x32xf32>
    %366 = arith.mulf %365, %365 : vector<16x32xf32>
    %cst_129 = arith.constant dense<0.000000e+00> : vector<16xf32>
    %367 = vector.multi_reduction <add>, %366, %cst_129 [1] : vector<16x32xf32> to vector<16xf32>
    %368 = vector.shape_cast %367 : vector<16xf32> to vector<16x1xf32>
    %cst_130 = arith.constant 0.0322580636 : f32
    %369 = vector.broadcast %cst_130 : f32 to vector<16x1xf32>
    %370 = arith.mulf %368, %369 : vector<16x1xf32>
    %371 = math.sqrt %370 : vector<16x1xf32>
    %cst_131 = arith.constant 9.99999997E-7 : f32
    %372 = vector.broadcast %cst_131 : f32 to vector<16x1xf32>
    %373 = arith.addf %371, %372 : vector<16x1xf32>
    %374 = tpu.reciprocal %373 {approx = true} : vector<16x1xf32> -> vector<16x1xf32>
    %375 = vector.broadcast %358 : vector<1x32xf32> to vector<16x32xf32>
    %376 = arith.mulf %375, %365 : vector<16x32xf32>
    %377 = vector.broadcast %374 : vector<16x1xf32> to vector<16x32xf32>
    %378 = arith.mulf %376, %377 : vector<16x32xf32>
    %379 = vector.broadcast %359 : vector<1x32xf32> to vector<16x32xf32>
    %380 = arith.addf %378, %379 : vector<16x32xf32>
    %c0_132 = arith.constant 0 : index
    %c384 = arith.constant 384 : index
    %381 = vector.load %arg4[%c0_132, %c384] : memref<32x896xf32, #tpu.memory_space<vmem>>, vector<32x32xf32>
    %cst_133 = arith.constant dense<0.000000e+00> : vector<16x32xf32>
    %382 = tpu.matmul %380, %381, %cst_133 {dimension_numbers = #tpu.dot_dimension_numbers<[1], [0], [0], [1], [0, 0, 1, 1], [], []>} : vector<16x32xf32>, vector<32x32xf32>, vector<16x32xf32> -> vector<16x32xf32>
    %c3 = arith.constant 3 : index
    %c0_134 = arith.constant 0 : index
    %383 = vector.load %arg6[%c3, %c0_134] : memref<13x128xf32, #tpu.memory_space<vmem>>, vector<1x32xf32>
    %384 = vector.broadcast %383 : vector<1x32xf32> to vector<16x32xf32>
    %385 = arith.addf %382, %384 : vector<16x32xf32>
    %386 = vector.extract_strided_slice %12 {offsets = [0, 64], sizes = [32, 32], strides = [1, 1]} : vector<32x128xf32> to vector<32x32xf32>
    %387 = vector.extract_strided_slice %12 {offsets = [0, 96], sizes = [32, 32], strides = [1, 1]} : vector<32x128xf32> to vector<32x32xf32>
    %c0_135 = arith.constant 0 : index
    %c416 = arith.constant 416 : index
    %388 = vector.load %arg4[%c0_135, %c416] : memref<32x896xf32, #tpu.memory_space<vmem>>, vector<32x32xf32>
    %c3_136 = arith.constant 3 : index
    %c32_137 = arith.constant 32 : index
    %389 = vector.load %arg6[%c3_136, %c32_137] : memref<13x128xf32, #tpu.memory_space<vmem>>, vector<1x32xf32>
    %390 = vector.extract_strided_slice %385 {offsets = [0, 0], sizes = [16, 8], strides = [1, 1]} : vector<16x32xf32> to vector<16x8xf32>
    %391 = vector.extract_strided_slice %386 {offsets = [0, 0], sizes = [32, 8], strides = [1, 1]} : vector<32x32xf32> to vector<32x8xf32>
    %cst_138 = arith.constant dense<0.000000e+00> : vector<16x32xf32>
    %392 = tpu.matmul %390, %391, %cst_138 {dimension_numbers = #tpu.dot_dimension_numbers<[1], [1], [0], [0], [0, 0, 1, 0], [], []>} : vector<16x8xf32>, vector<32x8xf32>, vector<16x32xf32> -> vector<16x32xf32>
    %393 = arith.addf %392, %7 : vector<16x32xf32>
    %cst_139 = arith.constant dense<0xFF800000> : vector<16xf32>
    %394 = vector.multi_reduction <maximumf>, %393, %cst_139 [1] : vector<16x32xf32> to vector<16xf32>
    %395 = vector.shape_cast %394 : vector<16xf32> to vector<16x1xf32>
    %396 = vector.broadcast %395 : vector<16x1xf32> to vector<16x32xf32>
    %397 = arith.subf %393, %396 : vector<16x32xf32>
    %398 = math.exp %397 : vector<16x32xf32>
    %cst_140 = arith.constant dense<0.000000e+00> : vector<16xf32>
    %399 = vector.multi_reduction <add>, %398, %cst_140 [1] : vector<16x32xf32> to vector<16xf32>
    %400 = vector.shape_cast %399 : vector<16xf32> to vector<16x1xf32>
    %401 = tpu.reciprocal %400 {approx = true} : vector<16x1xf32> -> vector<16x1xf32>
    %402 = vector.broadcast %401 : vector<16x1xf32> to vector<16x32xf32>
    %403 = arith.mulf %398, %402 : vector<16x32xf32>
    %404 = vector.extract_strided_slice %387 {offsets = [0, 0], sizes = [32, 8], strides = [1, 1]} : vector<32x32xf32> to vector<32x8xf32>
    %cst_141 = arith.constant dense<0.000000e+00> : vector<16x8xf32>
    %405 = tpu.matmul %403, %404, %cst_141 {dimension_numbers = #tpu.dot_dimension_numbers<[1], [0], [0], [1], [0, 0, 1, 1], [], []>} : vector<16x32xf32>, vector<32x8xf32>, vector<16x8xf32> -> vector<16x8xf32>
    %406 = vector.extract_strided_slice %388 {offsets = [0, 0], sizes = [8, 32], strides = [1, 1]} : vector<32x32xf32> to vector<8x32xf32>
    %cst_142 = arith.constant dense<0.000000e+00> : vector<16x32xf32>
    %407 = tpu.matmul %405, %406, %cst_142 {dimension_numbers = #tpu.dot_dimension_numbers<[1], [0], [0], [1], [0, 0, 1, 1], [], []>} : vector<16x8xf32>, vector<8x32xf32>, vector<16x32xf32> -> vector<16x32xf32>
    %408 = vector.extract_strided_slice %385 {offsets = [0, 8], sizes = [16, 8], strides = [1, 1]} : vector<16x32xf32> to vector<16x8xf32>
    %409 = vector.extract_strided_slice %386 {offsets = [0, 8], sizes = [32, 8], strides = [1, 1]} : vector<32x32xf32> to vector<32x8xf32>
    %cst_143 = arith.constant dense<0.000000e+00> : vector<16x32xf32>
    %410 = tpu.matmul %408, %409, %cst_143 {dimension_numbers = #tpu.dot_dimension_numbers<[1], [1], [0], [0], [0, 0, 1, 0], [], []>} : vector<16x8xf32>, vector<32x8xf32>, vector<16x32xf32> -> vector<16x32xf32>
    %411 = arith.addf %410, %7 : vector<16x32xf32>
    %cst_144 = arith.constant dense<0xFF800000> : vector<16xf32>
    %412 = vector.multi_reduction <maximumf>, %411, %cst_144 [1] : vector<16x32xf32> to vector<16xf32>
    %413 = vector.shape_cast %412 : vector<16xf32> to vector<16x1xf32>
    %414 = vector.broadcast %413 : vector<16x1xf32> to vector<16x32xf32>
    %415 = arith.subf %411, %414 : vector<16x32xf32>
    %416 = math.exp %415 : vector<16x32xf32>
    %cst_145 = arith.constant dense<0.000000e+00> : vector<16xf32>
    %417 = vector.multi_reduction <add>, %416, %cst_145 [1] : vector<16x32xf32> to vector<16xf32>
    %418 = vector.shape_cast %417 : vector<16xf32> to vector<16x1xf32>
    %419 = tpu.reciprocal %418 {approx = true} : vector<16x1xf32> -> vector<16x1xf32>
    %420 = vector.broadcast %419 : vector<16x1xf32> to vector<16x32xf32>
    %421 = arith.mulf %416, %420 : vector<16x32xf32>
    %422 = vector.extract_strided_slice %387 {offsets = [0, 8], sizes = [32, 8], strides = [1, 1]} : vector<32x32xf32> to vector<32x8xf32>
    %cst_146 = arith.constant dense<0.000000e+00> : vector<16x8xf32>
    %423 = tpu.matmul %421, %422, %cst_146 {dimension_numbers = #tpu.dot_dimension_numbers<[1], [0], [0], [1], [0, 0, 1, 1], [], []>} : vector<16x32xf32>, vector<32x8xf32>, vector<16x8xf32> -> vector<16x8xf32>
    %424 = vector.extract_strided_slice %388 {offsets = [8, 0], sizes = [8, 32], strides = [1, 1]} : vector<32x32xf32> to vector<8x32xf32>
    %cst_147 = arith.constant dense<0.000000e+00> : vector<16x32xf32>
    %425 = tpu.matmul %423, %424, %cst_147 {dimension_numbers = #tpu.dot_dimension_numbers<[1], [0], [0], [1], [0, 0, 1, 1], [], []>} : vector<16x8xf32>, vector<8x32xf32>, vector<16x32xf32> -> vector<16x32xf32>
    %426 = arith.addf %407, %425 : vector<16x32xf32>
    %427 = vector.extract_strided_slice %385 {offsets = [0, 16], sizes = [16, 8], strides = [1, 1]} : vector<16x32xf32> to vector<16x8xf32>
    %428 = vector.extract_strided_slice %386 {offsets = [0, 16], sizes = [32, 8], strides = [1, 1]} : vector<32x32xf32> to vector<32x8xf32>
    %cst_148 = arith.constant dense<0.000000e+00> : vector<16x32xf32>
    %429 = tpu.matmul %427, %428, %cst_148 {dimension_numbers = #tpu.dot_dimension_numbers<[1], [1], [0], [0], [0, 0, 1, 0], [], []>} : vector<16x8xf32>, vector<32x8xf32>, vector<16x32xf32> -> vector<16x32xf32>
    %430 = arith.addf %429, %7 : vector<16x32xf32>
    %cst_149 = arith.constant dense<0xFF800000> : vector<16xf32>
    %431 = vector.multi_reduction <maximumf>, %430, %cst_149 [1] : vector<16x32xf32> to vector<16xf32>
    %432 = vector.shape_cast %431 : vector<16xf32> to vector<16x1xf32>
    %433 = vector.broadcast %432 : vector<16x1xf32> to vector<16x32xf32>
    %434 = arith.subf %430, %433 : vector<16x32xf32>
    %435 = math.exp %434 : vector<16x32xf32>
    %cst_150 = arith.constant dense<0.000000e+00> : vector<16xf32>
    %436 = vector.multi_reduction <add>, %435, %cst_150 [1] : vector<16x32xf32> to vector<16xf32>
    %437 = vector.shape_cast %436 : vector<16xf32> to vector<16x1xf32>
    %438 = tpu.reciprocal %437 {approx = true} : vector<16x1xf32> -> vector<16x1xf32>
    %439 = vector.broadcast %438 : vector<16x1xf32> to vector<16x32xf32>
    %440 = arith.mulf %435, %439 : vector<16x32xf32>
    %441 = vector.extract_strided_slice %387 {offsets = [0, 16], sizes = [32, 8], strides = [1, 1]} : vector<32x32xf32> to vector<32x8xf32>
    %cst_151 = arith.constant dense<0.000000e+00> : vector<16x8xf32>
    %442 = tpu.matmul %440, %441, %cst_151 {dimension_numbers = #tpu.dot_dimension_numbers<[1], [0], [0], [1], [0, 0, 1, 1], [], []>} : vector<16x32xf32>, vector<32x8xf32>, vector<16x8xf32> -> vector<16x8xf32>
    %443 = vector.extract_strided_slice %388 {offsets = [16, 0], sizes = [8, 32], strides = [1, 1]} : vector<32x32xf32> to vector<8x32xf32>
    %cst_152 = arith.constant dense<0.000000e+00> : vector<16x32xf32>
    %444 = tpu.matmul %442, %443, %cst_152 {dimension_numbers = #tpu.dot_dimension_numbers<[1], [0], [0], [1], [0, 0, 1, 1], [], []>} : vector<16x8xf32>, vector<8x32xf32>, vector<16x32xf32> -> vector<16x32xf32>
    %445 = arith.addf %426, %444 : vector<16x32xf32>
    %446 = vector.extract_strided_slice %385 {offsets = [0, 24], sizes = [16, 8], strides = [1, 1]} : vector<16x32xf32> to vector<16x8xf32>
    %447 = vector.extract_strided_slice %386 {offsets = [0, 24], sizes = [32, 8], strides = [1, 1]} : vector<32x32xf32> to vector<32x8xf32>
    %cst_153 = arith.constant dense<0.000000e+00> : vector<16x32xf32>
    %448 = tpu.matmul %446, %447, %cst_153 {dimension_numbers = #tpu.dot_dimension_numbers<[1], [1], [0], [0], [0, 0, 1, 0], [], []>} : vector<16x8xf32>, vector<32x8xf32>, vector<16x32xf32> -> vector<16x32xf32>
    %449 = arith.addf %448, %7 : vector<16x32xf32>
    %cst_154 = arith.constant dense<0xFF800000> : vector<16xf32>
    %450 = vector.multi_reduction <maximumf>, %449, %cst_154 [1] : vector<16x32xf32> to vector<16xf32>
    %451 = vector.shape_cast %450 : vector<16xf32> to vector<16x1xf32>
    %452 = vector.broadcast %451 : vector<16x1xf32> to vector<16x32xf32>
    %453 = arith.subf %449, %452 : vector<16x32xf32>
    %454 = math.exp %453 : vector<16x32xf32>
    %cst_155 = arith.constant dense<0.000000e+00> : vector<16xf32>
    %455 = vector.multi_reduction <add>, %454, %cst_155 [1] : vector<16x32xf32> to vector<16xf32>
    %456 = vector.shape_cast %455 : vector<16xf32> to vector<16x1xf32>
    %457 = tpu.reciprocal %456 {approx = true} : vector<16x1xf32> -> vector<16x1xf32>
    %458 = vector.broadcast %457 : vector<16x1xf32> to vector<16x32xf32>
    %459 = arith.mulf %454, %458 : vector<16x32xf32>
    %460 = vector.extract_strided_slice %387 {offsets = [0, 24], sizes = [32, 8], strides = [1, 1]} : vector<32x32xf32> to vector<32x8xf32>
    %cst_156 = arith.constant dense<0.000000e+00> : vector<16x8xf32>
    %461 = tpu.matmul %459, %460, %cst_156 {dimension_numbers = #tpu.dot_dimension_numbers<[1], [0], [0], [1], [0, 0, 1, 1], [], []>} : vector<16x32xf32>, vector<32x8xf32>, vector<16x8xf32> -> vector<16x8xf32>
    %462 = vector.extract_strided_slice %388 {offsets = [24, 0], sizes = [8, 32], strides = [1, 1]} : vector<32x32xf32> to vector<8x32xf32>
    %cst_157 = arith.constant dense<0.000000e+00> : vector<16x32xf32>
    %463 = tpu.matmul %461, %462, %cst_157 {dimension_numbers = #tpu.dot_dimension_numbers<[1], [0], [0], [1], [0, 0, 1, 1], [], []>} : vector<16x8xf32>, vector<8x32xf32>, vector<16x32xf32> -> vector<16x32xf32>
    %464 = arith.addf %445, %463 : vector<16x32xf32>
    %465 = vector.broadcast %389 : vector<1x32xf32> to vector<16x32xf32>
    %466 = arith.addf %464, %465 : vector<16x32xf32>
    %467 = arith.addf %380, %466 : vector<16x32xf32>
    %c10 = arith.constant 10 : index
    %c0_158 = arith.constant 0 : index
    %468 = vector.load %arg6[%c10, %c0_158] : memref<13x128xf32, #tpu.memory_space<vmem>>, vector<1x32xf32>
    %c10_159 = arith.constant 10 : index
    %c32_160 = arith.constant 32 : index
    %469 = vector.load %arg6[%c10_159, %c32_160] : memref<13x128xf32, #tpu.memory_space<vmem>>, vector<1x32xf32>
    %cst_161 = arith.constant dense<0.000000e+00> : vector<16xf32>
    %470 = vector.multi_reduction <add>, %467, %cst_161 [1] : vector<16x32xf32> to vector<16xf32>
    %471 = vector.shape_cast %470 : vector<16xf32> to vector<16x1xf32>
    %cst_162 = arith.constant 3.200000e+01 : f32
    %472 = vector.broadcast %cst_162 : f32 to vector<16x1xf32>
    %473 = arith.divf %471, %472 : vector<16x1xf32>
    %474 = vector.broadcast %473 : vector<16x1xf32> to vector<16x32xf32>
    %475 = arith.subf %467, %474 : vector<16x32xf32>
    %476 = arith.mulf %475, %475 : vector<16x32xf32>
    %cst_163 = arith.constant dense<0.000000e+00> : vector<16xf32>
    %477 = vector.multi_reduction <add>, %476, %cst_163 [1] : vector<16x32xf32> to vector<16xf32>
    %478 = vector.shape_cast %477 : vector<16xf32> to vector<16x1xf32>
    %cst_164 = arith.constant 0.0322580636 : f32
    %479 = vector.broadcast %cst_164 : f32 to vector<16x1xf32>
    %480 = arith.mulf %478, %479 : vector<16x1xf32>
    %481 = math.sqrt %480 : vector<16x1xf32>
    %cst_165 = arith.constant 9.99999997E-7 : f32
    %482 = vector.broadcast %cst_165 : f32 to vector<16x1xf32>
    %483 = arith.addf %481, %482 : vector<16x1xf32>
    %484 = tpu.reciprocal %483 {approx = true} : vector<16x1xf32> -> vector<16x1xf32>
    %485 = vector.broadcast %468 : vector<1x32xf32> to vector<16x32xf32>
    %486 = arith.mulf %485, %475 : vector<16x32xf32>
    %487 = vector.broadcast %484 : vector<16x1xf32> to vector<16x32xf32>
    %488 = arith.mulf %486, %487 : vector<16x32xf32>
    %489 = vector.broadcast %469 : vector<1x32xf32> to vector<16x32xf32>
    %490 = arith.addf %488, %489 : vector<16x32xf32>
    %c0_166 = arith.constant 0 : index
    %c448 = arith.constant 448 : index
    %491 = vector.load %arg4[%c0_166, %c448] : memref<32x896xf32, #tpu.memory_space<vmem>>, vector<32x64xf32>
    %cst_167 = arith.constant dense<0.000000e+00> : vector<16x64xf32>
    %492 = tpu.matmul %490, %491, %cst_167 {dimension_numbers = #tpu.dot_dimension_numbers<[1], [0], [0], [1], [0, 0, 1, 1], [], []>} : vector<16x32xf32>, vector<32x64xf32>, vector<16x64xf32> -> vector<16x64xf32>
    %c3_168 = arith.constant 3 : index
    %c64_169 = arith.constant 64 : index
    %493 = vector.load %arg6[%c3_168, %c64_169] : memref<13x128xf32, #tpu.memory_space<vmem>>, vector<1x64xf32>
    %494 = vector.broadcast %493 : vector<1x64xf32> to vector<16x64xf32>
    %495 = arith.addf %492, %494 : vector<16x64xf32>
    %cst_170 = arith.constant 0.000000e+00 : f32
    %496 = vector.broadcast %cst_170 : f32 to vector<16x64xf32>
    %497 = arith.maximumf %495, %496 : vector<16x64xf32>
    %c0_171 = arith.constant 0 : index
    %c32_172 = arith.constant 32 : index
    %498 = vector.load %arg5[%c0_171, %c32_172] : memref<64x64xf32, #tpu.memory_space<vmem>>, vector<64x32xf32>
    %cst_173 = arith.constant dense<0.000000e+00> : vector<16x32xf32>
    %499 = tpu.matmul %497, %498, %cst_173 {dimension_numbers = #tpu.dot_dimension_numbers<[1], [0], [0], [1], [0, 0, 1, 1], [], []>} : vector<16x64xf32>, vector<64x32xf32>, vector<16x32xf32> -> vector<16x32xf32>
    %c5_174 = arith.constant 5 : index
    %c32_175 = arith.constant 32 : index
    %500 = vector.load %arg6[%c5_174, %c32_175] : memref<13x128xf32, #tpu.memory_space<vmem>>, vector<1x32xf32>
    %501 = vector.broadcast %500 : vector<1x32xf32> to vector<16x32xf32>
    %502 = arith.addf %499, %501 : vector<16x32xf32>
    %503 = arith.addf %490, %502 : vector<16x32xf32>
    %c11 = arith.constant 11 : index
    %c0_176 = arith.constant 0 : index
    %504 = vector.load %arg6[%c11, %c0_176] : memref<13x128xf32, #tpu.memory_space<vmem>>, vector<1x32xf32>
    %c11_177 = arith.constant 11 : index
    %c32_178 = arith.constant 32 : index
    %505 = vector.load %arg6[%c11_177, %c32_178] : memref<13x128xf32, #tpu.memory_space<vmem>>, vector<1x32xf32>
    %cst_179 = arith.constant dense<0.000000e+00> : vector<16xf32>
    %506 = vector.multi_reduction <add>, %503, %cst_179 [1] : vector<16x32xf32> to vector<16xf32>
    %507 = vector.shape_cast %506 : vector<16xf32> to vector<16x1xf32>
    %cst_180 = arith.constant 3.200000e+01 : f32
    %508 = vector.broadcast %cst_180 : f32 to vector<16x1xf32>
    %509 = arith.divf %507, %508 : vector<16x1xf32>
    %510 = vector.broadcast %509 : vector<16x1xf32> to vector<16x32xf32>
    %511 = arith.subf %503, %510 : vector<16x32xf32>
    %512 = arith.mulf %511, %511 : vector<16x32xf32>
    %cst_181 = arith.constant dense<0.000000e+00> : vector<16xf32>
    %513 = vector.multi_reduction <add>, %512, %cst_181 [1] : vector<16x32xf32> to vector<16xf32>
    %514 = vector.shape_cast %513 : vector<16xf32> to vector<16x1xf32>
    %cst_182 = arith.constant 0.0322580636 : f32
    %515 = vector.broadcast %cst_182 : f32 to vector<16x1xf32>
    %516 = arith.mulf %514, %515 : vector<16x1xf32>
    %517 = math.sqrt %516 : vector<16x1xf32>
    %cst_183 = arith.constant 9.99999997E-7 : f32
    %518 = vector.broadcast %cst_183 : f32 to vector<16x1xf32>
    %519 = arith.addf %517, %518 : vector<16x1xf32>
    %520 = tpu.reciprocal %519 {approx = true} : vector<16x1xf32> -> vector<16x1xf32>
    %521 = vector.broadcast %504 : vector<1x32xf32> to vector<16x32xf32>
    %522 = arith.mulf %521, %511 : vector<16x32xf32>
    %523 = vector.broadcast %520 : vector<16x1xf32> to vector<16x32xf32>
    %524 = arith.mulf %522, %523 : vector<16x32xf32>
    %525 = vector.broadcast %505 : vector<1x32xf32> to vector<16x32xf32>
    %526 = arith.addf %524, %525 : vector<16x32xf32>
    %c5_184 = arith.constant 5 : index
    %c64_185 = arith.constant 64 : index
    %527 = vector.load %arg6[%c5_184, %c64_185] : memref<13x128xf32, #tpu.memory_space<vmem>>, vector<1x32xf32>
    %c5_186 = arith.constant 5 : index
    %c96_187 = arith.constant 96 : index
    %528 = vector.load %arg6[%c5_186, %c96_187] : memref<13x128xf32, #tpu.memory_space<vmem>>, vector<1x32xf32>
    %cst_188 = arith.constant dense<0.000000e+00> : vector<16xf32>
    %529 = vector.multi_reduction <add>, %526, %cst_188 [1] : vector<16x32xf32> to vector<16xf32>
    %530 = vector.shape_cast %529 : vector<16xf32> to vector<16x1xf32>
    %cst_189 = arith.constant 3.200000e+01 : f32
    %531 = vector.broadcast %cst_189 : f32 to vector<16x1xf32>
    %532 = arith.divf %530, %531 : vector<16x1xf32>
    %533 = vector.broadcast %532 : vector<16x1xf32> to vector<16x32xf32>
    %534 = arith.subf %526, %533 : vector<16x32xf32>
    %535 = arith.mulf %534, %534 : vector<16x32xf32>
    %cst_190 = arith.constant dense<0.000000e+00> : vector<16xf32>
    %536 = vector.multi_reduction <add>, %535, %cst_190 [1] : vector<16x32xf32> to vector<16xf32>
    %537 = vector.shape_cast %536 : vector<16xf32> to vector<16x1xf32>
    %cst_191 = arith.constant 0.0322580636 : f32
    %538 = vector.broadcast %cst_191 : f32 to vector<16x1xf32>
    %539 = arith.mulf %537, %538 : vector<16x1xf32>
    %540 = math.sqrt %539 : vector<16x1xf32>
    %cst_192 = arith.constant 9.99999997E-7 : f32
    %541 = vector.broadcast %cst_192 : f32 to vector<16x1xf32>
    %542 = arith.addf %540, %541 : vector<16x1xf32>
    %543 = tpu.reciprocal %542 {approx = true} : vector<16x1xf32> -> vector<16x1xf32>
    %544 = vector.broadcast %527 : vector<1x32xf32> to vector<16x32xf32>
    %545 = arith.mulf %544, %534 : vector<16x32xf32>
    %546 = vector.broadcast %543 : vector<16x1xf32> to vector<16x32xf32>
    %547 = arith.mulf %545, %546 : vector<16x32xf32>
    %548 = vector.broadcast %528 : vector<1x32xf32> to vector<16x32xf32>
    %549 = arith.addf %547, %548 : vector<16x32xf32>
    %c0_193 = arith.constant 0 : index
    %c768 = arith.constant 768 : index
    %550 = vector.load %arg4[%c0_193, %c768] : memref<32x896xf32, #tpu.memory_space<vmem>>, vector<32x128xf32>
    %cst_194 = arith.constant dense<0.000000e+00> : vector<16x128xf32>
    %551 = tpu.matmul %549, %550, %cst_194 {dimension_numbers = #tpu.dot_dimension_numbers<[1], [0], [0], [1], [0, 0, 1, 1], [], []>} : vector<16x32xf32>, vector<32x128xf32>, vector<16x128xf32> -> vector<16x128xf32>
    %c12 = arith.constant 12 : index
    %c0_195 = arith.constant 0 : index
    %552 = vector.load %arg6[%c12, %c0_195] : memref<13x128xf32, #tpu.memory_space<vmem>>, vector<1x128xf32>
    %553 = vector.broadcast %552 : vector<1x128xf32> to vector<16x128xf32>
    %554 = arith.addf %551, %553 : vector<16x128xf32>
    %c0_196 = arith.constant 0 : index
    %c0_197 = arith.constant 0 : index
    %555 = vector.load %arg7[%c0_196, %c0_197] : memref<16x128xf32, #tpu.memory_space<vmem>>, vector<16x128xf32>
    tpu.vector_store %arg7[%c0_196, %c0_197], %554 {strides = array<i32>} : memref<16x128xf32, #tpu.memory_space<vmem>>, vector<16x128xf32>,
    return
  }
}

</mosaic_0001>

<llo_original>
// kernel: trans_decoder_forward.1
$region0: #{trans_decoder_forward.1}
  #allocation0 [shape = 'u32[]', space=smem, size = 0x4, offset = 0x4, fixed_abs, tag = 'smem constant byte address 0x4 - core index']
  #allocation1 [shape = 'u32[72,128]{1,0:T(1,128)}', space=vmem, size = 0x9000, scoped, tag = 'internal scratch']
  %s0 = inlined_call_operand.hbm [shape: f32[16,8], index: 0, kind: input, shape index: {}]
  %s1 = inlined_call_operand.hbm [shape: f32[32,32], index: 1, kind: input, shape index: {}]
  %s2 = inlined_call_operand.hbm [shape: f32[16,32], index: 2, kind: input, shape index: {}]
  %s3 = inlined_call_operand.hbm [shape: f32[16,160], index: 3, kind: input, shape index: {}]
  %s4 = inlined_call_operand.hbm [shape: f32[32,896], index: 4, kind: input, shape index: {}]
  %s5 = inlined_call_operand.hbm [shape: f32[64,64], index: 5, kind: input, shape index: {}]
  %s6 = inlined_call_operand.hbm [shape: f32[13,128], index: 6, kind: input, shape index: {}]
  %s7 = inlined_call_operand.vmem [shape: f32[16,128], index: 7, kind: output, shape index: {}]
  %s8 = sld [smem:[#allocation0]]
  $region66: #{trans_decoder_forward.1} parent=0
    _
  %s10 = ssub.s32 1, %s8
  %s11 = scalar_select 0, %s10, %s8
  $region1: #{trans_decoder_forward.1} parent=0
    #allocation2 [shape = 'u8[8192]{0}', space=vmem, size = 0x2000, scoped, tag = 'input window, operand 0, single buffered']
    #allocation3 [shape = 's32[1]{0}', space=sflag, size = 0x4, scoped, tag = 'scoped memory for trans_decoder_forward.1']
    #allocation4 [shape = 'u8[16384]{0}', space=vmem, size = 0x4000, scoped, tag = 'input window, operand 1, single buffered']
    #allocation5 [shape = 's32[1]{0}', space=sflag, size = 0x4, scoped, tag = 'scoped memory for trans_decoder_forward.1']
    #allocation6 [shape = 'u8[8192]{0}', space=vmem, size = 0x2000, scoped, tag = 'input window, operand 2, single buffered']
    #allocation7 [shape = 'u8[16384]{0}', space=vmem, size = 0x4000, scoped, tag = 'input window, operand 3, single buffered']
    #allocation8 [shape = 's32[1]{0}', space=sflag, size = 0x4, scoped, tag = 'scoped memory for trans_decoder_forward.1']
    #allocation9 [shape = 'u8[114688]{0}', space=vmem, size = 0x1c000, scoped, tag = 'input window, operand 4, single buffered']
    #allocation10 [shape = 'u8[32768]{0}', space=vmem, size = 0x8000, scoped, tag = 'input window, operand 5, single buffered']
    #allocation11 [shape = 's32[1]{0}', space=sflag, size = 0x4, scoped, tag = 'scoped memory for trans_decoder_forward.1']
    #allocation12 [shape = 'u8[8192]{0}', space=vmem, size = 0x2000, scoped, tag = 'input window, operand 6, single buffered']
    %12 = vsyncpa [#allocation3], 0
    %13 = vsyncpa [#allocation5], 0
    %14 = vsyncpa [#allocation8], 0
    %15 = vsyncpa [#allocation11], 0
    // Predicated region
    $region2: #{trans_decoder_forward.1} parent=1 // pred_check
      _
    $region3: #{trans_decoder_forward.1} parent=1 // pred_check_branch
      %17 = sbr.rel (0) target = $region5
    $region4: #{trans_decoder_forward.1} parent=1 // pred_region
      %19 = vsyncadd [#allocation3], 0
      %s20 = sshll.u32 %s0, 4
      %s21 = int_to_ptr.hbm [resolvable:$true] %s20
      %s22 = sshll.u32 [#allocation2], 4
      %s23 = int_to_ptr.vmem [resolvable:$true] %s22
      %28 = dma.hbm_to_vmem [thread:$0]  %s21, 256, %s23, [#allocation3], 128, 128, 8
    $region5: #{trans_decoder_forward.1} parent=1 // pred_fallthru
      _
    // Predicated region
    $region6: #{trans_decoder_forward.1} parent=1 // pred_check
      _
    $region7: #{trans_decoder_forward.1} parent=1 // pred_check_branch
      %30 = sbr.rel (0) target = $region9
    $region8: #{trans_decoder_forward.1} parent=1 // pred_region
      %32 = vsyncadd [#allocation5], 0
      %s33 = sshll.u32 %s1, 4
      %s34 = int_to_ptr.hbm [resolvable:$true] %s33
      %s35 = sshll.u32 [#allocation4], 4
      %s36 = int_to_ptr.vmem [resolvable:$true] %s35
      %41 = dma.hbm_to_vmem [thread:$0]  %s34, 512, %s36, [#allocation5], 128, 128, 8
    $region9: #{trans_decoder_forward.1} parent=1 // pred_fallthru
      _
    // Predicated region
    $region10: #{trans_decoder_forward.1} parent=1 // pred_check
      _
    $region11: #{trans_decoder_forward.1} parent=1 // pred_check_branch
      %43 = sbr.rel (0) target = $region13
    $region12: #{trans_decoder_forward.1} parent=1 // pred_region
      %45 = vsyncadd [#allocation5], 0
      %s46 = sshll.u32 %s2, 4
      %s47 = int_to_ptr.hbm [resolvable:$true] %s46
      %s48 = sshll.u32 [#allocation6], 4
      %s49 = int_to_ptr.vmem [resolvable:$true] %s48
      %54 = dma.hbm_to_vmem [thread:$0]  %s47, 256, %s49, [#allocation5], 128, 128, 8
    $region13: #{trans_decoder_forward.1} parent=1 // pred_fallthru
      _
    // Predicated region
    $region14: #{trans_decoder_forward.1} parent=1 // pred_check
      _
    $region15: #{trans_decoder_forward.1} parent=1 // pred_check_branch
      %56 = sbr.rel (0) target = $region17
    $region16: #{trans_decoder_forward.1} parent=1 // pred_region
      %58 = vsyncadd [#allocation8], 0
      %s59 = sshll.u32 %s3, 4
      %s60 = int_to_ptr.hbm [resolvable:$true] %s59
      %s61 = sshll.u32 [#allocation7], 4
      %s62 = int_to_ptr.vmem [resolvable:$true] %s61
      %67 = dma.hbm_to_vmem [thread:$0]  %s60, 512, %s62, [#allocation8], 256, 256, 16
    $region17: #{trans_decoder_forward.1} parent=1 // pred_fallthru
      _
    // Predicated region
    $region18: #{trans_decoder_forward.1} parent=1 // pred_check
      _
    $region19: #{trans_decoder_forward.1} parent=1 // pred_check_branch
      %69 = sbr.rel (0) target = $region21
    $region20: #{trans_decoder_forward.1} parent=1 // pred_region
      %71 = vsyncadd [#allocation8], 0
      %s72 = sshll.u32 %s4, 4
      %s73 = int_to_ptr.hbm [resolvable:$true] %s72
      %s74 = sshll.u32 [#allocation9], 4
      %s75 = int_to_ptr.vmem [resolvable:$true] %s74
      %80 = dma.hbm_to_vmem [thread:$0]  %s73, 3584, %s75, [#allocation8], 896, 896, 56
    $region21: #{trans_decoder_forward.1} parent=1 // pred_fallthru
      _
    // Predicated region
    $region22: #{trans_decoder_forward.1} parent=1 // pred_check
      _
    $region23: #{trans_decoder_forward.1} parent=1 // pred_check_branch
      %82 = sbr.rel (0) target = $region25
    $region24: #{trans_decoder_forward.1} parent=1 // pred_region
      %84 = vsyncadd [#allocation11], 0
      %s85 = sshll.u32 %s5, 4
      %s86 = int_to_ptr.hbm [resolvable:$true] %s85
      %s87 = sshll.u32 [#allocation10], 4
      %s88 = int_to_ptr.vmem [resolvable:$true] %s87
      %93 = dma.hbm_to_vmem [thread:$0]  %s86, 1024, %s88, [#allocation11], 128, 128, 8
    $region25: #{trans_decoder_forward.1} parent=1 // pred_fallthru
      _
    // Predicated region
    $region26: #{trans_decoder_forward.1} parent=1 // pred_check
      _
    $region27: #{trans_decoder_forward.1} parent=1 // pred_check_branch
      %95 = sbr.rel (0) target = $region29
    $region28: #{trans_decoder_forward.1} parent=1 // pred_region
      %97 = vsyncadd [#allocation11], 0
      %s98 = sshll.u32 %s6, 4
      %s99 = int_to_ptr.hbm [resolvable:$true] %s98
      %s100 = sshll.u32 [#allocation12], 4
      %s101 = int_to_ptr.vmem [resolvable:$true] %s100
      %106 = dma.hbm_to_vmem [thread:$0]  %s99, 256, %s101, [#allocation11], 128, 128, 8
    $region29: #{trans_decoder_forward.1} parent=1 // pred_fallthru
      _
    // Predicated region
    $region30: #{trans_decoder_forward.1} parent=1 // pred_check
      _
    $region31: #{trans_decoder_forward.1} parent=1 // pred_check_branch
      %108 = sbr.rel (0) target = $region33
    $region32: #{trans_decoder_forward.1} parent=1 // pred_region
      %110 = dma.done [#allocation3], 256
    $region33: #{trans_decoder_forward.1} parent=1 // pred_fallthru
      _
    // Predicated region
    $region34: #{trans_decoder_forward.1} parent=1 // pred_check
      _
    $region35: #{trans_decoder_forward.1} parent=1 // pred_check_branch
      %112 = sbr.rel (0) target = $region37
    $region36: #{trans_decoder_forward.1} parent=1 // pred_region
      %114 = dma.done [#allocation5], 512
    $region37: #{trans_decoder_forward.1} parent=1 // pred_fallthru
      _
    // Predicated region
    $region38: #{trans_decoder_forward.1} parent=1 // pred_check
      _
    $region39: #{trans_decoder_forward.1} parent=1 // pred_check_branch
      %116 = sbr.rel (0) target = $region41
    $region40: #{trans_decoder_forward.1} parent=1 // pred_region
      %118 = dma.done [#allocation5], 256
    $region41: #{trans_decoder_forward.1} parent=1 // pred_fallthru
      _
    // Predicated region
    $region42: #{trans_decoder_forward.1} parent=1 // pred_check
      _
    $region43: #{trans_decoder_forward.1} parent=1 // pred_check_branch
      %120 = sbr.rel (0) target = $region45
    $region44: #{trans_decoder_forward.1} parent=1 // pred_region
      %122 = dma.done [#allocation8], 512
    $region45: #{trans_decoder_forward.1} parent=1 // pred_fallthru
      _
    // Predicated region
    $region46: #{trans_decoder_forward.1} parent=1 // pred_check
      _
    $region47: #{trans_decoder_forward.1} parent=1 // pred_check_branch
      %124 = sbr.rel (0) target = $region49
    $region48: #{trans_decoder_forward.1} parent=1 // pred_region
      %126 = dma.done [#allocation8], 3584
    $region49: #{trans_decoder_forward.1} parent=1 // pred_fallthru
      _
    // Predicated region
    $region50: #{trans_decoder_forward.1} parent=1 // pred_check
      _
    $region51: #{trans_decoder_forward.1} parent=1 // pred_check_branch
      %128 = sbr.rel (0) target = $region53
    $region52: #{trans_decoder_forward.1} parent=1 // pred_region
      %130 = dma.done [#allocation11], 1024
    $region53: #{trans_decoder_forward.1} parent=1 // pred_fallthru
      _
    // Predicated region
    $region54: #{trans_decoder_forward.1} parent=1 // pred_check
      _
    $region55: #{trans_decoder_forward.1} parent=1 // pred_check_branch
      %132 = sbr.rel (0) target = $region57
    $region56: #{trans_decoder_forward.1} parent=1 // pred_region
      %134 = dma.done [#allocation11], 256
    $region57: #{trans_decoder_forward.1} parent=1 // pred_fallthru
      _
    %v135 = vld [vmem:[#allocation2] sm:$0xff]
    %v136 = vld [vmem:[#allocation2 + $0x8] sm:$0xff]
    %v137 = vld [vmem:[#allocation9 + $0x28] sm:$0xff]
    %v138 = vld [vmem:[#allocation6] sm:$0xff]
    %v139 = vld [vmem:[#allocation6 + $0x8] sm:$0xff]
    %vm140 = vcmask 64512
    %v142 = vsel %vm140, %v135, 0
    %v145 = vsel %vm140, %v136, 0
    %147 = vmatpush.msra.mxu0 0.0
    %148 = vmatpush.msra.mxu0 0.0
    %149 = vmatpush.msra.mxu0 0.0
    %150 = vmatpush.msra.mxu0 0.0
    %151 = vmatpush.msra.mxu0 0.0
    %152 = vmatpush.msra.mxu0 0.0
    %153 = vmatpush.msra.mxu0 0.0
    %154 = vmatpush.msra.mxu0 0.0
    %155 = vmatpush.msra.mxu0 0.0
    %156 = vmatpush.msra.mxu0 0.0
    %157 = vmatpush.msra.mxu0 0.0
    %158 = vmatpush.msra.mxu0 0.0
    %159 = vmatpush.msra.mxu0 0.0
    %160 = vmatpush.msra.mxu0 0.0
    %161 = vmatpush.msra.mxu0 0.0
    %162 = vmatpush.msra.mxu0 %v137
    %163 = vmatmul.f32.gmra.mxu0 %v142
    %v164 = vpop.f32.mrf.mxu0
    %v165 = vadd.f32 %v138, %v164
    %166 = vmatmul.f32.gmra.mxu0 %v145
    %v167 = vpop.f32.mrf.mxu0
    %v168 = vadd.f32 %v139, %v167
    %169 = vdwg.mxu0
    %v170 = vld [vmem:[#allocation4] sm:$0xff]
    %v171 = vld [vmem:[#allocation4 + $0x8] sm:$0xff]
    %v172 = vld [vmem:[#allocation4 + $0x10] sm:$0xff]
    %v173 = vld [vmem:[#allocation4 + $0x18] sm:$0xff]
    %v174 = vld [vmem:[#allocation7] sm:$0xff]
    %v175 = vld [vmem:[#allocation7 + $0x10] sm:$0xff]
    %v176 = vld [vmem:[#allocation7 + $0x8] sm:$0xff]
    %v177 = vld [vmem:[#allocation7 + $0x18] sm:$0xff]
    %v178 = vld [vmem:[#allocation9 + $0x20] sm:$0xff]
    %v179 = vld [vmem:[#allocation9 + $0x58] sm:$0xff]
    %v180 = vld [vmem:[#allocation9 + $0x90] sm:$0xff]
    %v181 = vld [vmem:[#allocation9 + $0xc8] sm:$0xff]
    %v182 = vld [vmem:[#allocation12 + $0x4] sm:$0x1]
    %v183 = vperm.slane %v182, 0
    %vm184 = vcmask 261120
    %v186 = vsel %vm184, %v170, 0
    %v189 = vsel %vm184, %v171, 0
    %v192 = vsel %vm184, %v172, 0
    %v195 = vsel %vm184, %v173, 0
    %197 = vmatpush.msra.mxu0 0.0
    %198 = vmatpush.msra.mxu0 0.0
    %199 = vmatpush.msra.mxu0 0.0
    %200 = vmatpush.msra.mxu0 0.0
    %201 = vmatpush.msra.mxu0 0.0
    %202 = vmatpush.msra.mxu0 0.0
    %203 = vmatpush.msra.mxu0 0.0
    %204 = vmatpush.msra.mxu0 0.0
    %205 = vmatpush.msra.mxu0 0.0
    %206 = vmatpush.msra.mxu0 0.0
    %207 = vmatpush.msra.mxu0 0.0
    %208 = vmatpush.msra.mxu0 0.0
    %209 = vmatpush.msra.mxu0 %v181
    %210 = vmatpush.msra.mxu0 %v180
    %211 = vmatpush.msra.mxu0 %v179
    %212 = vmatpush.msra.mxu0 %v178
    %213 = vmatmul.f32.gmra.mxu0 %v186
    %v214 = vpop.f32.mrf.mxu0
    %v215 = vadd.f32 %v183, %v214
    %216 = vmatmul.f32.gmra.mxu0 %v189
    %v217 = vpop.f32.mrf.mxu0
    %v218 = vadd.f32 %v183, %v217
    %219 = vmatmul.f32.gmra.mxu0 %v192
    %v220 = vpop.f32.mrf.mxu0
    %v221 = vadd.f32 %v183, %v220
    %222 = vmatmul.f32.gmra.mxu0 %v195
    %v223 = vpop.f32.mrf.mxu0
    %v224 = vadd.f32 %v183, %v223
    %225 = vdwg.mxu0
    %v226 = vld [vmem:[#allocation9] sm:$0xff]
    %v227 = vld [vmem:[#allocation9 + $0x38] sm:$0xff]
    %v228 = vld [vmem:[#allocation9 + $0x70] sm:$0xff]
    %v229 = vld [vmem:[#allocation9 + $0xa8] sm:$0xff]
    %v230 = vld [vmem:[#allocation12] sm:$0x1]
    %v231 = vperm.slane %v230, 0
    %v233 = vsel %vm184, %v165, 0
    %v236 = vsel %vm184, %v168, 0
    %238 = vmatpush.msra.mxu0 0.0
    %239 = vmatpush.msra.mxu0 0.0
    %240 = vmatpush.msra.mxu0 0.0
    %241 = vmatpush.msra.mxu0 0.0
    %242 = vmatpush.msra.mxu0 0.0
    %243 = vmatpush.msra.mxu0 0.0
    %244 = vmatpush.msra.mxu0 0.0
    %245 = vmatpush.msra.mxu0 0.0
    %246 = vmatpush.msra.mxu0 0.0
    %247 = vmatpush.msra.mxu0 0.0
    %248 = vmatpush.msra.mxu0 0.0
    %249 = vmatpush.msra.mxu0 0.0
    %250 = vmatpush.msra.mxu0 %v229
    %251 = vmatpush.msra.mxu0 %v228
    %252 = vmatpush.msra.mxu0 %v227
    %253 = vmatpush.msra.mxu0 %v226
    %254 = vmatmul.f32.gmra.mxu0 %v233
    %v255 = vpop.f32.mrf.mxu0
    %v256 = vadd.f32 %v231, %v255
    %257 = vmatmul.f32.gmra.mxu0 %v236
    %v258 = vpop.f32.mrf.mxu0
    %v259 = vadd.f32 %v231, %v258
    %260 = vdwg.mxu0
    %263 = vrot.lane.b32.xlu0 %v256, 96
    %v264 = vpop.permute.xlu0 %263
    %265 = vrot.lane.b32.xlu0 %v259, 96
    %v266 = vpop.permute.xlu0 %265
    %v267 = vsel %vm140, %v256, 0
    %v269 = vsel %vm140, %v259, 0
    %v271 = vsel %vm140, %v264, 0
    %v273 = vsel %vm140, %v266, 0
    %275 = vmatpush.xpose.msra.mxu0 0.0
    %276 = vmatpush.xpose.msra.mxu0 0.0
    %277 = vmatpush.xpose.msra.mxu0 0.0
    %278 = vmatpush.xpose.msra.mxu0 0.0
    %279 = vmatpush.xpose.msra.mxu0 0.0
    %280 = vmatpush.xpose.msra.mxu0 0.0
    %281 = vmatpush.xpose.msra.mxu0 0.0
    %282 = vmatpush.xpose.msra.mxu0 0.0
    %283 = vmatpush.xpose.msra.mxu0 0.0
    %284 = vmatpush.xpose.msra.mxu0 0.0
    %285 = vmatpush.xpose.msra.mxu0 0.0
    %286 = vmatpush.xpose.msra.mxu0 0.0
    %287 = vmatpush.xpose.msra.mxu0 0.0
    %288 = vmatpush.xpose.msra.mxu0 0.0
    %289 = vmatpush.xpose.msra.mxu0 %v273
    %290 = vmatpush.xpose.msra.mxu0 %v271
    %291 = vmatmul.f32.gmra.mxu0 %v267
    %v292 = vpop.f32.mrf.mxu0
    %v293 = vadd.f32 %v174, %v292
    %294 = vmatmul.f32.gmra.mxu0 %v269
    %v295 = vpop.f32.mrf.mxu0
    %v296 = vadd.f32 %v175, %v295
    %297 = vdwg.mxu0
    %vm298 = vcmask 130048
    %v299 = vsel %vm298, %v293, -inf
    %300 = vmax.xlane.f32.xlu0 %v299
    %v301 = vpop.xlane.xlu0 %300
    %v302 = vsel %vm298, %v296, -inf
    %303 = vmax.xlane.f32.xlu0 %v302
    %v304 = vpop.xlane.xlu0 %303
    %v305 = vsub.f32 %v293, %v301
    %v306 = vsub.f32 %v296, %v304
    %v307 = vmul.f32 %v305, 1.442695
    %v308 = vpow.pop %v307
    %v309 = vmul.f32 %v306, 1.442695
    %v310 = vpow.pop %v309
    %v311 = vsel %vm298, %v308, 0.0
    %312 = vadd.xlane.f32.xlu0 %v311
    %v313 = vpop.xlane.xlu0 %312
    %v314 = vsel %vm298, %v310, 0.0
    %315 = vadd.xlane.f32.xlu0 %v314
    %v316 = vpop.xlane.xlu0 %315
    %v317 = vrcp.pop %v313
    %v318 = vrcp.pop %v316
    %v319 = vmul.f32 %v308, %v317
    %v320 = vmul.f32 %v310, %v318
    %321 = vrot.lane.b32.xlu0 %v256, 64
    %v322 = vpop.permute.xlu0 %321
    %323 = vrot.lane.b32.xlu0 %v259, 64
    %v324 = vpop.permute.xlu0 %323
    %v328 = vsel %vm298, %v319, 0
    %v331 = vsel %vm298, %v320, 0
    %333 = vmatpush.msra.mxu0 0.0
    %334 = vmatpush.msra.mxu0 0.0
    %335 = vmatpush.msra.mxu0 0.0
    %336 = vmatpush.msra.mxu0 0.0
    %337 = vmatpush.msra.mxu0 0.0
    %338 = vmatpush.msra.mxu0 0.0
    %339 = vmatpush.msra.mxu0 0.0
    %340 = vmatpush.msra.mxu0 0.0
    %341 = vmatpush.msra.mxu0 0.0
    %342 = vmatpush.msra.mxu0 0.0
    %343 = vmatpush.msra.mxu0 0.0
    %344 = vmatpush.msra.mxu0 0.0
    %345 = vmatpush.msra.mxu0 0.0
    %346 = vmatpush.msra.mxu0 0.0
    %347 = vmatpush.msra.mxu0 %v324
    %348 = vmatpush.msra.mxu0 %v322
    %349 = vmatmul.f32.gmra.mxu0 %v328
    %v350 = vpop.f32.mrf.mxu0
    %v351 = vadd.f32 0.0, %v350
    %352 = vmatmul.f32.gmra.mxu0 %v331
    %v353 = vpop.f32.mrf.mxu0
    %v354 = vadd.f32 0.0, %v353
    %355 = vdwg.mxu0
    %356 = vrot.lane.b32.xlu0 %v256, 120
    %v357 = vpop.permute.xlu0 %356
    %358 = vrot.lane.b32.xlu0 %v259, 120
    %v359 = vpop.permute.xlu0 %358
    %360 = vrot.lane.b32.xlu0 %v256, 88
    %v361 = vpop.permute.xlu0 %360
    %362 = vrot.lane.b32.xlu0 %v259, 88
    %v363 = vpop.permute.xlu0 %362
    %v364 = vsel %vm140, %v357, 0
    %v366 = vsel %vm140, %v359, 0
    %v368 = vsel %vm140, %v361, 0
    %v370 = vsel %vm140, %v363, 0
    %372 = vmatpush.xpose.msra.mxu0 0.0
    %373 = vmatpush.xpose.msra.mxu0 0.0
    %374 = vmatpush.xpose.msra.mxu0 0.0
    %375 = vmatpush.xpose.msra.mxu0 0.0
    %376 = vmatpush.xpose.msra.mxu0 0.0
    %377 = vmatpush.xpose.msra.mxu0 0.0
    %378 = vmatpush.xpose.msra.mxu0 0.0
    %379 = vmatpush.xpose.msra.mxu0 0.0
    %380 = vmatpush.xpose.msra.mxu0 0.0
    %381 = vmatpush.xpose.msra.mxu0 0.0
    %382 = vmatpush.xpose.msra.mxu0 0.0
    %383 = vmatpush.xpose.msra.mxu0 0.0
    %384 = vmatpush.xpose.msra.mxu0 0.0
    %385 = vmatpush.xpose.msra.mxu0 0.0
    %386 = vmatpush.xpose.msra.mxu0 %v370
    %387 = vmatpush.xpose.msra.mxu0 %v368
    %388 = vmatmul.f32.gmra.mxu0 %v364
    %v389 = vpop.f32.mrf.mxu0
    %v390 = vadd.f32 %v174, %v389
    %391 = vmatmul.f32.gmra.mxu0 %v366
    %v392 = vpop.f32.mrf.mxu0
    %v393 = vadd.f32 %v175, %v392
    %394 = vdwg.mxu0
    %v395 = vsel %vm298, %v390, -inf
    %396 = vmax.xlane.f32.xlu0 %v395
    %v397 = vpop.xlane.xlu0 %396
    %v398 = vsel %vm298, %v393, -inf
    %399 = vmax.xlane.f32.xlu0 %v398
    %v400 = vpop.xlane.xlu0 %399
    %v401 = vsub.f32 %v390, %v397
    %v402 = vsub.f32 %v393, %v400
    %v403 = vmul.f32 %v401, 1.442695
    %v404 = vpow.pop %v403
    %v405 = vmul.f32 %v402, 1.442695
    %v406 = vpow.pop %v405
    %v407 = vsel %vm298, %v404, 0.0
    %408 = vadd.xlane.f32.xlu0 %v407
    %v409 = vpop.xlane.xlu0 %408
    %v410 = vsel %vm298, %v406, 0.0
    %411 = vadd.xlane.f32.xlu0 %v410
    %v412 = vpop.xlane.xlu0 %411
    %v413 = vrcp.pop %v409
    %v414 = vrcp.pop %v412
    %v415 = vmul.f32 %v404, %v413
    %v416 = vmul.f32 %v406, %v414
    %417 = vrot.lane.b32.xlu0 %v256, 56
    %v418 = vpop.permute.xlu0 %417
    %419 = vrot.lane.b32.xlu0 %v259, 56
    %v420 = vpop.permute.xlu0 %419
    %v424 = vsel %vm298, %v415, 0
    %v427 = vsel %vm298, %v416, 0
    %429 = vmatpush.msra.mxu0 0.0
    %430 = vmatpush.msra.mxu0 0.0
    %431 = vmatpush.msra.mxu0 0.0
    %432 = vmatpush.msra.mxu0 0.0
    %433 = vmatpush.msra.mxu0 0.0
    %434 = vmatpush.msra.mxu0 0.0
    %435 = vmatpush.msra.mxu0 0.0
    %436 = vmatpush.msra.mxu0 0.0
    %437 = vmatpush.msra.mxu0 0.0
    %438 = vmatpush.msra.mxu0 0.0
    %439 = vmatpush.msra.mxu0 0.0
    %440 = vmatpush.msra.mxu0 0.0
    %441 = vmatpush.msra.mxu0 0.0
    %442 = vmatpush.msra.mxu0 0.0
    %443 = vmatpush.msra.mxu0 %v420
    %444 = vmatpush.msra.mxu0 %v418
    %445 = vmatmul.f32.gmra.mxu0 %v424
    %v446 = vpop.f32.mrf.mxu0
    %v447 = vadd.f32 0.0, %v446
    %448 = vmatmul.f32.gmra.mxu0 %v427
    %v449 = vpop.f32.mrf.mxu0
    %v450 = vadd.f32 0.0, %v449
    %451 = vdwg.mxu0
    %453 = vrot.lane.b32.xlu0 %v227, 32
    %v454 = vpop.permute.xlu0 %453
    %v457 = vsel %vm140, %v447, 0
    %v460 = vsel %vm140, %v450, 0
    %462 = vmatpush.msra.mxu0 0.0
    %463 = vmatpush.msra.mxu0 0.0
    %464 = vmatpush.msra.mxu0 0.0
    %465 = vmatpush.msra.mxu0 0.0
    %466 = vmatpush.msra.mxu0 0.0
    %467 = vmatpush.msra.mxu0 0.0
    %468 = vmatpush.msra.mxu0 0.0
    %469 = vmatpush.msra.mxu0 0.0
    %470 = vmatpush.msra.mxu0 0.0
    %471 = vmatpush.msra.mxu0 0.0
    %472 = vmatpush.msra.mxu0 0.0
    %473 = vmatpush.msra.mxu0 0.0
    %474 = vmatpush.msra.mxu0 0.0
    %475 = vmatpush.msra.mxu0 0.0
    %476 = vmatpush.msra.mxu0 0.0
    %477 = vmatpush.msra.mxu0 %v454
    %478 = vmatmul.f32.gmra.mxu0 %v457
    %v479 = vpop.f32.mrf.mxu0
    %v480 = vadd.f32 0.0, %v479
    %481 = vmatmul.f32.gmra.mxu0 %v460
    %v482 = vpop.f32.mrf.mxu0
    %v483 = vadd.f32 0.0, %v482
    %484 = vdwg.mxu0
    %486 = vrot.lane.b32.xlu0 %v226, 32
    %v487 = vpop.permute.xlu0 %486
    %v490 = vsel %vm140, %v351, 0
    %v493 = vsel %vm140, %v354, 0
    %495 = vmatpush.msra.mxu0 0.0
    %496 = vmatpush.msra.mxu0 0.0
    %497 = vmatpush.msra.mxu0 0.0
    %498 = vmatpush.msra.mxu0 0.0
    %499 = vmatpush.msra.mxu0 0.0
    %500 = vmatpush.msra.mxu0 0.0
    %501 = vmatpush.msra.mxu0 0.0
    %502 = vmatpush.msra.mxu0 0.0
    %503 = vmatpush.msra.mxu0 0.0
    %504 = vmatpush.msra.mxu0 0.0
    %505 = vmatpush.msra.mxu0 0.0
    %506 = vmatpush.msra.mxu0 0.0
    %507 = vmatpush.msra.mxu0 0.0
    %508 = vmatpush.msra.mxu0 0.0
    %509 = vmatpush.msra.mxu0 0.0
    %510 = vmatpush.msra.mxu0 %v487
    %511 = vmatmul.f32.gmra.mxu0 %v490
    %v512 = vpop.f32.mrf.mxu0
    %v513 = vadd.f32 %v480, %v512
    %514 = vmatmul.f32.gmra.mxu0 %v493
    %v515 = vpop.f32.mrf.mxu0
    %v516 = vadd.f32 %v483, %v515
    %517 = vdwg.mxu0
    %518 = vrot.lane.b32.xlu0 %v256, 112
    %v519 = vpop.permute.xlu0 %518
    %520 = vrot.lane.b32.xlu0 %v259, 112
    %v521 = vpop.permute.xlu0 %520
    %522 = vrot.lane.b32.xlu0 %v256, 80
    %v523 = vpop.permute.xlu0 %522
    %524 = vrot.lane.b32.xlu0 %v259, 80
    %v525 = vpop.permute.xlu0 %524
    %v526 = vsel %vm140, %v519, 0
    %v528 = vsel %vm140, %v521, 0
    %v530 = vsel %vm140, %v523, 0
    %v532 = vsel %vm140, %v525, 0
    %534 = vmatpush.xpose.msra.mxu0 0.0
    %535 = vmatpush.xpose.msra.mxu0 0.0
    %536 = vmatpush.xpose.msra.mxu0 0.0
    %537 = vmatpush.xpose.msra.mxu0 0.0
    %538 = vmatpush.xpose.msra.mxu0 0.0
    %539 = vmatpush.xpose.msra.mxu0 0.0
    %540 = vmatpush.xpose.msra.mxu0 0.0
    %541 = vmatpush.xpose.msra.mxu0 0.0
    %542 = vmatpush.xpose.msra.mxu0 0.0
    %543 = vmatpush.xpose.msra.mxu0 0.0
    %544 = vmatpush.xpose.msra.mxu0 0.0
    %545 = vmatpush.xpose.msra.mxu0 0.0
    %546 = vmatpush.xpose.msra.mxu0 0.0
    %547 = vmatpush.xpose.msra.mxu0 0.0
    %548 = vmatpush.xpose.msra.mxu0 %v532
    %549 = vmatpush.xpose.msra.mxu0 %v530
    %550 = vmatmul.f32.gmra.mxu0 %v526
    %v551 = vpop.f32.mrf.mxu0
    %v552 = vadd.f32 %v174, %v551
    %553 = vmatmul.f32.gmra.mxu0 %v528
    %v554 = vpop.f32.mrf.mxu0
    %v555 = vadd.f32 %v175, %v554
    %556 = vdwg.mxu0
    %v557 = vsel %vm298, %v552, -inf
    %558 = vmax.xlane.f32.xlu0 %v557
    %v559 = vpop.xlane.xlu0 %558
    %v560 = vsel %vm298, %v555, -inf
    %561 = vmax.xlane.f32.xlu0 %v560
    %v562 = vpop.xlane.xlu0 %561
    %v563 = vsub.f32 %v552, %v559
    %v564 = vsub.f32 %v555, %v562
    %v565 = vmul.f32 %v563, 1.442695
    %v566 = vpow.pop %v565
    %v567 = vmul.f32 %v564, 1.442695
    %v568 = vpow.pop %v567
    %v569 = vsel %vm298, %v566, 0.0
    %570 = vadd.xlane.f32.xlu0 %v569
    %v571 = vpop.xlane.xlu0 %570
    %v572 = vsel %vm298, %v568, 0.0
    %573 = vadd.xlane.f32.xlu0 %v572
    %v574 = vpop.xlane.xlu0 %573
    %v575 = vrcp.pop %v571
    %v576 = vrcp.pop %v574
    %v577 = vmul.f32 %v566, %v575
    %v578 = vmul.f32 %v568, %v576
    %579 = vrot.lane.b32.xlu0 %v256, 48
    %v580 = vpop.permute.xlu0 %579
    %581 = vrot.lane.b32.xlu0 %v259, 48
    %v582 = vpop.permute.xlu0 %581
    %v586 = vsel %vm298, %v577, 0
    %v589 = vsel %vm298, %v578, 0
    %591 = vmatpush.msra.mxu0 0.0
    %592 = vmatpush.msra.mxu0 0.0
    %593 = vmatpush.msra.mxu0 0.0
    %594 = vmatpush.msra.mxu0 0.0
    %595 = vmatpush.msra.mxu0 0.0
    %596 = vmatpush.msra.mxu0 0.0
    %597 = vmatpush.msra.mxu0 0.0
    %598 = vmatpush.msra.mxu0 0.0
    %599 = vmatpush.msra.mxu0 0.0
    %600 = vmatpush.msra.mxu0 0.0
    %601 = vmatpush.msra.mxu0 0.0
    %602 = vmatpush.msra.mxu0 0.0
    %603 = vmatpush.msra.mxu0 0.0
    %604 = vmatpush.msra.mxu0 0.0
    %605 = vmatpush.msra.mxu0 %v582
    %606 = vmatpush.msra.mxu0 %v580
    %607 = vmatmul.f32.gmra.mxu0 %v586
    %v608 = vpop.f32.mrf.mxu0
    %v609 = vadd.f32 0.0, %v608
    %610 = vmatmul.f32.gmra.mxu0 %v589
    %v611 = vpop.f32.mrf.mxu0
    %v612 = vadd.f32 0.0, %v611
    %613 = vdwg.mxu0
    %615 = vrot.lane.b32.xlu0 %v228, 32
    %v616 = vpop.permute.xlu0 %615
    %v619 = vsel %vm140, %v609, 0
    %v622 = vsel %vm140, %v612, 0
    %624 = vmatpush.msra.mxu0 0.0
    %625 = vmatpush.msra.mxu0 0.0
    %626 = vmatpush.msra.mxu0 0.0
    %627 = vmatpush.msra.mxu0 0.0
    %628 = vmatpush.msra.mxu0 0.0
    %629 = vmatpush.msra.mxu0 0.0
    %630 = vmatpush.msra.mxu0 0.0
    %631 = vmatpush.msra.mxu0 0.0
    %632 = vmatpush.msra.mxu0 0.0
    %633 = vmatpush.msra.mxu0 0.0
    %634 = vmatpush.msra.mxu0 0.0
    %635 = vmatpush.msra.mxu0 0.0
    %636 = vmatpush.msra.mxu0 0.0
    %637 = vmatpush.msra.mxu0 0.0
    %638 = vmatpush.msra.mxu0 0.0
    %639 = vmatpush.msra.mxu0 %v616
    %640 = vmatmul.f32.gmra.mxu0 %v619
    %v641 = vpop.f32.mrf.mxu0
    %v642 = vadd.f32 0.0, %v641
    %643 = vmatmul.f32.gmra.mxu0 %v622
    %v644 = vpop.f32.mrf.mxu0
    %v645 = vadd.f32 0.0, %v644
    %646 = vdwg.mxu0
    %v647 = vadd.f32 %v513, %v642
    %v648 = vadd.f32 %v516, %v645
    %649 = vrot.lane.b32.xlu0 %v256, 104
    %v650 = vpop.permute.xlu0 %649
    %651 = vrot.lane.b32.xlu0 %v259, 104
    %v652 = vpop.permute.xlu0 %651
    %653 = vrot.lane.b32.xlu0 %v256, 72
    %v654 = vpop.permute.xlu0 %653
    %655 = vrot.lane.b32.xlu0 %v259, 72
    %v656 = vpop.permute.xlu0 %655
    %v657 = vsel %vm140, %v650, 0
    %v659 = vsel %vm140, %v652, 0
    %v661 = vsel %vm140, %v654, 0
    %v663 = vsel %vm140, %v656, 0
    %665 = vmatpush.xpose.msra.mxu0 0.0
    %666 = vmatpush.xpose.msra.mxu0 0.0
    %667 = vmatpush.xpose.msra.mxu0 0.0
    %668 = vmatpush.xpose.msra.mxu0 0.0
    %669 = vmatpush.xpose.msra.mxu0 0.0
    %670 = vmatpush.xpose.msra.mxu0 0.0
    %671 = vmatpush.xpose.msra.mxu0 0.0
    %672 = vmatpush.xpose.msra.mxu0 0.0
    %673 = vmatpush.xpose.msra.mxu0 0.0
    %674 = vmatpush.xpose.msra.mxu0 0.0
    %675 = vmatpush.xpose.msra.mxu0 0.0
    %676 = vmatpush.xpose.msra.mxu0 0.0
    %677 = vmatpush.xpose.msra.mxu0 0.0
    %678 = vmatpush.xpose.msra.mxu0 0.0
    %679 = vmatpush.xpose.msra.mxu0 %v663
    %680 = vmatpush.xpose.msra.mxu0 %v661
    %681 = vmatmul.f32.gmra.mxu0 %v657
    %v682 = vpop.f32.mrf.mxu0
    %v683 = vadd.f32 %v174, %v682
    %684 = vmatmul.f32.gmra.mxu0 %v659
    %v685 = vpop.f32.mrf.mxu0
    %v686 = vadd.f32 %v175, %v685
    %687 = vdwg.mxu0
    %v688 = vsel %vm298, %v683, -inf
    %689 = vmax.xlane.f32.xlu0 %v688
    %v690 = vpop.xlane.xlu0 %689
    %v691 = vsel %vm298, %v686, -inf
    %692 = vmax.xlane.f32.xlu0 %v691
    %v693 = vpop.xlane.xlu0 %692
    %v694 = vsub.f32 %v683, %v690
    %v695 = vsub.f32 %v686, %v693
    %v696 = vmul.f32 %v694, 1.442695
    %v697 = vpow.pop %v696
    %v698 = vmul.f32 %v695, 1.442695
    %v699 = vpow.pop %v698
    %v700 = vsel %vm298, %v697, 0.0
    %701 = vadd.xlane.f32.xlu0 %v700
    %v702 = vpop.xlane.xlu0 %701
    %v703 = vsel %vm298, %v699, 0.0
    %704 = vadd.xlane.f32.xlu0 %v703
    %v705 = vpop.xlane.xlu0 %704
    %v706 = vrcp.pop %v702
    %v707 = vrcp.pop %v705
    %v708 = vmul.f32 %v697, %v706
    %v709 = vmul.f32 %v699, %v707
    %710 = vrot.lane.b32.xlu0 %v256, 40
    %v711 = vpop.permute.xlu0 %710
    %712 = vrot.lane.b32.xlu0 %v259, 40
    %v713 = vpop.permute.xlu0 %712
    %v717 = vsel %vm298, %v708, 0
    %v720 = vsel %vm298, %v709, 0
    %722 = vmatpush.msra.mxu0 0.0
    %723 = vmatpush.msra.mxu0 0.0
    %724 = vmatpush.msra.mxu0 0.0
    %725 = vmatpush.msra.mxu0 0.0
    %726 = vmatpush.msra.mxu0 0.0
    %727 = vmatpush.msra.mxu0 0.0
    %728 = vmatpush.msra.mxu0 0.0
    %729 = vmatpush.msra.mxu0 0.0
    %730 = vmatpush.msra.mxu0 0.0
    %731 = vmatpush.msra.mxu0 0.0
    %732 = vmatpush.msra.mxu0 0.0
    %733 = vmatpush.msra.mxu0 0.0
    %734 = vmatpush.msra.mxu0 0.0
    %735 = vmatpush.msra.mxu0 0.0
    %736 = vmatpush.msra.mxu0 %v713
    %737 = vmatpush.msra.mxu0 %v711
    %738 = vmatmul.f32.gmra.mxu0 %v717
    %v739 = vpop.f32.mrf.mxu0
    %v740 = vadd.f32 0.0, %v739
    %741 = vmatmul.f32.gmra.mxu0 %v720
    %v742 = vpop.f32.mrf.mxu0
    %v743 = vadd.f32 0.0, %v742
    %744 = vdwg.mxu0
    %746 = vrot.lane.b32.xlu0 %v229, 32
    %v747 = vpop.permute.xlu0 %746
    %v750 = vsel %vm140, %v740, 0
    %v753 = vsel %vm140, %v743, 0
    %755 = vmatpush.msra.mxu0 0.0
    %756 = vmatpush.msra.mxu0 0.0
    %757 = vmatpush.msra.mxu0 0.0
    %758 = vmatpush.msra.mxu0 0.0
    %759 = vmatpush.msra.mxu0 0.0
    %760 = vmatpush.msra.mxu0 0.0
    %761 = vmatpush.msra.mxu0 0.0
    %762 = vmatpush.msra.mxu0 0.0
    %763 = vmatpush.msra.mxu0 0.0
    %764 = vmatpush.msra.mxu0 0.0
    %765 = vmatpush.msra.mxu0 0.0
    %766 = vmatpush.msra.mxu0 0.0
    %767 = vmatpush.msra.mxu0 0.0
    %768 = vmatpush.msra.mxu0 0.0
    %769 = vmatpush.msra.mxu0 0.0
    %770 = vmatpush.msra.mxu0 %v747
    %771 = vmatmul.f32.gmra.mxu0 %v750
    %v772 = vpop.f32.mrf.mxu0
    %v773 = vadd.f32 0.0, %v772
    %774 = vmatmul.f32.gmra.mxu0 %v753
    %v775 = vpop.f32.mrf.mxu0
    %v776 = vadd.f32 0.0, %v775
    %777 = vdwg.mxu0
    %v778 = vadd.f32 %v647, %v773
    %v779 = vadd.f32 %v648, %v776
    %781 = vrot.lane.b32.xlu0 %v231, 32
    %v782 = vpop.permute.xlu0 %781
    %v784 = vadd.f32 %v778, %v782
    %v785 = vadd.f32 %v779, %v782
    %v786 = vadd.f32 %v165, %v784
    %v787 = vadd.f32 %v168, %v785
    %v788 = vld [vmem:[#allocation12 + $0x6] sm:$0x1]
    %v789 = vsel %vm184, %v786, 0.0
    %790 = vadd.xlane.f32.xlu0 %v789
    %v791 = vpop.xlane.xlu0 %790
    %v792 = vsel %vm184, %v787, 0.0
    %793 = vadd.xlane.f32.xlu0 %v792
    %v794 = vpop.xlane.xlu0 %793
    %v795 = vrcp.pop 32.0
    %v796 = vmul.f32 32.0, %v795
    %v797 = vsub.f32 1.0, %v796
    %v798 = vmul.f32 %v795, %v797
    %v799 = vadd.f32 %v795, %v798
    %vm800 = vweird.f32 %v795
    %v801 = vsel %vm800, %v795, %v799
    %v802 = vmul.f32 %v791, %v801
    %v803 = vmul.f32 %v794, %v801
    %v804 = vsub.f32 %v786, %v802
    %v805 = vsub.f32 %v787, %v803
    %v806 = vmul.f32 %v804, %v804
    %v807 = vmul.f32 %v805, %v805
    %v808 = vsel %vm184, %v806, 0.0
    %809 = vadd.xlane.f32.xlu0 %v808
    %v810 = vpop.xlane.xlu0 %809
    %v811 = vsel %vm184, %v807, 0.0
    %812 = vadd.xlane.f32.xlu0 %v811
    %v813 = vpop.xlane.xlu0 %812
    %v814 = vmul.f32 %v810, 0.032258064
    %v815 = vmul.f32 %v813, 0.032258064
    %v816 = vrsqrt.pop %v814
    %v817 = vmul.f32 %v816, %v814
    %v818 = vmul.f32 %v817, %v816
    %v819 = vmul.f32 0.5, %v818
    %v820 = vsub.f32 1.5, %v819
    %v821 = vmul.f32 %v816, %v820
    %v822 = vmul.f32 %v814, %v821
    %vm823 = vcmp.eq.f32.partialorder %v814, inf
    %v824 = vsel %vm823, %v814, %v822
    %vm825 = vcmp.eq.f32.partialorder %v814, 0.0
    %v826 = vand.u32 %v814, 2147483648
    %v827 = vsel %vm825, %v826, %v824
    %v828 = vrsqrt.pop %v815
    %v829 = vmul.f32 %v828, %v815
    %v830 = vmul.f32 %v829, %v828
    %v831 = vmul.f32 0.5, %v830
    %v832 = vsub.f32 1.5, %v831
    %v833 = vmul.f32 %v828, %v832
    %v834 = vmul.f32 %v815, %v833
    %vm835 = vcmp.eq.f32.partialorder %v815, inf
    %v836 = vsel %vm835, %v815, %v834
    %vm837 = vcmp.eq.f32.partialorder %v815, 0.0
    %v838 = vand.u32 %v815, 2147483648
    %v839 = vsel %vm837, %v838, %v836
    %v840 = vadd.f32 %v827, 1e-06
    %v841 = vadd.f32 %v839, 1e-06
    %v842 = vrcp.pop %v840
    %v843 = vrcp.pop %v841
    %v844 = vperm.slane %v788, 0
    %v845 = vmul.f32 %v844, %v804
    %v846 = vmul.f32 %v844, %v805
    %v847 = vmul.f32 %v845, %v842
    %v848 = vmul.f32 %v846, %v843
    %850 = vrot.lane.b32.xlu0 %v844, 96
    %v851 = vpop.permute.xlu0 %850
    %v853 = vadd.f32 %v847, %v851
    %v854 = vadd.f32 %v848, %v851
    %v855 = vld [vmem:[#allocation9 + $0x8] sm:$0xff]
    %v856 = vld [vmem:[#allocation9 + $0x40] sm:$0xff]
    %v857 = vld [vmem:[#allocation9 + $0x78] sm:$0xff]
    %v858 = vld [vmem:[#allocation9 + $0xb0] sm:$0xff]
    %v859 = vld [vmem:[#allocation12 + $0x1] sm:$0x1]
    %v860 = vperm.slane %v859, 0
    %v862 = vsel %vm184, %v853, 0
    %v865 = vsel %vm184, %v854, 0
    %867 = vmatpush.msra.mxu0 0.0
    %868 = vmatpush.msra.mxu0 0.0
    %869 = vmatpush.msra.mxu0 0.0
    %870 = vmatpush.msra.mxu0 0.0
    %871 = vmatpush.msra.mxu0 0.0
    %872 = vmatpush.msra.mxu0 0.0
    %873 = vmatpush.msra.mxu0 0.0
    %874 = vmatpush.msra.mxu0 0.0
    %875 = vmatpush.msra.mxu0 0.0
    %876 = vmatpush.msra.mxu0 0.0
    %877 = vmatpush.msra.mxu0 0.0
    %878 = vmatpush.msra.mxu0 0.0
    %879 = vmatpush.msra.mxu0 %v858
    %880 = vmatpush.msra.mxu0 %v857
    %881 = vmatpush.msra.mxu0 %v856
    %882 = vmatpush.msra.mxu0 %v855
    %883 = vmatmul.f32.gmra.mxu0 %v862
    %v884 = vpop.f32.mrf.mxu0
    %v885 = vadd.f32 %v860, %v884
    %886 = vmatmul.f32.gmra.mxu0 %v865
    %v887 = vpop.f32.mrf.mxu0
    %v888 = vadd.f32 %v860, %v887
    %889 = vdwg.mxu0
    %v891 = vsel %vm140, %v885, 0
    %v894 = vsel %vm140, %v888, 0
    %v897 = vsel %vm140, %v215, 0
    %v900 = vsel %vm140, %v218, 0
    %v903 = vsel %vm140, %v221, 0
    %v906 = vsel %vm140, %v224, 0
    %908 = vmatpush.xpose.msra.mxu0 0.0
    %909 = vmatpush.xpose.msra.mxu0 0.0
    %910 = vmatpush.xpose.msra.mxu0 0.0
    %911 = vmatpush.xpose.msra.mxu0 0.0
    %912 = vmatpush.xpose.msra.mxu0 0.0
    %913 = vmatpush.xpose.msra.mxu0 0.0
    %914 = vmatpush.xpose.msra.mxu0 0.0
    %915 = vmatpush.xpose.msra.mxu0 0.0
    %916 = vmatpush.xpose.msra.mxu0 0.0
    %917 = vmatpush.xpose.msra.mxu0 0.0
    %918 = vmatpush.xpose.msra.mxu0 0.0
    %919 = vmatpush.xpose.msra.mxu0 0.0
    %920 = vmatpush.xpose.msra.mxu0 %v906
    %921 = vmatpush.xpose.msra.mxu0 %v903
    %922 = vmatpush.xpose.msra.mxu0 %v900
    %923 = vmatpush.xpose.msra.mxu0 %v897
    %924 = vmatmul.f32.gmra.mxu0 %v891
    %v925 = vpop.f32.mrf.mxu0
    %v926 = vadd.f32 %v176, %v925
    %927 = vmatmul.f32.gmra.mxu0 %v894
    %v928 = vpop.f32.mrf.mxu0
    %v929 = vadd.f32 %v177, %v928
    %930 = vdwg.mxu0
    %v931 = vsel %vm184, %v926, -inf
    %932 = vmax.xlane.f32.xlu0 %v931
    %v933 = vpop.xlane.xlu0 %932
    %v934 = vsel %vm184, %v929, -inf
    %935 = vmax.xlane.f32.xlu0 %v934
    %v936 = vpop.xlane.xlu0 %935
    %v937 = vsub.f32 %v926, %v933
    %v938 = vsub.f32 %v929, %v936
    %v939 = vmul.f32 %v937, 1.442695
    %v940 = vpow.pop %v939
    %v941 = vmul.f32 %v938, 1.442695
    %v942 = vpow.pop %v941
    %v943 = vsel %vm184, %v940, 0.0
    %944 = vadd.xlane.f32.xlu0 %v943
    %v945 = vpop.xlane.xlu0 %944
    %v946 = vsel %vm184, %v942, 0.0
    %947 = vadd.xlane.f32.xlu0 %v946
    %v948 = vpop.xlane.xlu0 %947
    %v949 = vrcp.pop %v945
    %v950 = vrcp.pop %v948
    %v951 = vmul.f32 %v940, %v949
    %v952 = vmul.f32 %v942, %v950
    %953 = vrot.lane.b32.xlu0 %v215, 96
    %v954 = vpop.permute.xlu0 %953
    %955 = vrot.lane.b32.xlu0 %v218, 96
    %v956 = vpop.permute.xlu0 %955
    %957 = vrot.lane.b32.xlu0 %v221, 96
    %v958 = vpop.permute.xlu0 %957
    %959 = vrot.lane.b32.xlu0 %v224, 96
    %v960 = vpop.permute.xlu0 %959
    %v966 = vsel %vm184, %v951, 0
    %v969 = vsel %vm184, %v952, 0
    %971 = vmatpush.msra.mxu0 0.0
    %972 = vmatpush.msra.mxu0 0.0
    %973 = vmatpush.msra.mxu0 0.0
    %974 = vmatpush.msra.mxu0 0.0
    %975 = vmatpush.msra.mxu0 0.0
    %976 = vmatpush.msra.mxu0 0.0
    %977 = vmatpush.msra.mxu0 0.0
    %978 = vmatpush.msra.mxu0 0.0
    %979 = vmatpush.msra.mxu0 0.0
    %980 = vmatpush.msra.mxu0 0.0
    %981 = vmatpush.msra.mxu0 0.0
    %982 = vmatpush.msra.mxu0 0.0
    %983 = vmatpush.msra.mxu0 %v960
    %984 = vmatpush.msra.mxu0 %v958
    %985 = vmatpush.msra.mxu0 %v956
    %986 = vmatpush.msra.mxu0 %v954
    %987 = vmatmul.f32.gmra.mxu0 %v966
    %v988 = vpop.f32.mrf.mxu0
    %v989 = vadd.f32 0.0, %v988
    %990 = vmatmul.f32.gmra.mxu0 %v969
    %v991 = vpop.f32.mrf.mxu0
    %v992 = vadd.f32 0.0, %v991
    %993 = vdwg.mxu0
    %994 = vrot.lane.b32.xlu0 %v885, 120
    %v995 = vpop.permute.xlu0 %994
    %996 = vrot.lane.b32.xlu0 %v888, 120
    %v997 = vpop.permute.xlu0 %996
    %998 = vrot.lane.b32.xlu0 %v215, 120
    %v999 = vpop.permute.xlu0 %998
    %1000 = vrot.lane.b32.xlu0 %v218, 120
    %v1001 = vpop.permute.xlu0 %1000
    %1002 = vrot.lane.b32.xlu0 %v221, 120
    %v1003 = vpop.permute.xlu0 %1002
    %1004 = vrot.lane.b32.xlu0 %v224, 120
    %v1005 = vpop.permute.xlu0 %1004
    %v1006 = vsel %vm140, %v995, 0
    %v1008 = vsel %vm140, %v997, 0
    %v1010 = vsel %vm140, %v999, 0
    %v1012 = vsel %vm140, %v1001, 0
    %v1014 = vsel %vm140, %v1003, 0
    %v1016 = vsel %vm140, %v1005, 0
    %1018 = vmatpush.xpose.msra.mxu0 0.0
    %1019 = vmatpush.xpose.msra.mxu0 0.0
    %1020 = vmatpush.xpose.msra.mxu0 0.0
    %1021 = vmatpush.xpose.msra.mxu0 0.0
    %1022 = vmatpush.xpose.msra.mxu0 0.0
    %1023 = vmatpush.xpose.msra.mxu0 0.0
    %1024 = vmatpush.xpose.msra.mxu0 0.0
    %1025 = vmatpush.xpose.msra.mxu0 0.0
    %1026 = vmatpush.xpose.msra.mxu0 0.0
    %1027 = vmatpush.xpose.msra.mxu0 0.0
    %1028 = vmatpush.xpose.msra.mxu0 0.0
    %1029 = vmatpush.xpose.msra.mxu0 0.0
    %1030 = vmatpush.xpose.msra.mxu0 %v1016
    %1031 = vmatpush.xpose.msra.mxu0 %v1014
    %1032 = vmatpush.xpose.msra.mxu0 %v1012
    %1033 = vmatpush.xpose.msra.mxu0 %v1010
    %1034 = vmatmul.f32.gmra.mxu0 %v1006
    %v1035 = vpop.f32.mrf.mxu0
    %v1036 = vadd.f32 %v176, %v1035
    %1037 = vmatmul.f32.gmra.mxu0 %v1008
    %v1038 = vpop.f32.mrf.mxu0
    %v1039 = vadd.f32 %v177, %v1038
    %1040 = vdwg.mxu0
    %v1041 = vsel %vm184, %v1036, -inf
    %1042 = vmax.xlane.f32.xlu0 %v1041
    %v1043 = vpop.xlane.xlu0 %1042
    %v1044 = vsel %vm184, %v1039, -inf
    %1045 = vmax.xlane.f32.xlu0 %v1044
    %v1046 = vpop.xlane.xlu0 %1045
    %v1047 = vsub.f32 %v1036, %v1043
    %v1048 = vsub.f32 %v1039, %v1046
    %v1049 = vmul.f32 %v1047, 1.442695
    %v1050 = vpow.pop %v1049
    %v1051 = vmul.f32 %v1048, 1.442695
    %v1052 = vpow.pop %v1051
    %v1053 = vsel %vm184, %v1050, 0.0
    %1054 = vadd.xlane.f32.xlu0 %v1053
    %v1055 = vpop.xlane.xlu0 %1054
    %v1056 = vsel %vm184, %v1052, 0.0
    %1057 = vadd.xlane.f32.xlu0 %v1056
    %v1058 = vpop.xlane.xlu0 %1057
    %v1059 = vrcp.pop %v1055
    %v1060 = vrcp.pop %v1058
    %v1061 = vmul.f32 %v1050, %v1059
    %v1062 = vmul.f32 %v1052, %v1060
    %1063 = vrot.lane.b32.xlu0 %v215, 88
    %v1064 = vpop.permute.xlu0 %1063
    %1065 = vrot.lane.b32.xlu0 %v218, 88
    %v1066 = vpop.permute.xlu0 %1065
    %1067 = vrot.lane.b32.xlu0 %v221, 88
    %v1068 = vpop.permute.xlu0 %1067
    %1069 = vrot.lane.b32.xlu0 %v224, 88
    %v1070 = vpop.permute.xlu0 %1069
    %v1076 = vsel %vm184, %v1061, 0
    %v1079 = vsel %vm184, %v1062, 0
    %1081 = vmatpush.msra.mxu0 0.0
    %1082 = vmatpush.msra.mxu0 0.0
    %1083 = vmatpush.msra.mxu0 0.0
    %1084 = vmatpush.msra.mxu0 0.0
    %1085 = vmatpush.msra.mxu0 0.0
    %1086 = vmatpush.msra.mxu0 0.0
    %1087 = vmatpush.msra.mxu0 0.0
    %1088 = vmatpush.msra.mxu0 0.0
    %1089 = vmatpush.msra.mxu0 0.0
    %1090 = vmatpush.msra.mxu0 0.0
    %1091 = vmatpush.msra.mxu0 0.0
    %1092 = vmatpush.msra.mxu0 0.0
    %1093 = vmatpush.msra.mxu0 %v1070
    %1094 = vmatpush.msra.mxu0 %v1068
    %1095 = vmatpush.msra.mxu0 %v1066
    %1096 = vmatpush.msra.mxu0 %v1064
    %1097 = vmatmul.f32.gmra.mxu0 %v1076
    %v1098 = vpop.f32.mrf.mxu0
    %v1099 = vadd.f32 0.0, %v1098
    %1100 = vmatmul.f32.gmra.mxu0 %v1079
    %v1101 = vpop.f32.mrf.mxu0
    %v1102 = vadd.f32 0.0, %v1101
    %1103 = vdwg.mxu0
    %1105 = vrot.lane.b32.xlu0 %v856, 96
    %v1106 = vpop.permute.xlu0 %1105
    %v1109 = vsel %vm140, %v1099, 0
    %v1112 = vsel %vm140, %v1102, 0
    %1114 = vmatpush.msra.mxu0 0.0
    %1115 = vmatpush.msra.mxu0 0.0
    %1116 = vmatpush.msra.mxu0 0.0
    %1117 = vmatpush.msra.mxu0 0.0
    %1118 = vmatpush.msra.mxu0 0.0
    %1119 = vmatpush.msra.mxu0 0.0
    %1120 = vmatpush.msra.mxu0 0.0
    %1121 = vmatpush.msra.mxu0 0.0
    %1122 = vmatpush.msra.mxu0 0.0
    %1123 = vmatpush.msra.mxu0 0.0
    %1124 = vmatpush.msra.mxu0 0.0
    %1125 = vmatpush.msra.mxu0 0.0
    %1126 = vmatpush.msra.mxu0 0.0
    %1127 = vmatpush.msra.mxu0 0.0
    %1128 = vmatpush.msra.mxu0 0.0
    %1129 = vmatpush.msra.mxu0 %v1106
    %1130 = vmatmul.f32.gmra.mxu0 %v1109
    %v1131 = vpop.f32.mrf.mxu0
    %v1132 = vadd.f32 0.0, %v1131
    %1133 = vmatmul.f32.gmra.mxu0 %v1112
    %v1134 = vpop.f32.mrf.mxu0
    %v1135 = vadd.f32 0.0, %v1134
    %1136 = vdwg.mxu0
    %1138 = vrot.lane.b32.xlu0 %v855, 96
    %v1139 = vpop.permute.xlu0 %1138
    %v1142 = vsel %vm140, %v989, 0
    %v1145 = vsel %vm140, %v992, 0
    %1147 = vmatpush.msra.mxu0 0.0
    %1148 = vmatpush.msra.mxu0 0.0
    %1149 = vmatpush.msra.mxu0 0.0
    %1150 = vmatpush.msra.mxu0 0.0
    %1151 = vmatpush.msra.mxu0 0.0
    %1152 = vmatpush.msra.mxu0 0.0
    %1153 = vmatpush.msra.mxu0 0.0
    %1154 = vmatpush.msra.mxu0 0.0
    %1155 = vmatpush.msra.mxu0 0.0
    %1156 = vmatpush.msra.mxu0 0.0
    %1157 = vmatpush.msra.mxu0 0.0
    %1158 = vmatpush.msra.mxu0 0.0
    %1159 = vmatpush.msra.mxu0 0.0
    %1160 = vmatpush.msra.mxu0 0.0
    %1161 = vmatpush.msra.mxu0 0.0
    %1162 = vmatpush.msra.mxu0 %v1139
    %1163 = vmatmul.f32.gmra.mxu0 %v1142
    %v1164 = vpop.f32.mrf.mxu0
    %v1165 = vadd.f32 %v1132, %v1164
    %1166 = vmatmul.f32.gmra.mxu0 %v1145
    %v1167 = vpop.f32.mrf.mxu0
    %v1168 = vadd.f32 %v1135, %v1167
    %1169 = vdwg.mxu0
    %1170 = vrot.lane.b32.xlu0 %v885, 112
    %v1171 = vpop.permute.xlu0 %1170
    %1172 = vrot.lane.b32.xlu0 %v888, 112
    %v1173 = vpop.permute.xlu0 %1172
    %1174 = vrot.lane.b32.xlu0 %v215, 112
    %v1175 = vpop.permute.xlu0 %1174
    %1176 = vrot.lane.b32.xlu0 %v218, 112
    %v1177 = vpop.permute.xlu0 %1176
    %1178 = vrot.lane.b32.xlu0 %v221, 112
    %v1179 = vpop.permute.xlu0 %1178
    %1180 = vrot.lane.b32.xlu0 %v224, 112
    %v1181 = vpop.permute.xlu0 %1180
    %v1182 = vsel %vm140, %v1171, 0
    %v1184 = vsel %vm140, %v1173, 0
    %v1186 = vsel %vm140, %v1175, 0
    %v1188 = vsel %vm140, %v1177, 0
    %v1190 = vsel %vm140, %v1179, 0
    %v1192 = vsel %vm140, %v1181, 0
    %1194 = vmatpush.xpose.msra.mxu0 0.0
    %1195 = vmatpush.xpose.msra.mxu0 0.0
    %1196 = vmatpush.xpose.msra.mxu0 0.0
    %1197 = vmatpush.xpose.msra.mxu0 0.0
    %1198 = vmatpush.xpose.msra.mxu0 0.0
    %1199 = vmatpush.xpose.msra.mxu0 0.0
    %1200 = vmatpush.xpose.msra.mxu0 0.0
    %1201 = vmatpush.xpose.msra.mxu0 0.0
    %1202 = vmatpush.xpose.msra.mxu0 0.0
    %1203 = vmatpush.xpose.msra.mxu0 0.0
    %1204 = vmatpush.xpose.msra.mxu0 0.0
    %1205 = vmatpush.xpose.msra.mxu0 0.0
    %1206 = vmatpush.xpose.msra.mxu0 %v1192
    %1207 = vmatpush.xpose.msra.mxu0 %v1190
    %1208 = vmatpush.xpose.msra.mxu0 %v1188
    %1209 = vmatpush.xpose.msra.mxu0 %v1186
    %1210 = vmatmul.f32.gmra.mxu0 %v1182
    %v1211 = vpop.f32.mrf.mxu0
    %v1212 = vadd.f32 %v176, %v1211
    %1213 = vmatmul.f32.gmra.mxu0 %v1184
    %v1214 = vpop.f32.mrf.mxu0
    %v1215 = vadd.f32 %v177, %v1214
    %1216 = vdwg.mxu0
    %v1217 = vsel %vm184, %v1212, -inf
    %1218 = vmax.xlane.f32.xlu0 %v1217
    %v1219 = vpop.xlane.xlu0 %1218
    %v1220 = vsel %vm184, %v1215, -inf
    %1221 = vmax.xlane.f32.xlu0 %v1220
    %v1222 = vpop.xlane.xlu0 %1221
    %v1223 = vsub.f32 %v1212, %v1219
    %v1224 = vsub.f32 %v1215, %v1222
    %v1225 = vmul.f32 %v1223, 1.442695
    %v1226 = vpow.pop %v1225
    %v1227 = vmul.f32 %v1224, 1.442695
    %v1228 = vpow.pop %v1227
    %v1229 = vsel %vm184, %v1226, 0.0
    %1230 = vadd.xlane.f32.xlu0 %v1229
    %v1231 = vpop.xlane.xlu0 %1230
    %v1232 = vsel %vm184, %v1228, 0.0
    %1233 = vadd.xlane.f32.xlu0 %v1232
    %v1234 = vpop.xlane.xlu0 %1233
    %v1235 = vrcp.pop %v1231
    %v1236 = vrcp.pop %v1234
    %v1237 = vmul.f32 %v1226, %v1235
    %v1238 = vmul.f32 %v1228, %v1236
    %1239 = vrot.lane.b32.xlu0 %v215, 80
    %v1240 = vpop.permute.xlu0 %1239
    %1241 = vrot.lane.b32.xlu0 %v218, 80
    %v1242 = vpop.permute.xlu0 %1241
    %1243 = vrot.lane.b32.xlu0 %v221, 80
    %v1244 = vpop.permute.xlu0 %1243
    %1245 = vrot.lane.b32.xlu0 %v224, 80
    %v1246 = vpop.permute.xlu0 %1245
    %v1252 = vsel %vm184, %v1237, 0
    %v1255 = vsel %vm184, %v1238, 0
    %1257 = vmatpush.msra.mxu0 0.0
    %1258 = vmatpush.msra.mxu0 0.0
    %1259 = vmatpush.msra.mxu0 0.0
    %1260 = vmatpush.msra.mxu0 0.0
    %1261 = vmatpush.msra.mxu0 0.0
    %1262 = vmatpush.msra.mxu0 0.0
    %1263 = vmatpush.msra.mxu0 0.0
    %1264 = vmatpush.msra.mxu0 0.0
    %1265 = vmatpush.msra.mxu0 0.0
    %1266 = vmatpush.msra.mxu0 0.0
    %1267 = vmatpush.msra.mxu0 0.0
    %1268 = vmatpush.msra.mxu0 0.0
    %1269 = vmatpush.msra.mxu0 %v1246
    %1270 = vmatpush.msra.mxu0 %v1244
    %1271 = vmatpush.msra.mxu0 %v1242
    %1272 = vmatpush.msra.mxu0 %v1240
    %1273 = vmatmul.f32.gmra.mxu0 %v1252
    %v1274 = vpop.f32.mrf.mxu0
    %v1275 = vadd.f32 0.0, %v1274
    %1276 = vmatmul.f32.gmra.mxu0 %v1255
    %v1277 = vpop.f32.mrf.mxu0
    %v1278 = vadd.f32 0.0, %v1277
    %1279 = vdwg.mxu0
    %1281 = vrot.lane.b32.xlu0 %v857, 96
    %v1282 = vpop.permute.xlu0 %1281
    %v1285 = vsel %vm140, %v1275, 0
    %v1288 = vsel %vm140, %v1278, 0
    %1290 = vmatpush.msra.mxu0 0.0
    %1291 = vmatpush.msra.mxu0 0.0
    %1292 = vmatpush.msra.mxu0 0.0
    %1293 = vmatpush.msra.mxu0 0.0
    %1294 = vmatpush.msra.mxu0 0.0
    %1295 = vmatpush.msra.mxu0 0.0
    %1296 = vmatpush.msra.mxu0 0.0
    %1297 = vmatpush.msra.mxu0 0.0
    %1298 = vmatpush.msra.mxu0 0.0
    %1299 = vmatpush.msra.mxu0 0.0
    %1300 = vmatpush.msra.mxu0 0.0
    %1301 = vmatpush.msra.mxu0 0.0
    %1302 = vmatpush.msra.mxu0 0.0
    %1303 = vmatpush.msra.mxu0 0.0
    %1304 = vmatpush.msra.mxu0 0.0
    %1305 = vmatpush.msra.mxu0 %v1282
    %1306 = vmatmul.f32.gmra.mxu0 %v1285
    %v1307 = vpop.f32.mrf.mxu0
    %v1308 = vadd.f32 0.0, %v1307
    %1309 = vmatmul.f32.gmra.mxu0 %v1288
    %v1310 = vpop.f32.mrf.mxu0
    %v1311 = vadd.f32 0.0, %v1310
    %1312 = vdwg.mxu0
    %v1313 = vadd.f32 %v1165, %v1308
    %v1314 = vadd.f32 %v1168, %v1311
    %1315 = vrot.lane.b32.xlu0 %v885, 104
    %v1316 = vpop.permute.xlu0 %1315
    %1317 = vrot.lane.b32.xlu0 %v888, 104
    %v1318 = vpop.permute.xlu0 %1317
    %1319 = vrot.lane.b32.xlu0 %v215, 104
    %v1320 = vpop.permute.xlu0 %1319
    %1321 = vrot.lane.b32.xlu0 %v218, 104
    %v1322 = vpop.permute.xlu0 %1321
    %1323 = vrot.lane.b32.xlu0 %v221, 104
    %v1324 = vpop.permute.xlu0 %1323
    %1325 = vrot.lane.b32.xlu0 %v224, 104
    %v1326 = vpop.permute.xlu0 %1325
    %v1327 = vsel %vm140, %v1316, 0
    %v1329 = vsel %vm140, %v1318, 0
    %v1331 = vsel %vm140, %v1320, 0
    %v1333 = vsel %vm140, %v1322, 0
    %v1335 = vsel %vm140, %v1324, 0
    %v1337 = vsel %vm140, %v1326, 0
    %1339 = vmatpush.xpose.msra.mxu0 0.0
    %1340 = vmatpush.xpose.msra.mxu0 0.0
    %1341 = vmatpush.xpose.msra.mxu0 0.0
    %1342 = vmatpush.xpose.msra.mxu0 0.0
    %1343 = vmatpush.xpose.msra.mxu0 0.0
    %1344 = vmatpush.xpose.msra.mxu0 0.0
    %1345 = vmatpush.xpose.msra.mxu0 0.0
    %1346 = vmatpush.xpose.msra.mxu0 0.0
    %1347 = vmatpush.xpose.msra.mxu0 0.0
    %1348 = vmatpush.xpose.msra.mxu0 0.0
    %1349 = vmatpush.xpose.msra.mxu0 0.0
    %1350 = vmatpush.xpose.msra.mxu0 0.0
    %1351 = vmatpush.xpose.msra.mxu0 %v1337
    %1352 = vmatpush.xpose.msra.mxu0 %v1335
    %1353 = vmatpush.xpose.msra.mxu0 %v1333
    %1354 = vmatpush.xpose.msra.mxu0 %v1331
    %1355 = vmatmul.f32.gmra.mxu0 %v1327
    %v1356 = vpop.f32.mrf.mxu0
    %v1357 = vadd.f32 %v176, %v1356
    %1358 = vmatmul.f32.gmra.mxu0 %v1329
    %v1359 = vpop.f32.mrf.mxu0
    %v1360 = vadd.f32 %v177, %v1359
    %1361 = vdwg.mxu0
    %v1362 = vsel %vm184, %v1357, -inf
    %1363 = vmax.xlane.f32.xlu0 %v1362
    %v1364 = vpop.xlane.xlu0 %1363
    %v1365 = vsel %vm184, %v1360, -inf
    %1366 = vmax.xlane.f32.xlu0 %v1365
    %v1367 = vpop.xlane.xlu0 %1366
    %v1368 = vsub.f32 %v1357, %v1364
    %v1369 = vsub.f32 %v1360, %v1367
    %v1370 = vmul.f32 %v1368, 1.442695
    %v1371 = vpow.pop %v1370
    %v1372 = vmul.f32 %v1369, 1.442695
    %v1373 = vpow.pop %v1372
    %v1374 = vsel %vm184, %v1371, 0.0
    %1375 = vadd.xlane.f32.xlu0 %v1374
    %v1376 = vpop.xlane.xlu0 %1375
    %v1377 = vsel %vm184, %v1373, 0.0
    %1378 = vadd.xlane.f32.xlu0 %v1377
    %v1379 = vpop.xlane.xlu0 %1378
    %v1380 = vrcp.pop %v1376
    %v1381 = vrcp.pop %v1379
    %v1382 = vmul.f32 %v1371, %v1380
    %v1383 = vmul.f32 %v1373, %v1381
    %1384 = vrot.lane.b32.xlu0 %v215, 72
    %v1385 = vpop.permute.xlu0 %1384
    %1386 = vrot.lane.b32.xlu0 %v218, 72
    %v1387 = vpop.permute.xlu0 %1386
    %1388 = vrot.lane.b32.xlu0 %v221, 72
    %v1389 = vpop.permute.xlu0 %1388
    %1390 = vrot.lane.b32.xlu0 %v224, 72
    %v1391 = vpop.permute.xlu0 %1390
    %v1397 = vsel %vm184, %v1382, 0
    %v1400 = vsel %vm184, %v1383, 0
    %1402 = vmatpush.msra.mxu0 0.0
    %1403 = vmatpush.msra.mxu0 0.0
    %1404 = vmatpush.msra.mxu0 0.0
    %1405 = vmatpush.msra.mxu0 0.0
    %1406 = vmatpush.msra.mxu0 0.0
    %1407 = vmatpush.msra.mxu0 0.0
    %1408 = vmatpush.msra.mxu0 0.0
    %1409 = vmatpush.msra.mxu0 0.0
    %1410 = vmatpush.msra.mxu0 0.0
    %1411 = vmatpush.msra.mxu0 0.0
    %1412 = vmatpush.msra.mxu0 0.0
    %1413 = vmatpush.msra.mxu0 0.0
    %1414 = vmatpush.msra.mxu0 %v1391
    %1415 = vmatpush.msra.mxu0 %v1389
    %1416 = vmatpush.msra.mxu0 %v1387
    %1417 = vmatpush.msra.mxu0 %v1385
    %1418 = vmatmul.f32.gmra.mxu0 %v1397
    %v1419 = vpop.f32.mrf.mxu0
    %v1420 = vadd.f32 0.0, %v1419
    %1421 = vmatmul.f32.gmra.mxu0 %v1400
    %v1422 = vpop.f32.mrf.mxu0
    %v1423 = vadd.f32 0.0, %v1422
    %1424 = vdwg.mxu0
    %1426 = vrot.lane.b32.xlu0 %v858, 96
    %v1427 = vpop.permute.xlu0 %1426
    %v1430 = vsel %vm140, %v1420, 0
    %v1433 = vsel %vm140, %v1423, 0
    %1435 = vmatpush.msra.mxu0 0.0
    %1436 = vmatpush.msra.mxu0 0.0
    %1437 = vmatpush.msra.mxu0 0.0
    %1438 = vmatpush.msra.mxu0 0.0
    %1439 = vmatpush.msra.mxu0 0.0
    %1440 = vmatpush.msra.mxu0 0.0
    %1441 = vmatpush.msra.mxu0 0.0
    %1442 = vmatpush.msra.mxu0 0.0
    %1443 = vmatpush.msra.mxu0 0.0
    %1444 = vmatpush.msra.mxu0 0.0
    %1445 = vmatpush.msra.mxu0 0.0
    %1446 = vmatpush.msra.mxu0 0.0
    %1447 = vmatpush.msra.mxu0 0.0
    %1448 = vmatpush.msra.mxu0 0.0
    %1449 = vmatpush.msra.mxu0 0.0
    %1450 = vmatpush.msra.mxu0 %v1427
    %1451 = vmatmul.f32.gmra.mxu0 %v1430
    %v1452 = vpop.f32.mrf.mxu0
    %v1453 = vadd.f32 0.0, %v1452
    %1454 = vmatmul.f32.gmra.mxu0 %v1433
    %v1455 = vpop.f32.mrf.mxu0
    %v1456 = vadd.f32 0.0, %v1455
    %1457 = vdwg.mxu0
    %v1458 = vadd.f32 %v1313, %v1453
    %v1459 = vadd.f32 %v1314, %v1456
    %1461 = vrot.lane.b32.xlu0 %v860, 96
    %v1462 = vpop.permute.xlu0 %1461
    %v1464 = vadd.f32 %v1458, %v1462
    %v1465 = vadd.f32 %v1459, %v1462
    %v1466 = vadd.f32 %v853, %v1464
    %v1467 = vadd.f32 %v854, %v1465
    %v1468 = vld [vmem:[#allocation12 + $0x7] sm:$0x1]
    %v1469 = vsel %vm184, %v1466, 0.0
    %1470 = vadd.xlane.f32.xlu0 %v1469
    %v1471 = vpop.xlane.xlu0 %1470
    %v1472 = vsel %vm184, %v1467, 0.0
    %1473 = vadd.xlane.f32.xlu0 %v1472
    %v1474 = vpop.xlane.xlu0 %1473
    %v1475 = vmul.f32 %v1471, %v801
    %v1476 = vmul.f32 %v1474, %v801
    %v1477 = vsub.f32 %v1466, %v1475
    %v1478 = vsub.f32 %v1467, %v1476
    %v1479 = vmul.f32 %v1477, %v1477
    %v1480 = vmul.f32 %v1478, %v1478
    %v1481 = vsel %vm184, %v1479, 0.0
    %1482 = vadd.xlane.f32.xlu0 %v1481
    %v1483 = vpop.xlane.xlu0 %1482
    %v1484 = vsel %vm184, %v1480, 0.0
    %1485 = vadd.xlane.f32.xlu0 %v1484
    %v1486 = vpop.xlane.xlu0 %1485
    %v1487 = vmul.f32 %v1483, 0.032258064
    %v1488 = vmul.f32 %v1486, 0.032258064
    %v1489 = vrsqrt.pop %v1487
    %v1490 = vmul.f32 %v1489, %v1487
    %v1491 = vmul.f32 %v1490, %v1489
    %v1492 = vmul.f32 0.5, %v1491
    %v1493 = vsub.f32 1.5, %v1492
    %v1494 = vmul.f32 %v1489, %v1493
    %v1495 = vmul.f32 %v1487, %v1494
    %vm1496 = vcmp.eq.f32.partialorder %v1487, inf
    %v1497 = vsel %vm1496, %v1487, %v1495
    %vm1498 = vcmp.eq.f32.partialorder %v1487, 0.0
    %v1499 = vand.u32 %v1487, 2147483648
    %v1500 = vsel %vm1498, %v1499, %v1497
    %v1501 = vrsqrt.pop %v1488
    %v1502 = vmul.f32 %v1501, %v1488
    %v1503 = vmul.f32 %v1502, %v1501
    %v1504 = vmul.f32 0.5, %v1503
    %v1505 = vsub.f32 1.5, %v1504
    %v1506 = vmul.f32 %v1501, %v1505
    %v1507 = vmul.f32 %v1488, %v1506
    %vm1508 = vcmp.eq.f32.partialorder %v1488, inf
    %v1509 = vsel %vm1508, %v1488, %v1507
    %vm1510 = vcmp.eq.f32.partialorder %v1488, 0.0
    %v1511 = vand.u32 %v1488, 2147483648
    %v1512 = vsel %vm1510, %v1511, %v1509
    %v1513 = vadd.f32 %v1500, 1e-06
    %v1514 = vadd.f32 %v1512, 1e-06
    %v1515 = vrcp.pop %v1513
    %v1516 = vrcp.pop %v1514
    %v1517 = vperm.slane %v1468, 0
    %v1518 = vmul.f32 %v1517, %v1477
    %v1519 = vmul.f32 %v1517, %v1478
    %v1520 = vmul.f32 %v1518, %v1515
    %v1521 = vmul.f32 %v1519, %v1516
    %1523 = vrot.lane.b32.xlu0 %v1517, 96
    %v1524 = vpop.permute.xlu0 %1523
    %v1526 = vadd.f32 %v1520, %v1524
    %v1527 = vadd.f32 %v1521, %v1524
    %1528 = vrot.lane.b32.xlu0 %v855, 64
    %v1529 = vpop.permute.xlu0 %1528
    %1530 = vrot.lane.b32.xlu0 %v856, 64
    %v1531 = vpop.permute.xlu0 %1530
    %1532 = vrot.lane.b32.xlu0 %v857, 64
    %v1533 = vpop.permute.xlu0 %1532
    %1534 = vrot.lane.b32.xlu0 %v858, 64
    %v1535 = vpop.permute.xlu0 %1534
    %1540 = vrot.lane.b32.xlu0 %v860, 64
    %v1541 = vpop.permute.xlu0 %1540
    %v1544 = vsel %vm184, %v1526, 0
    %v1547 = vsel %vm184, %v1527, 0
    %1549 = vmatpush.msra.mxu0 0.0
    %1550 = vmatpush.msra.mxu0 0.0
    %1551 = vmatpush.msra.mxu0 0.0
    %1552 = vmatpush.msra.mxu0 0.0
    %1553 = vmatpush.msra.mxu0 0.0
    %1554 = vmatpush.msra.mxu0 0.0
    %1555 = vmatpush.msra.mxu0 0.0
    %1556 = vmatpush.msra.mxu0 0.0
    %1557 = vmatpush.msra.mxu0 0.0
    %1558 = vmatpush.msra.mxu0 0.0
    %1559 = vmatpush.msra.mxu0 0.0
    %1560 = vmatpush.msra.mxu0 0.0
    %1561 = vmatpush.msra.mxu0 %v1535
    %1562 = vmatpush.msra.mxu0 %v1533
    %1563 = vmatpush.msra.mxu0 %v1531
    %1564 = vmatpush.msra.mxu0 %v1529
    %1565 = vmatmul.f32.gmra.mxu0 %v1544
    %v1566 = vpop.f32.mrf.mxu0
    %v1567 = vadd.f32 %v1541, %v1566
    %1568 = vmatmul.f32.gmra.mxu0 %v1547
    %v1569 = vpop.f32.mrf.mxu0
    %v1570 = vadd.f32 %v1541, %v1569
    %1571 = vdwg.mxu0
    %v1572 = vmax.f32 %v1567, 0.0
    %v1573 = vmax.f32 %v1570, 0.0
    %v1574 = vld [vmem:[#allocation10] sm:$0xff]
    %v1575 = vld [vmem:[#allocation10 + $0x8] sm:$0xff]
    %v1576 = vld [vmem:[#allocation10 + $0x10] sm:$0xff]
    %v1577 = vld [vmem:[#allocation10 + $0x18] sm:$0xff]
    %v1578 = vld [vmem:[#allocation10 + $0x20] sm:$0xff]
    %v1579 = vld [vmem:[#allocation10 + $0x28] sm:$0xff]
    %v1580 = vld [vmem:[#allocation10 + $0x30] sm:$0xff]
    %v1581 = vld [vmem:[#allocation10 + $0x38] sm:$0xff]
    %v1582 = vld [vmem:[#allocation12 + $0x5] sm:$0x1]
    %v1583 = vperm.slane %v1582, 0
    %vm1584 = vcmask 523264
    %v1586 = vsel %vm1584, %v1572, 0
    %v1589 = vsel %vm1584, %v1573, 0
    %1591 = vmatpush.msra.mxu0 0.0
    %1592 = vmatpush.msra.mxu0 0.0
    %1593 = vmatpush.msra.mxu0 0.0
    %1594 = vmatpush.msra.mxu0 0.0
    %1595 = vmatpush.msra.mxu0 0.0
    %1596 = vmatpush.msra.mxu0 0.0
    %1597 = vmatpush.msra.mxu0 0.0
    %1598 = vmatpush.msra.mxu0 0.0
    %1599 = vmatpush.msra.mxu0 %v1581
    %1600 = vmatpush.msra.mxu0 %v1580
    %1601 = vmatpush.msra.mxu0 %v1579
    %1602 = vmatpush.msra.mxu0 %v1578
    %1603 = vmatpush.msra.mxu0 %v1577
    %1604 = vmatpush.msra.mxu0 %v1576
    %1605 = vmatpush.msra.mxu0 %v1575
    %1606 = vmatpush.msra.mxu0 %v1574
    %1607 = vmatmul.f32.gmra.mxu0 %v1586
    %v1608 = vpop.f32.mrf.mxu0
    %v1609 = vadd.f32 %v1583, %v1608
    %1610 = vmatmul.f32.gmra.mxu0 %v1589
    %v1611 = vpop.f32.mrf.mxu0
    %v1612 = vadd.f32 %v1583, %v1611
    %1613 = vdwg.mxu0
    %v1614 = vadd.f32 %v1526, %v1609
    %v1615 = vadd.f32 %v1527, %v1612
    %v1616 = vld [vmem:[#allocation12 + $0x8] sm:$0x1]
    %v1617 = vsel %vm184, %v1614, 0.0
    %1618 = vadd.xlane.f32.xlu0 %v1617
    %v1619 = vpop.xlane.xlu0 %1618
    %v1620 = vsel %vm184, %v1615, 0.0
    %1621 = vadd.xlane.f32.xlu0 %v1620
    %v1622 = vpop.xlane.xlu0 %1621
    %v1623 = vmul.f32 %v1619, %v801
    %v1624 = vmul.f32 %v1622, %v801
    %v1625 = vsub.f32 %v1614, %v1623
    %v1626 = vsub.f32 %v1615, %v1624
    %v1627 = vmul.f32 %v1625, %v1625
    %v1628 = vmul.f32 %v1626, %v1626
    %v1629 = vsel %vm184, %v1627, 0.0
    %1630 = vadd.xlane.f32.xlu0 %v1629
    %v1631 = vpop.xlane.xlu0 %1630
    %v1632 = vsel %vm184, %v1628, 0.0
    %1633 = vadd.xlane.f32.xlu0 %v1632
    %v1634 = vpop.xlane.xlu0 %1633
    %v1635 = vmul.f32 %v1631, 0.032258064
    %v1636 = vmul.f32 %v1634, 0.032258064
    %v1637 = vrsqrt.pop %v1635
    %v1638 = vmul.f32 %v1637, %v1635
    %v1639 = vmul.f32 %v1638, %v1637
    %v1640 = vmul.f32 0.5, %v1639
    %v1641 = vsub.f32 1.5, %v1640
    %v1642 = vmul.f32 %v1637, %v1641
    %v1643 = vmul.f32 %v1635, %v1642
    %vm1644 = vcmp.eq.f32.partialorder %v1635, inf
    %v1645 = vsel %vm1644, %v1635, %v1643
    %vm1646 = vcmp.eq.f32.partialorder %v1635, 0.0
    %v1647 = vand.u32 %v1635, 2147483648
    %v1648 = vsel %vm1646, %v1647, %v1645
    %v1649 = vrsqrt.pop %v1636
    %v1650 = vmul.f32 %v1649, %v1636
    %v1651 = vmul.f32 %v1650, %v1649
    %v1652 = vmul.f32 0.5, %v1651
    %v1653 = vsub.f32 1.5, %v1652
    %v1654 = vmul.f32 %v1649, %v1653
    %v1655 = vmul.f32 %v1636, %v1654
    %vm1656 = vcmp.eq.f32.partialorder %v1636, inf
    %v1657 = vsel %vm1656, %v1636, %v1655
    %vm1658 = vcmp.eq.f32.partialorder %v1636, 0.0
    %v1659 = vand.u32 %v1636, 2147483648
    %v1660 = vsel %vm1658, %v1659, %v1657
    %v1661 = vadd.f32 %v1648, 1e-06
    %v1662 = vadd.f32 %v1660, 1e-06
    %v1663 = vrcp.pop %v1661
    %v1664 = vrcp.pop %v1662
    %v1665 = vperm.slane %v1616, 0
    %v1666 = vmul.f32 %v1665, %v1625
    %v1667 = vmul.f32 %v1665, %v1626
    %v1668 = vmul.f32 %v1666, %v1663
    %v1669 = vmul.f32 %v1667, %v1664
    %1671 = vrot.lane.b32.xlu0 %v1665, 96
    %v1672 = vpop.permute.xlu0 %1671
    %v1674 = vadd.f32 %v1668, %v1672
    %v1675 = vadd.f32 %v1669, %v1672
    %v1676 = vld [vmem:[#allocation9 + $0x10] sm:$0xff]
    %v1677 = vld [vmem:[#allocation9 + $0x48] sm:$0xff]
    %v1678 = vld [vmem:[#allocation9 + $0x80] sm:$0xff]
    %v1679 = vld [vmem:[#allocation9 + $0xb8] sm:$0xff]
    %v1680 = vld [vmem:[#allocation12 + $0x2] sm:$0x1]
    %v1681 = vperm.slane %v1680, 0
    %v1683 = vsel %vm184, %v1674, 0
    %v1686 = vsel %vm184, %v1675, 0
    %1688 = vmatpush.msra.mxu0 0.0
    %1689 = vmatpush.msra.mxu0 0.0
    %1690 = vmatpush.msra.mxu0 0.0
    %1691 = vmatpush.msra.mxu0 0.0
    %1692 = vmatpush.msra.mxu0 0.0
    %1693 = vmatpush.msra.mxu0 0.0
    %1694 = vmatpush.msra.mxu0 0.0
    %1695 = vmatpush.msra.mxu0 0.0
    %1696 = vmatpush.msra.mxu0 0.0
    %1697 = vmatpush.msra.mxu0 0.0
    %1698 = vmatpush.msra.mxu0 0.0
    %1699 = vmatpush.msra.mxu0 0.0
    %1700 = vmatpush.msra.mxu0 %v1679
    %1701 = vmatpush.msra.mxu0 %v1678
    %1702 = vmatpush.msra.mxu0 %v1677
    %1703 = vmatpush.msra.mxu0 %v1676
    %1704 = vmatmul.f32.gmra.mxu0 %v1683
    %v1705 = vpop.f32.mrf.mxu0
    %v1706 = vadd.f32 %v1681, %v1705
    %1707 = vmatmul.f32.gmra.mxu0 %v1686
    %v1708 = vpop.f32.mrf.mxu0
    %v1709 = vadd.f32 %v1681, %v1708
    %1710 = vdwg.mxu0
    %1713 = vrot.lane.b32.xlu0 %v1706, 96
    %v1714 = vpop.permute.xlu0 %1713
    %1715 = vrot.lane.b32.xlu0 %v1709, 96
    %v1716 = vpop.permute.xlu0 %1715
    %v1717 = vsel %vm140, %v1706, 0
    %v1719 = vsel %vm140, %v1709, 0
    %v1721 = vsel %vm140, %v1714, 0
    %v1723 = vsel %vm140, %v1716, 0
    %1725 = vmatpush.xpose.msra.mxu0 0.0
    %1726 = vmatpush.xpose.msra.mxu0 0.0
    %1727 = vmatpush.xpose.msra.mxu0 0.0
    %1728 = vmatpush.xpose.msra.mxu0 0.0
    %1729 = vmatpush.xpose.msra.mxu0 0.0
    %1730 = vmatpush.xpose.msra.mxu0 0.0
    %1731 = vmatpush.xpose.msra.mxu0 0.0
    %1732 = vmatpush.xpose.msra.mxu0 0.0
    %1733 = vmatpush.xpose.msra.mxu0 0.0
    %1734 = vmatpush.xpose.msra.mxu0 0.0
    %1735 = vmatpush.xpose.msra.mxu0 0.0
    %1736 = vmatpush.xpose.msra.mxu0 0.0
    %1737 = vmatpush.xpose.msra.mxu0 0.0
    %1738 = vmatpush.xpose.msra.mxu0 0.0
    %1739 = vmatpush.xpose.msra.mxu0 %v1723
    %1740 = vmatpush.xpose.msra.mxu0 %v1721
    %1741 = vmatmul.f32.gmra.mxu0 %v1717
    %v1742 = vpop.f32.mrf.mxu0
    %v1743 = vadd.f32 %v174, %v1742
    %1744 = vmatmul.f32.gmra.mxu0 %v1719
    %v1745 = vpop.f32.mrf.mxu0
    %v1746 = vadd.f32 %v175, %v1745
    %1747 = vdwg.mxu0
    %v1748 = vsel %vm298, %v1743, -inf
    %1749 = vmax.xlane.f32.xlu0 %v1748
    %v1750 = vpop.xlane.xlu0 %1749
    %v1751 = vsel %vm298, %v1746, -inf
    %1752 = vmax.xlane.f32.xlu0 %v1751
    %v1753 = vpop.xlane.xlu0 %1752
    %v1754 = vsub.f32 %v1743, %v1750
    %v1755 = vsub.f32 %v1746, %v1753
    %v1756 = vmul.f32 %v1754, 1.442695
    %v1757 = vpow.pop %v1756
    %v1758 = vmul.f32 %v1755, 1.442695
    %v1759 = vpow.pop %v1758
    %v1760 = vsel %vm298, %v1757, 0.0
    %1761 = vadd.xlane.f32.xlu0 %v1760
    %v1762 = vpop.xlane.xlu0 %1761
    %v1763 = vsel %vm298, %v1759, 0.0
    %1764 = vadd.xlane.f32.xlu0 %v1763
    %v1765 = vpop.xlane.xlu0 %1764
    %v1766 = vrcp.pop %v1762
    %v1767 = vrcp.pop %v1765
    %v1768 = vmul.f32 %v1757, %v1766
    %v1769 = vmul.f32 %v1759, %v1767
    %1770 = vrot.lane.b32.xlu0 %v1706, 64
    %v1771 = vpop.permute.xlu0 %1770
    %1772 = vrot.lane.b32.xlu0 %v1709, 64
    %v1773 = vpop.permute.xlu0 %1772
    %v1777 = vsel %vm298, %v1768, 0
    %v1780 = vsel %vm298, %v1769, 0
    %1782 = vmatpush.msra.mxu0 0.0
    %1783 = vmatpush.msra.mxu0 0.0
    %1784 = vmatpush.msra.mxu0 0.0
    %1785 = vmatpush.msra.mxu0 0.0
    %1786 = vmatpush.msra.mxu0 0.0
    %1787 = vmatpush.msra.mxu0 0.0
    %1788 = vmatpush.msra.mxu0 0.0
    %1789 = vmatpush.msra.mxu0 0.0
    %1790 = vmatpush.msra.mxu0 0.0
    %1791 = vmatpush.msra.mxu0 0.0
    %1792 = vmatpush.msra.mxu0 0.0
    %1793 = vmatpush.msra.mxu0 0.0
    %1794 = vmatpush.msra.mxu0 0.0
    %1795 = vmatpush.msra.mxu0 0.0
    %1796 = vmatpush.msra.mxu0 %v1773
    %1797 = vmatpush.msra.mxu0 %v1771
    %1798 = vmatmul.f32.gmra.mxu0 %v1777
    %v1799 = vpop.f32.mrf.mxu0
    %v1800 = vadd.f32 0.0, %v1799
    %1801 = vmatmul.f32.gmra.mxu0 %v1780
    %v1802 = vpop.f32.mrf.mxu0
    %v1803 = vadd.f32 0.0, %v1802
    %1804 = vdwg.mxu0
    %1805 = vrot.lane.b32.xlu0 %v1706, 120
    %v1806 = vpop.permute.xlu0 %1805
    %1807 = vrot.lane.b32.xlu0 %v1709, 120
    %v1808 = vpop.permute.xlu0 %1807
    %1809 = vrot.lane.b32.xlu0 %v1706, 88
    %v1810 = vpop.permute.xlu0 %1809
    %1811 = vrot.lane.b32.xlu0 %v1709, 88
    %v1812 = vpop.permute.xlu0 %1811
    %v1813 = vsel %vm140, %v1806, 0
    %v1815 = vsel %vm140, %v1808, 0
    %v1817 = vsel %vm140, %v1810, 0
    %v1819 = vsel %vm140, %v1812, 0
    %1821 = vmatpush.xpose.msra.mxu0 0.0
    %1822 = vmatpush.xpose.msra.mxu0 0.0
    %1823 = vmatpush.xpose.msra.mxu0 0.0
    %1824 = vmatpush.xpose.msra.mxu0 0.0
    %1825 = vmatpush.xpose.msra.mxu0 0.0
    %1826 = vmatpush.xpose.msra.mxu0 0.0
    %1827 = vmatpush.xpose.msra.mxu0 0.0
    %1828 = vmatpush.xpose.msra.mxu0 0.0
    %1829 = vmatpush.xpose.msra.mxu0 0.0
    %1830 = vmatpush.xpose.msra.mxu0 0.0
    %1831 = vmatpush.xpose.msra.mxu0 0.0
    %1832 = vmatpush.xpose.msra.mxu0 0.0
    %1833 = vmatpush.xpose.msra.mxu0 0.0
    %1834 = vmatpush.xpose.msra.mxu0 0.0
    %1835 = vmatpush.xpose.msra.mxu0 %v1819
    %1836 = vmatpush.xpose.msra.mxu0 %v1817
    %1837 = vmatmul.f32.gmra.mxu0 %v1813
    %v1838 = vpop.f32.mrf.mxu0
    %v1839 = vadd.f32 %v174, %v1838
    %1840 = vmatmul.f32.gmra.mxu0 %v1815
    %v1841 = vpop.f32.mrf.mxu0
    %v1842 = vadd.f32 %v175, %v1841
    %1843 = vdwg.mxu0
    %v1844 = vsel %vm298, %v1839, -inf
    %1845 = vmax.xlane.f32.xlu0 %v1844
    %v1846 = vpop.xlane.xlu0 %1845
    %v1847 = vsel %vm298, %v1842, -inf
    %1848 = vmax.xlane.f32.xlu0 %v1847
    %v1849 = vpop.xlane.xlu0 %1848
    %v1850 = vsub.f32 %v1839, %v1846
    %v1851 = vsub.f32 %v1842, %v1849
    %v1852 = vmul.f32 %v1850, 1.442695
    %v1853 = vpow.pop %v1852
    %v1854 = vmul.f32 %v1851, 1.442695
    %v1855 = vpow.pop %v1854
    %v1856 = vsel %vm298, %v1853, 0.0
    %1857 = vadd.xlane.f32.xlu0 %v1856
    %v1858 = vpop.xlane.xlu0 %1857
    %v1859 = vsel %vm298, %v1855, 0.0
    %1860 = vadd.xlane.f32.xlu0 %v1859
    %v1861 = vpop.xlane.xlu0 %1860
    %v1862 = vrcp.pop %v1858
    %v1863 = vrcp.pop %v1861
    %v1864 = vmul.f32 %v1853, %v1862
    %v1865 = vmul.f32 %v1855, %v1863
    %1866 = vrot.lane.b32.xlu0 %v1706, 56
    %v1867 = vpop.permute.xlu0 %1866
    %1868 = vrot.lane.b32.xlu0 %v1709, 56
    %v1869 = vpop.permute.xlu0 %1868
    %v1873 = vsel %vm298, %v1864, 0
    %v1876 = vsel %vm298, %v1865, 0
    %1878 = vmatpush.msra.mxu0 0.0
    %1879 = vmatpush.msra.mxu0 0.0
    %1880 = vmatpush.msra.mxu0 0.0
    %1881 = vmatpush.msra.mxu0 0.0
    %1882 = vmatpush.msra.mxu0 0.0
    %1883 = vmatpush.msra.mxu0 0.0
    %1884 = vmatpush.msra.mxu0 0.0
    %1885 = vmatpush.msra.mxu0 0.0
    %1886 = vmatpush.msra.mxu0 0.0
    %1887 = vmatpush.msra.mxu0 0.0
    %1888 = vmatpush.msra.mxu0 0.0
    %1889 = vmatpush.msra.mxu0 0.0
    %1890 = vmatpush.msra.mxu0 0.0
    %1891 = vmatpush.msra.mxu0 0.0
    %1892 = vmatpush.msra.mxu0 %v1869
    %1893 = vmatpush.msra.mxu0 %v1867
    %1894 = vmatmul.f32.gmra.mxu0 %v1873
    %v1895 = vpop.f32.mrf.mxu0
    %v1896 = vadd.f32 0.0, %v1895
    %1897 = vmatmul.f32.gmra.mxu0 %v1876
    %v1898 = vpop.f32.mrf.mxu0
    %v1899 = vadd.f32 0.0, %v1898
    %1900 = vdwg.mxu0
    %1902 = vrot.lane.b32.xlu0 %v1677, 32
    %v1903 = vpop.permute.xlu0 %1902
    %v1906 = vsel %vm140, %v1896, 0
    %v1909 = vsel %vm140, %v1899, 0
    %1911 = vmatpush.msra.mxu0 0.0
    %1912 = vmatpush.msra.mxu0 0.0
    %1913 = vmatpush.msra.mxu0 0.0
    %1914 = vmatpush.msra.mxu0 0.0
    %1915 = vmatpush.msra.mxu0 0.0
    %1916 = vmatpush.msra.mxu0 0.0
    %1917 = vmatpush.msra.mxu0 0.0
    %1918 = vmatpush.msra.mxu0 0.0
    %1919 = vmatpush.msra.mxu0 0.0
    %1920 = vmatpush.msra.mxu0 0.0
    %1921 = vmatpush.msra.mxu0 0.0
    %1922 = vmatpush.msra.mxu0 0.0
    %1923 = vmatpush.msra.mxu0 0.0
    %1924 = vmatpush.msra.mxu0 0.0
    %1925 = vmatpush.msra.mxu0 0.0
    %1926 = vmatpush.msra.mxu0 %v1903
    %1927 = vmatmul.f32.gmra.mxu0 %v1906
    %v1928 = vpop.f32.mrf.mxu0
    %v1929 = vadd.f32 0.0, %v1928
    %1930 = vmatmul.f32.gmra.mxu0 %v1909
    %v1931 = vpop.f32.mrf.mxu0
    %v1932 = vadd.f32 0.0, %v1931
    %1933 = vdwg.mxu0
    %1935 = vrot.lane.b32.xlu0 %v1676, 32
    %v1936 = vpop.permute.xlu0 %1935
    %v1939 = vsel %vm140, %v1800, 0
    %v1942 = vsel %vm140, %v1803, 0
    %1944 = vmatpush.msra.mxu0 0.0
    %1945 = vmatpush.msra.mxu0 0.0
    %1946 = vmatpush.msra.mxu0 0.0
    %1947 = vmatpush.msra.mxu0 0.0
    %1948 = vmatpush.msra.mxu0 0.0
    %1949 = vmatpush.msra.mxu0 0.0
    %1950 = vmatpush.msra.mxu0 0.0
    %1951 = vmatpush.msra.mxu0 0.0
    %1952 = vmatpush.msra.mxu0 0.0
    %1953 = vmatpush.msra.mxu0 0.0
    %1954 = vmatpush.msra.mxu0 0.0
    %1955 = vmatpush.msra.mxu0 0.0
    %1956 = vmatpush.msra.mxu0 0.0
    %1957 = vmatpush.msra.mxu0 0.0
    %1958 = vmatpush.msra.mxu0 0.0
    %1959 = vmatpush.msra.mxu0 %v1936
    %1960 = vmatmul.f32.gmra.mxu0 %v1939
    %v1961 = vpop.f32.mrf.mxu0
    %v1962 = vadd.f32 %v1929, %v1961
    %1963 = vmatmul.f32.gmra.mxu0 %v1942
    %v1964 = vpop.f32.mrf.mxu0
    %v1965 = vadd.f32 %v1932, %v1964
    %1966 = vdwg.mxu0
    %1967 = vrot.lane.b32.xlu0 %v1706, 112
    %v1968 = vpop.permute.xlu0 %1967
    %1969 = vrot.lane.b32.xlu0 %v1709, 112
    %v1970 = vpop.permute.xlu0 %1969
    %1971 = vrot.lane.b32.xlu0 %v1706, 80
    %v1972 = vpop.permute.xlu0 %1971
    %1973 = vrot.lane.b32.xlu0 %v1709, 80
    %v1974 = vpop.permute.xlu0 %1973
    %v1975 = vsel %vm140, %v1968, 0
    %v1977 = vsel %vm140, %v1970, 0
    %v1979 = vsel %vm140, %v1972, 0
    %v1981 = vsel %vm140, %v1974, 0
    %1983 = vmatpush.xpose.msra.mxu0 0.0
    %1984 = vmatpush.xpose.msra.mxu0 0.0
    %1985 = vmatpush.xpose.msra.mxu0 0.0
    %1986 = vmatpush.xpose.msra.mxu0 0.0
    %1987 = vmatpush.xpose.msra.mxu0 0.0
    %1988 = vmatpush.xpose.msra.mxu0 0.0
    %1989 = vmatpush.xpose.msra.mxu0 0.0
    %1990 = vmatpush.xpose.msra.mxu0 0.0
    %1991 = vmatpush.xpose.msra.mxu0 0.0
    %1992 = vmatpush.xpose.msra.mxu0 0.0
    %1993 = vmatpush.xpose.msra.mxu0 0.0
    %1994 = vmatpush.xpose.msra.mxu0 0.0
    %1995 = vmatpush.xpose.msra.mxu0 0.0
    %1996 = vmatpush.xpose.msra.mxu0 0.0
    %1997 = vmatpush.xpose.msra.mxu0 %v1981
    %1998 = vmatpush.xpose.msra.mxu0 %v1979
    %1999 = vmatmul.f32.gmra.mxu0 %v1975
    %v2000 = vpop.f32.mrf.mxu0
    %v2001 = vadd.f32 %v174, %v2000
    %2002 = vmatmul.f32.gmra.mxu0 %v1977
    %v2003 = vpop.f32.mrf.mxu0
    %v2004 = vadd.f32 %v175, %v2003
    %2005 = vdwg.mxu0
    %v2006 = vsel %vm298, %v2001, -inf
    %2007 = vmax.xlane.f32.xlu0 %v2006
    %v2008 = vpop.xlane.xlu0 %2007
    %v2009 = vsel %vm298, %v2004, -inf
    %2010 = vmax.xlane.f32.xlu0 %v2009
    %v2011 = vpop.xlane.xlu0 %2010
    %v2012 = vsub.f32 %v2001, %v2008
    %v2013 = vsub.f32 %v2004, %v2011
    %v2014 = vmul.f32 %v2012, 1.442695
    %v2015 = vpow.pop %v2014
    %v2016 = vmul.f32 %v2013, 1.442695
    %v2017 = vpow.pop %v2016
    %v2018 = vsel %vm298, %v2015, 0.0
    %2019 = vadd.xlane.f32.xlu0 %v2018
    %v2020 = vpop.xlane.xlu0 %2019
    %v2021 = vsel %vm298, %v2017, 0.0
    %2022 = vadd.xlane.f32.xlu0 %v2021
    %v2023 = vpop.xlane.xlu0 %2022
    %v2024 = vrcp.pop %v2020
    %v2025 = vrcp.pop %v2023
    %v2026 = vmul.f32 %v2015, %v2024
    %v2027 = vmul.f32 %v2017, %v2025
    %2028 = vrot.lane.b32.xlu0 %v1706, 48
    %v2029 = vpop.permute.xlu0 %2028
    %2030 = vrot.lane.b32.xlu0 %v1709, 48
    %v2031 = vpop.permute.xlu0 %2030
    %v2035 = vsel %vm298, %v2026, 0
    %v2038 = vsel %vm298, %v2027, 0
    %2040 = vmatpush.msra.mxu0 0.0
    %2041 = vmatpush.msra.mxu0 0.0
    %2042 = vmatpush.msra.mxu0 0.0
    %2043 = vmatpush.msra.mxu0 0.0
    %2044 = vmatpush.msra.mxu0 0.0
    %2045 = vmatpush.msra.mxu0 0.0
    %2046 = vmatpush.msra.mxu0 0.0
    %2047 = vmatpush.msra.mxu0 0.0
    %2048 = vmatpush.msra.mxu0 0.0
    %2049 = vmatpush.msra.mxu0 0.0
    %2050 = vmatpush.msra.mxu0 0.0
    %2051 = vmatpush.msra.mxu0 0.0
    %2052 = vmatpush.msra.mxu0 0.0
    %2053 = vmatpush.msra.mxu0 0.0
    %2054 = vmatpush.msra.mxu0 %v2031
    %2055 = vmatpush.msra.mxu0 %v2029
    %2056 = vmatmul.f32.gmra.mxu0 %v2035
    %v2057 = vpop.f32.mrf.mxu0
    %v2058 = vadd.f32 0.0, %v2057
    %2059 = vmatmul.f32.gmra.mxu0 %v2038
    %v2060 = vpop.f32.mrf.mxu0
    %v2061 = vadd.f32 0.0, %v2060
    %2062 = vdwg.mxu0
    %2064 = vrot.lane.b32.xlu0 %v1678, 32
    %v2065 = vpop.permute.xlu0 %2064
    %v2068 = vsel %vm140, %v2058, 0
    %v2071 = vsel %vm140, %v2061, 0
    %2073 = vmatpush.msra.mxu0 0.0
    %2074 = vmatpush.msra.mxu0 0.0
    %2075 = vmatpush.msra.mxu0 0.0
    %2076 = vmatpush.msra.mxu0 0.0
    %2077 = vmatpush.msra.mxu0 0.0
    %2078 = vmatpush.msra.mxu0 0.0
    %2079 = vmatpush.msra.mxu0 0.0
    %2080 = vmatpush.msra.mxu0 0.0
    %2081 = vmatpush.msra.mxu0 0.0
    %2082 = vmatpush.msra.mxu0 0.0
    %2083 = vmatpush.msra.mxu0 0.0
    %2084 = vmatpush.msra.mxu0 0.0
    %2085 = vmatpush.msra.mxu0 0.0
    %2086 = vmatpush.msra.mxu0 0.0
    %2087 = vmatpush.msra.mxu0 0.0
    %2088 = vmatpush.msra.mxu0 %v2065
    %2089 = vmatmul.f32.gmra.mxu0 %v2068
    %v2090 = vpop.f32.mrf.mxu0
    %v2091 = vadd.f32 0.0, %v2090
    %2092 = vmatmul.f32.gmra.mxu0 %v2071
    %v2093 = vpop.f32.mrf.mxu0
    %v2094 = vadd.f32 0.0, %v2093
    %2095 = vdwg.mxu0
    %v2096 = vadd.f32 %v1962, %v2091
    %v2097 = vadd.f32 %v1965, %v2094
    %2098 = vrot.lane.b32.xlu0 %v1706, 104
    %v2099 = vpop.permute.xlu0 %2098
    %2100 = vrot.lane.b32.xlu0 %v1709, 104
    %v2101 = vpop.permute.xlu0 %2100
    %2102 = vrot.lane.b32.xlu0 %v1706, 72
    %v2103 = vpop.permute.xlu0 %2102
    %2104 = vrot.lane.b32.xlu0 %v1709, 72
    %v2105 = vpop.permute.xlu0 %2104
    %v2106 = vsel %vm140, %v2099, 0
    %v2108 = vsel %vm140, %v2101, 0
    %v2110 = vsel %vm140, %v2103, 0
    %v2112 = vsel %vm140, %v2105, 0
    %2114 = vmatpush.xpose.msra.mxu0 0.0
    %2115 = vmatpush.xpose.msra.mxu0 0.0
    %2116 = vmatpush.xpose.msra.mxu0 0.0
    %2117 = vmatpush.xpose.msra.mxu0 0.0
    %2118 = vmatpush.xpose.msra.mxu0 0.0
    %2119 = vmatpush.xpose.msra.mxu0 0.0
    %2120 = vmatpush.xpose.msra.mxu0 0.0
    %2121 = vmatpush.xpose.msra.mxu0 0.0
    %2122 = vmatpush.xpose.msra.mxu0 0.0
    %2123 = vmatpush.xpose.msra.mxu0 0.0
    %2124 = vmatpush.xpose.msra.mxu0 0.0
    %2125 = vmatpush.xpose.msra.mxu0 0.0
    %2126 = vmatpush.xpose.msra.mxu0 0.0
    %2127 = vmatpush.xpose.msra.mxu0 0.0
    %2128 = vmatpush.xpose.msra.mxu0 %v2112
    %2129 = vmatpush.xpose.msra.mxu0 %v2110
    %2130 = vmatmul.f32.gmra.mxu0 %v2106
    %v2131 = vpop.f32.mrf.mxu0
    %v2132 = vadd.f32 %v174, %v2131
    %2133 = vmatmul.f32.gmra.mxu0 %v2108
    %v2134 = vpop.f32.mrf.mxu0
    %v2135 = vadd.f32 %v175, %v2134
    %2136 = vdwg.mxu0
    %v2137 = vsel %vm298, %v2132, -inf
    %2138 = vmax.xlane.f32.xlu0 %v2137
    %v2139 = vpop.xlane.xlu0 %2138
    %v2140 = vsel %vm298, %v2135, -inf
    %2141 = vmax.xlane.f32.xlu0 %v2140
    %v2142 = vpop.xlane.xlu0 %2141
    %v2143 = vsub.f32 %v2132, %v2139
    %v2144 = vsub.f32 %v2135, %v2142
    %v2145 = vmul.f32 %v2143, 1.442695
    %v2146 = vpow.pop %v2145
    %v2147 = vmul.f32 %v2144, 1.442695
    %v2148 = vpow.pop %v2147
    %v2149 = vsel %vm298, %v2146, 0.0
    %2150 = vadd.xlane.f32.xlu0 %v2149
    %v2151 = vpop.xlane.xlu0 %2150
    %v2152 = vsel %vm298, %v2148, 0.0
    %2153 = vadd.xlane.f32.xlu0 %v2152
    %v2154 = vpop.xlane.xlu0 %2153
    %v2155 = vrcp.pop %v2151
    %v2156 = vrcp.pop %v2154
    %v2157 = vmul.f32 %v2146, %v2155
    %v2158 = vmul.f32 %v2148, %v2156
    %2159 = vrot.lane.b32.xlu0 %v1706, 40
    %v2160 = vpop.permute.xlu0 %2159
    %2161 = vrot.lane.b32.xlu0 %v1709, 40
    %v2162 = vpop.permute.xlu0 %2161
    %v2166 = vsel %vm298, %v2157, 0
    %v2169 = vsel %vm298, %v2158, 0
    %2171 = vmatpush.msra.mxu0 0.0
    %2172 = vmatpush.msra.mxu0 0.0
    %2173 = vmatpush.msra.mxu0 0.0
    %2174 = vmatpush.msra.mxu0 0.0
    %2175 = vmatpush.msra.mxu0 0.0
    %2176 = vmatpush.msra.mxu0 0.0
    %2177 = vmatpush.msra.mxu0 0.0
    %2178 = vmatpush.msra.mxu0 0.0
    %2179 = vmatpush.msra.mxu0 0.0
    %2180 = vmatpush.msra.mxu0 0.0
    %2181 = vmatpush.msra.mxu0 0.0
    %2182 = vmatpush.msra.mxu0 0.0
    %2183 = vmatpush.msra.mxu0 0.0
    %2184 = vmatpush.msra.mxu0 0.0
    %2185 = vmatpush.msra.mxu0 %v2162
    %2186 = vmatpush.msra.mxu0 %v2160
    %2187 = vmatmul.f32.gmra.mxu0 %v2166
    %v2188 = vpop.f32.mrf.mxu0
    %v2189 = vadd.f32 0.0, %v2188
    %2190 = vmatmul.f32.gmra.mxu0 %v2169
    %v2191 = vpop.f32.mrf.mxu0
    %v2192 = vadd.f32 0.0, %v2191
    %2193 = vdwg.mxu0
    %2195 = vrot.lane.b32.xlu0 %v1679, 32
    %v2196 = vpop.permute.xlu0 %2195
    %v2199 = vsel %vm140, %v2189, 0
    %v2202 = vsel %vm140, %v2192, 0
    %2204 = vmatpush.msra.mxu0 0.0
    %2205 = vmatpush.msra.mxu0 0.0
    %2206 = vmatpush.msra.mxu0 0.0
    %2207 = vmatpush.msra.mxu0 0.0
    %2208 = vmatpush.msra.mxu0 0.0
    %2209 = vmatpush.msra.mxu0 0.0
    %2210 = vmatpush.msra.mxu0 0.0
    %2211 = vmatpush.msra.mxu0 0.0
    %2212 = vmatpush.msra.mxu0 0.0
    %2213 = vmatpush.msra.mxu0 0.0
    %2214 = vmatpush.msra.mxu0 0.0
    %2215 = vmatpush.msra.mxu0 0.0
    %2216 = vmatpush.msra.mxu0 0.0
    %2217 = vmatpush.msra.mxu0 0.0
    %2218 = vmatpush.msra.mxu0 0.0
    %2219 = vmatpush.msra.mxu0 %v2196
    %2220 = vmatmul.f32.gmra.mxu0 %v2199
    %v2221 = vpop.f32.mrf.mxu0
    %v2222 = vadd.f32 0.0, %v2221
    %2223 = vmatmul.f32.gmra.mxu0 %v2202
    %v2224 = vpop.f32.mrf.mxu0
    %v2225 = vadd.f32 0.0, %v2224
    %2226 = vdwg.mxu0
    %v2227 = vadd.f32 %v2096, %v2222
    %v2228 = vadd.f32 %v2097, %v2225
    %2230 = vrot.lane.b32.xlu0 %v1681, 32
    %v2231 = vpop.permute.xlu0 %2230
    %v2233 = vadd.f32 %v2227, %v2231
    %v2234 = vadd.f32 %v2228, %v2231
    %v2235 = vadd.f32 %v1674, %v2233
    %v2236 = vadd.f32 %v1675, %v2234
    %v2237 = vld [vmem:[#allocation12 + $0x9] sm:$0x1]
    %v2238 = vsel %vm184, %v2235, 0.0
    %2239 = vadd.xlane.f32.xlu0 %v2238
    %v2240 = vpop.xlane.xlu0 %2239
    %v2241 = vsel %vm184, %v2236, 0.0
    %2242 = vadd.xlane.f32.xlu0 %v2241
    %v2243 = vpop.xlane.xlu0 %2242
    %v2244 = vmul.f32 %v2240, %v801
    %v2245 = vmul.f32 %v2243, %v801
    %v2246 = vsub.f32 %v2235, %v2244
    %v2247 = vsub.f32 %v2236, %v2245
    %v2248 = vmul.f32 %v2246, %v2246
    %v2249 = vmul.f32 %v2247, %v2247
    %v2250 = vsel %vm184, %v2248, 0.0
    %2251 = vadd.xlane.f32.xlu0 %v2250
    %v2252 = vpop.xlane.xlu0 %2251
    %v2253 = vsel %vm184, %v2249, 0.0
    %2254 = vadd.xlane.f32.xlu0 %v2253
    %v2255 = vpop.xlane.xlu0 %2254
    %v2256 = vmul.f32 %v2252, 0.032258064
    %v2257 = vmul.f32 %v2255, 0.032258064
    %v2258 = vrsqrt.pop %v2256
    %v2259 = vmul.f32 %v2258, %v2256
    %v2260 = vmul.f32 %v2259, %v2258
    %v2261 = vmul.f32 0.5, %v2260
    %v2262 = vsub.f32 1.5, %v2261
    %v2263 = vmul.f32 %v2258, %v2262
    %v2264 = vmul.f32 %v2256, %v2263
    %vm2265 = vcmp.eq.f32.partialorder %v2256, inf
    %v2266 = vsel %vm2265, %v2256, %v2264
    %vm2267 = vcmp.eq.f32.partialorder %v2256, 0.0
    %v2268 = vand.u32 %v2256, 2147483648
    %v2269 = vsel %vm2267, %v2268, %v2266
    %v2270 = vrsqrt.pop %v2257
    %v2271 = vmul.f32 %v2270, %v2257
    %v2272 = vmul.f32 %v2271, %v2270
    %v2273 = vmul.f32 0.5, %v2272
    %v2274 = vsub.f32 1.5, %v2273
    %v2275 = vmul.f32 %v2270, %v2274
    %v2276 = vmul.f32 %v2257, %v2275
    %vm2277 = vcmp.eq.f32.partialorder %v2257, inf
    %v2278 = vsel %vm2277, %v2257, %v2276
    %vm2279 = vcmp.eq.f32.partialorder %v2257, 0.0
    %v2280 = vand.u32 %v2257, 2147483648
    %v2281 = vsel %vm2279, %v2280, %v2278
    %v2282 = vadd.f32 %v2269, 1e-06
    %v2283 = vadd.f32 %v2281, 1e-06
    %v2284 = vrcp.pop %v2282
    %v2285 = vrcp.pop %v2283
    %v2286 = vperm.slane %v2237, 0
    %v2287 = vmul.f32 %v2286, %v2246
    %v2288 = vmul.f32 %v2286, %v2247
    %v2289 = vmul.f32 %v2287, %v2284
    %v2290 = vmul.f32 %v2288, %v2285
    %2292 = vrot.lane.b32.xlu0 %v2286, 96
    %v2293 = vpop.permute.xlu0 %2292
    %v2295 = vadd.f32 %v2289, %v2293
    %v2296 = vadd.f32 %v2290, %v2293
    %v2297 = vld [vmem:[#allocation9 + $0x18] sm:$0xff]
    %v2298 = vld [vmem:[#allocation9 + $0x50] sm:$0xff]
    %v2299 = vld [vmem:[#allocation9 + $0x88] sm:$0xff]
    %v2300 = vld [vmem:[#allocation9 + $0xc0] sm:$0xff]
    %v2301 = vld [vmem:[#allocation12 + $0x3] sm:$0x1]
    %v2302 = vperm.slane %v2301, 0
    %v2304 = vsel %vm184, %v2295, 0
    %v2307 = vsel %vm184, %v2296, 0
    %2309 = vmatpush.msra.mxu0 0.0
    %2310 = vmatpush.msra.mxu0 0.0
    %2311 = vmatpush.msra.mxu0 0.0
    %2312 = vmatpush.msra.mxu0 0.0
    %2313 = vmatpush.msra.mxu0 0.0
    %2314 = vmatpush.msra.mxu0 0.0
    %2315 = vmatpush.msra.mxu0 0.0
    %2316 = vmatpush.msra.mxu0 0.0
    %2317 = vmatpush.msra.mxu0 0.0
    %2318 = vmatpush.msra.mxu0 0.0
    %2319 = vmatpush.msra.mxu0 0.0
    %2320 = vmatpush.msra.mxu0 0.0
    %2321 = vmatpush.msra.mxu0 %v2300
    %2322 = vmatpush.msra.mxu0 %v2299
    %2323 = vmatpush.msra.mxu0 %v2298
    %2324 = vmatpush.msra.mxu0 %v2297
    %2325 = vmatmul.f32.gmra.mxu0 %v2304
    %v2326 = vpop.f32.mrf.mxu0
    %v2327 = vadd.f32 %v2302, %v2326
    %2328 = vmatmul.f32.gmra.mxu0 %v2307
    %v2329 = vpop.f32.mrf.mxu0
    %v2330 = vadd.f32 %v2302, %v2329
    %2331 = vdwg.mxu0
    %2332 = vrot.lane.b32.xlu0 %v215, 64
    %v2333 = vpop.permute.xlu0 %2332
    %2334 = vrot.lane.b32.xlu0 %v218, 64
    %v2335 = vpop.permute.xlu0 %2334
    %2336 = vrot.lane.b32.xlu0 %v221, 64
    %v2337 = vpop.permute.xlu0 %2336
    %2338 = vrot.lane.b32.xlu0 %v224, 64
    %v2339 = vpop.permute.xlu0 %2338
    %v2341 = vsel %vm140, %v2327, 0
    %v2344 = vsel %vm140, %v2330, 0
    %v2346 = vsel %vm140, %v2333, 0
    %v2348 = vsel %vm140, %v2335, 0
    %v2350 = vsel %vm140, %v2337, 0
    %v2352 = vsel %vm140, %v2339, 0
    %2354 = vmatpush.xpose.msra.mxu0 0.0
    %2355 = vmatpush.xpose.msra.mxu0 0.0
    %2356 = vmatpush.xpose.msra.mxu0 0.0
    %2357 = vmatpush.xpose.msra.mxu0 0.0
    %2358 = vmatpush.xpose.msra.mxu0 0.0
    %2359 = vmatpush.xpose.msra.mxu0 0.0
    %2360 = vmatpush.xpose.msra.mxu0 0.0
    %2361 = vmatpush.xpose.msra.mxu0 0.0
    %2362 = vmatpush.xpose.msra.mxu0 0.0
    %2363 = vmatpush.xpose.msra.mxu0 0.0
    %2364 = vmatpush.xpose.msra.mxu0 0.0
    %2365 = vmatpush.xpose.msra.mxu0 0.0
    %2366 = vmatpush.xpose.msra.mxu0 %v2352
    %2367 = vmatpush.xpose.msra.mxu0 %v2350
    %2368 = vmatpush.xpose.msra.mxu0 %v2348
    %2369 = vmatpush.xpose.msra.mxu0 %v2346
    %2370 = vmatmul.f32.gmra.mxu0 %v2341
    %v2371 = vpop.f32.mrf.mxu0
    %v2372 = vadd.f32 %v176, %v2371
    %2373 = vmatmul.f32.gmra.mxu0 %v2344
    %v2374 = vpop.f32.mrf.mxu0
    %v2375 = vadd.f32 %v177, %v2374
    %2376 = vdwg.mxu0
    %v2377 = vsel %vm184, %v2372, -inf
    %2378 = vmax.xlane.f32.xlu0 %v2377
    %v2379 = vpop.xlane.xlu0 %2378
    %v2380 = vsel %vm184, %v2375, -inf
    %2381 = vmax.xlane.f32.xlu0 %v2380
    %v2382 = vpop.xlane.xlu0 %2381
    %v2383 = vsub.f32 %v2372, %v2379
    %v2384 = vsub.f32 %v2375, %v2382
    %v2385 = vmul.f32 %v2383, 1.442695
    %v2386 = vpow.pop %v2385
    %v2387 = vmul.f32 %v2384, 1.442695
    %v2388 = vpow.pop %v2387
    %v2389 = vsel %vm184, %v2386, 0.0
    %2390 = vadd.xlane.f32.xlu0 %v2389
    %v2391 = vpop.xlane.xlu0 %2390
    %v2392 = vsel %vm184, %v2388, 0.0
    %2393 = vadd.xlane.f32.xlu0 %v2392
    %v2394 = vpop.xlane.xlu0 %2393
    %v2395 = vrcp.pop %v2391
    %v2396 = vrcp.pop %v2394
    %v2397 = vmul.f32 %v2386, %v2395
    %v2398 = vmul.f32 %v2388, %v2396
    %2399 = vrot.lane.b32.xlu0 %v215, 32
    %v2400 = vpop.permute.xlu0 %2399
    %2401 = vrot.lane.b32.xlu0 %v218, 32
    %v2402 = vpop.permute.xlu0 %2401
    %2403 = vrot.lane.b32.xlu0 %v221, 32
    %v2404 = vpop.permute.xlu0 %2403
    %2405 = vrot.lane.b32.xlu0 %v224, 32
    %v2406 = vpop.permute.xlu0 %2405
    %v2412 = vsel %vm184, %v2397, 0
    %v2415 = vsel %vm184, %v2398, 0
    %2417 = vmatpush.msra.mxu0 0.0
    %2418 = vmatpush.msra.mxu0 0.0
    %2419 = vmatpush.msra.mxu0 0.0
    %2420 = vmatpush.msra.mxu0 0.0
    %2421 = vmatpush.msra.mxu0 0.0
    %2422 = vmatpush.msra.mxu0 0.0
    %2423 = vmatpush.msra.mxu0 0.0
    %2424 = vmatpush.msra.mxu0 0.0
    %2425 = vmatpush.msra.mxu0 0.0
    %2426 = vmatpush.msra.mxu0 0.0
    %2427 = vmatpush.msra.mxu0 0.0
    %2428 = vmatpush.msra.mxu0 0.0
    %2429 = vmatpush.msra.mxu0 %v2406
    %2430 = vmatpush.msra.mxu0 %v2404
    %2431 = vmatpush.msra.mxu0 %v2402
    %2432 = vmatpush.msra.mxu0 %v2400
    %2433 = vmatmul.f32.gmra.mxu0 %v2412
    %v2434 = vpop.f32.mrf.mxu0
    %v2435 = vadd.f32 0.0, %v2434
    %2436 = vmatmul.f32.gmra.mxu0 %v2415
    %v2437 = vpop.f32.mrf.mxu0
    %v2438 = vadd.f32 0.0, %v2437
    %2439 = vdwg.mxu0
    %2440 = vrot.lane.b32.xlu0 %v2327, 120
    %v2441 = vpop.permute.xlu0 %2440
    %2442 = vrot.lane.b32.xlu0 %v2330, 120
    %v2443 = vpop.permute.xlu0 %2442
    %2444 = vrot.lane.b32.xlu0 %v215, 56
    %v2445 = vpop.permute.xlu0 %2444
    %2446 = vrot.lane.b32.xlu0 %v218, 56
    %v2447 = vpop.permute.xlu0 %2446
    %2448 = vrot.lane.b32.xlu0 %v221, 56
    %v2449 = vpop.permute.xlu0 %2448
    %2450 = vrot.lane.b32.xlu0 %v224, 56
    %v2451 = vpop.permute.xlu0 %2450
    %v2452 = vsel %vm140, %v2441, 0
    %v2454 = vsel %vm140, %v2443, 0
    %v2456 = vsel %vm140, %v2445, 0
    %v2458 = vsel %vm140, %v2447, 0
    %v2460 = vsel %vm140, %v2449, 0
    %v2462 = vsel %vm140, %v2451, 0
    %2464 = vmatpush.xpose.msra.mxu0 0.0
    %2465 = vmatpush.xpose.msra.mxu0 0.0
    %2466 = vmatpush.xpose.msra.mxu0 0.0
    %2467 = vmatpush.xpose.msra.mxu0 0.0
    %2468 = vmatpush.xpose.msra.mxu0 0.0
    %2469 = vmatpush.xpose.msra.mxu0 0.0
    %2470 = vmatpush.xpose.msra.mxu0 0.0
    %2471 = vmatpush.xpose.msra.mxu0 0.0
    %2472 = vmatpush.xpose.msra.mxu0 0.0
    %2473 = vmatpush.xpose.msra.mxu0 0.0
    %2474 = vmatpush.xpose.msra.mxu0 0.0
    %2475 = vmatpush.xpose.msra.mxu0 0.0
    %2476 = vmatpush.xpose.msra.mxu0 %v2462
    %2477 = vmatpush.xpose.msra.mxu0 %v2460
    %2478 = vmatpush.xpose.msra.mxu0 %v2458
    %2479 = vmatpush.xpose.msra.mxu0 %v2456
    %2480 = vmatmul.f32.gmra.mxu0 %v2452
    %v2481 = vpop.f32.mrf.mxu0
    %v2482 = vadd.f32 %v176, %v2481
    %2483 = vmatmul.f32.gmra.mxu0 %v2454
    %v2484 = vpop.f32.mrf.mxu0
    %v2485 = vadd.f32 %v177, %v2484
    %2486 = vdwg.mxu0
    %v2487 = vsel %vm184, %v2482, -inf
    %2488 = vmax.xlane.f32.xlu0 %v2487
    %v2489 = vpop.xlane.xlu0 %2488
    %v2490 = vsel %vm184, %v2485, -inf
    %2491 = vmax.xlane.f32.xlu0 %v2490
    %v2492 = vpop.xlane.xlu0 %2491
    %v2493 = vsub.f32 %v2482, %v2489
    %v2494 = vsub.f32 %v2485, %v2492
    %v2495 = vmul.f32 %v2493, 1.442695
    %v2496 = vpow.pop %v2495
    %v2497 = vmul.f32 %v2494, 1.442695
    %v2498 = vpow.pop %v2497
    %v2499 = vsel %vm184, %v2496, 0.0
    %2500 = vadd.xlane.f32.xlu0 %v2499
    %v2501 = vpop.xlane.xlu0 %2500
    %v2502 = vsel %vm184, %v2498, 0.0
    %2503 = vadd.xlane.f32.xlu0 %v2502
    %v2504 = vpop.xlane.xlu0 %2503
    %v2505 = vrcp.pop %v2501
    %v2506 = vrcp.pop %v2504
    %v2507 = vmul.f32 %v2496, %v2505
    %v2508 = vmul.f32 %v2498, %v2506
    %2509 = vrot.lane.b32.xlu0 %v215, 24
    %v2510 = vpop.permute.xlu0 %2509
    %2511 = vrot.lane.b32.xlu0 %v218, 24
    %v2512 = vpop.permute.xlu0 %2511
    %2513 = vrot.lane.b32.xlu0 %v221, 24
    %v2514 = vpop.permute.xlu0 %2513
    %2515 = vrot.lane.b32.xlu0 %v224, 24
    %v2516 = vpop.permute.xlu0 %2515
    %v2522 = vsel %vm184, %v2507, 0
    %v2525 = vsel %vm184, %v2508, 0
    %2527 = vmatpush.msra.mxu0 0.0
    %2528 = vmatpush.msra.mxu0 0.0
    %2529 = vmatpush.msra.mxu0 0.0
    %2530 = vmatpush.msra.mxu0 0.0
    %2531 = vmatpush.msra.mxu0 0.0
    %2532 = vmatpush.msra.mxu0 0.0
    %2533 = vmatpush.msra.mxu0 0.0
    %2534 = vmatpush.msra.mxu0 0.0
    %2535 = vmatpush.msra.mxu0 0.0
    %2536 = vmatpush.msra.mxu0 0.0
    %2537 = vmatpush.msra.mxu0 0.0
    %2538 = vmatpush.msra.mxu0 0.0
    %2539 = vmatpush.msra.mxu0 %v2516
    %2540 = vmatpush.msra.mxu0 %v2514
    %2541 = vmatpush.msra.mxu0 %v2512
    %2542 = vmatpush.msra.mxu0 %v2510
    %2543 = vmatmul.f32.gmra.mxu0 %v2522
    %v2544 = vpop.f32.mrf.mxu0
    %v2545 = vadd.f32 0.0, %v2544
    %2546 = vmatmul.f32.gmra.mxu0 %v2525
    %v2547 = vpop.f32.mrf.mxu0
    %v2548 = vadd.f32 0.0, %v2547
    %2549 = vdwg.mxu0
    %2551 = vrot.lane.b32.xlu0 %v2298, 96
    %v2552 = vpop.permute.xlu0 %2551
    %v2555 = vsel %vm140, %v2545, 0
    %v2558 = vsel %vm140, %v2548, 0
    %2560 = vmatpush.msra.mxu0 0.0
    %2561 = vmatpush.msra.mxu0 0.0
    %2562 = vmatpush.msra.mxu0 0.0
    %2563 = vmatpush.msra.mxu0 0.0
    %2564 = vmatpush.msra.mxu0 0.0
    %2565 = vmatpush.msra.mxu0 0.0
    %2566 = vmatpush.msra.mxu0 0.0
    %2567 = vmatpush.msra.mxu0 0.0
    %2568 = vmatpush.msra.mxu0 0.0
    %2569 = vmatpush.msra.mxu0 0.0
    %2570 = vmatpush.msra.mxu0 0.0
    %2571 = vmatpush.msra.mxu0 0.0
    %2572 = vmatpush.msra.mxu0 0.0
    %2573 = vmatpush.msra.mxu0 0.0
    %2574 = vmatpush.msra.mxu0 0.0
    %2575 = vmatpush.msra.mxu0 %v2552
    %2576 = vmatmul.f32.gmra.mxu0 %v2555
    %v2577 = vpop.f32.mrf.mxu0
    %v2578 = vadd.f32 0.0, %v2577
    %2579 = vmatmul.f32.gmra.mxu0 %v2558
    %v2580 = vpop.f32.mrf.mxu0
    %v2581 = vadd.f32 0.0, %v2580
    %2582 = vdwg.mxu0
    %2584 = vrot.lane.b32.xlu0 %v2297, 96
    %v2585 = vpop.permute.xlu0 %2584
    %v2588 = vsel %vm140, %v2435, 0
    %v2591 = vsel %vm140, %v2438, 0
    %2593 = vmatpush.msra.mxu0 0.0
    %2594 = vmatpush.msra.mxu0 0.0
    %2595 = vmatpush.msra.mxu0 0.0
    %2596 = vmatpush.msra.mxu0 0.0
    %2597 = vmatpush.msra.mxu0 0.0
    %2598 = vmatpush.msra.mxu0 0.0
    %2599 = vmatpush.msra.mxu0 0.0
    %2600 = vmatpush.msra.mxu0 0.0
    %2601 = vmatpush.msra.mxu0 0.0
    %2602 = vmatpush.msra.mxu0 0.0
    %2603 = vmatpush.msra.mxu0 0.0
    %2604 = vmatpush.msra.mxu0 0.0
    %2605 = vmatpush.msra.mxu0 0.0
    %2606 = vmatpush.msra.mxu0 0.0
    %2607 = vmatpush.msra.mxu0 0.0
    %2608 = vmatpush.msra.mxu0 %v2585
    %2609 = vmatmul.f32.gmra.mxu0 %v2588
    %v2610 = vpop.f32.mrf.mxu0
    %v2611 = vadd.f32 %v2578, %v2610
    %2612 = vmatmul.f32.gmra.mxu0 %v2591
    %v2613 = vpop.f32.mrf.mxu0
    %v2614 = vadd.f32 %v2581, %v2613
    %2615 = vdwg.mxu0
    %2616 = vrot.lane.b32.xlu0 %v2327, 112
    %v2617 = vpop.permute.xlu0 %2616
    %2618 = vrot.lane.b32.xlu0 %v2330, 112
    %v2619 = vpop.permute.xlu0 %2618
    %2620 = vrot.lane.b32.xlu0 %v215, 48
    %v2621 = vpop.permute.xlu0 %2620
    %2622 = vrot.lane.b32.xlu0 %v218, 48
    %v2623 = vpop.permute.xlu0 %2622
    %2624 = vrot.lane.b32.xlu0 %v221, 48
    %v2625 = vpop.permute.xlu0 %2624
    %2626 = vrot.lane.b32.xlu0 %v224, 48
    %v2627 = vpop.permute.xlu0 %2626
    %v2628 = vsel %vm140, %v2617, 0
    %v2630 = vsel %vm140, %v2619, 0
    %v2632 = vsel %vm140, %v2621, 0
    %v2634 = vsel %vm140, %v2623, 0
    %v2636 = vsel %vm140, %v2625, 0
    %v2638 = vsel %vm140, %v2627, 0
    %2640 = vmatpush.xpose.msra.mxu0 0.0
    %2641 = vmatpush.xpose.msra.mxu0 0.0
    %2642 = vmatpush.xpose.msra.mxu0 0.0
    %2643 = vmatpush.xpose.msra.mxu0 0.0
    %2644 = vmatpush.xpose.msra.mxu0 0.0
    %2645 = vmatpush.xpose.msra.mxu0 0.0
    %2646 = vmatpush.xpose.msra.mxu0 0.0
    %2647 = vmatpush.xpose.msra.mxu0 0.0
    %2648 = vmatpush.xpose.msra.mxu0 0.0
    %2649 = vmatpush.xpose.msra.mxu0 0.0
    %2650 = vmatpush.xpose.msra.mxu0 0.0
    %2651 = vmatpush.xpose.msra.mxu0 0.0
    %2652 = vmatpush.xpose.msra.mxu0 %v2638
    %2653 = vmatpush.xpose.msra.mxu0 %v2636
    %2654 = vmatpush.xpose.msra.mxu0 %v2634
    %2655 = vmatpush.xpose.msra.mxu0 %v2632
    %2656 = vmatmul.f32.gmra.mxu0 %v2628
    %v2657 = vpop.f32.mrf.mxu0
    %v2658 = vadd.f32 %v176, %v2657
    %2659 = vmatmul.f32.gmra.mxu0 %v2630
    %v2660 = vpop.f32.mrf.mxu0
    %v2661 = vadd.f32 %v177, %v2660
    %2662 = vdwg.mxu0
    %v2663 = vsel %vm184, %v2658, -inf
    %2664 = vmax.xlane.f32.xlu0 %v2663
    %v2665 = vpop.xlane.xlu0 %2664
    %v2666 = vsel %vm184, %v2661, -inf
    %2667 = vmax.xlane.f32.xlu0 %v2666
    %v2668 = vpop.xlane.xlu0 %2667
    %v2669 = vsub.f32 %v2658, %v2665
    %v2670 = vsub.f32 %v2661, %v2668
    %v2671 = vmul.f32 %v2669, 1.442695
    %v2672 = vpow.pop %v2671
    %v2673 = vmul.f32 %v2670, 1.442695
    %v2674 = vpow.pop %v2673
    %v2675 = vsel %vm184, %v2672, 0.0
    %2676 = vadd.xlane.f32.xlu0 %v2675
    %v2677 = vpop.xlane.xlu0 %2676
    %v2678 = vsel %vm184, %v2674, 0.0
    %2679 = vadd.xlane.f32.xlu0 %v2678
    %v2680 = vpop.xlane.xlu0 %2679
    %v2681 = vrcp.pop %v2677
    %v2682 = vrcp.pop %v2680
    %v2683 = vmul.f32 %v2672, %v2681
    %v2684 = vmul.f32 %v2674, %v2682
    %2685 = vrot.lane.b32.xlu0 %v215, 16
    %v2686 = vpop.permute.xlu0 %2685
    %2687 = vrot.lane.b32.xlu0 %v218, 16
    %v2688 = vpop.permute.xlu0 %2687
    %2689 = vrot.lane.b32.xlu0 %v221, 16
    %v2690 = vpop.permute.xlu0 %2689
    %2691 = vrot.lane.b32.xlu0 %v224, 16
    %v2692 = vpop.permute.xlu0 %2691
    %v2698 = vsel %vm184, %v2683, 0
    %v2701 = vsel %vm184, %v2684, 0
    %2703 = vmatpush.msra.mxu0 0.0
    %2704 = vmatpush.msra.mxu0 0.0
    %2705 = vmatpush.msra.mxu0 0.0
    %2706 = vmatpush.msra.mxu0 0.0
    %2707 = vmatpush.msra.mxu0 0.0
    %2708 = vmatpush.msra.mxu0 0.0
    %2709 = vmatpush.msra.mxu0 0.0
    %2710 = vmatpush.msra.mxu0 0.0
    %2711 = vmatpush.msra.mxu0 0.0
    %2712 = vmatpush.msra.mxu0 0.0
    %2713 = vmatpush.msra.mxu0 0.0
    %2714 = vmatpush.msra.mxu0 0.0
    %2715 = vmatpush.msra.mxu0 %v2692
    %2716 = vmatpush.msra.mxu0 %v2690
    %2717 = vmatpush.msra.mxu0 %v2688
    %2718 = vmatpush.msra.mxu0 %v2686
    %2719 = vmatmul.f32.gmra.mxu0 %v2698
    %v2720 = vpop.f32.mrf.mxu0
    %v2721 = vadd.f32 0.0, %v2720
    %2722 = vmatmul.f32.gmra.mxu0 %v2701
    %v2723 = vpop.f32.mrf.mxu0
    %v2724 = vadd.f32 0.0, %v2723
    %2725 = vdwg.mxu0
    %2727 = vrot.lane.b32.xlu0 %v2299, 96
    %v2728 = vpop.permute.xlu0 %2727
    %v2731 = vsel %vm140, %v2721, 0
    %v2734 = vsel %vm140, %v2724, 0
    %2736 = vmatpush.msra.mxu0 0.0
    %2737 = vmatpush.msra.mxu0 0.0
    %2738 = vmatpush.msra.mxu0 0.0
    %2739 = vmatpush.msra.mxu0 0.0
    %2740 = vmatpush.msra.mxu0 0.0
    %2741 = vmatpush.msra.mxu0 0.0
    %2742 = vmatpush.msra.mxu0 0.0
    %2743 = vmatpush.msra.mxu0 0.0
    %2744 = vmatpush.msra.mxu0 0.0
    %2745 = vmatpush.msra.mxu0 0.0
    %2746 = vmatpush.msra.mxu0 0.0
    %2747 = vmatpush.msra.mxu0 0.0
    %2748 = vmatpush.msra.mxu0 0.0
    %2749 = vmatpush.msra.mxu0 0.0
    %2750 = vmatpush.msra.mxu0 0.0
    %2751 = vmatpush.msra.mxu0 %v2728
    %2752 = vmatmul.f32.gmra.mxu0 %v2731
    %v2753 = vpop.f32.mrf.mxu0
    %v2754 = vadd.f32 0.0, %v2753
    %2755 = vmatmul.f32.gmra.mxu0 %v2734
    %v2756 = vpop.f32.mrf.mxu0
    %v2757 = vadd.f32 0.0, %v2756
    %2758 = vdwg.mxu0
    %v2759 = vadd.f32 %v2611, %v2754
    %v2760 = vadd.f32 %v2614, %v2757
    %2761 = vrot.lane.b32.xlu0 %v2327, 104
    %v2762 = vpop.permute.xlu0 %2761
    %2763 = vrot.lane.b32.xlu0 %v2330, 104
    %v2764 = vpop.permute.xlu0 %2763
    %2765 = vrot.lane.b32.xlu0 %v215, 40
    %v2766 = vpop.permute.xlu0 %2765
    %2767 = vrot.lane.b32.xlu0 %v218, 40
    %v2768 = vpop.permute.xlu0 %2767
    %2769 = vrot.lane.b32.xlu0 %v221, 40
    %v2770 = vpop.permute.xlu0 %2769
    %2771 = vrot.lane.b32.xlu0 %v224, 40
    %v2772 = vpop.permute.xlu0 %2771
    %v2773 = vsel %vm140, %v2762, 0
    %v2775 = vsel %vm140, %v2764, 0
    %v2777 = vsel %vm140, %v2766, 0
    %v2779 = vsel %vm140, %v2768, 0
    %v2781 = vsel %vm140, %v2770, 0
    %v2783 = vsel %vm140, %v2772, 0
    %2785 = vmatpush.xpose.msra.mxu0 0.0
    %2786 = vmatpush.xpose.msra.mxu0 0.0
    %2787 = vmatpush.xpose.msra.mxu0 0.0
    %2788 = vmatpush.xpose.msra.mxu0 0.0
    %2789 = vmatpush.xpose.msra.mxu0 0.0
    %2790 = vmatpush.xpose.msra.mxu0 0.0
    %2791 = vmatpush.xpose.msra.mxu0 0.0
    %2792 = vmatpush.xpose.msra.mxu0 0.0
    %2793 = vmatpush.xpose.msra.mxu0 0.0
    %2794 = vmatpush.xpose.msra.mxu0 0.0
    %2795 = vmatpush.xpose.msra.mxu0 0.0
    %2796 = vmatpush.xpose.msra.mxu0 0.0
    %2797 = vmatpush.xpose.msra.mxu0 %v2783
    %2798 = vmatpush.xpose.msra.mxu0 %v2781
    %2799 = vmatpush.xpose.msra.mxu0 %v2779
    %2800 = vmatpush.xpose.msra.mxu0 %v2777
    %2801 = vmatmul.f32.gmra.mxu0 %v2773
    %v2802 = vpop.f32.mrf.mxu0
    %v2803 = vadd.f32 %v176, %v2802
    %2804 = vmatmul.f32.gmra.mxu0 %v2775
    %v2805 = vpop.f32.mrf.mxu0
    %v2806 = vadd.f32 %v177, %v2805
    %2807 = vdwg.mxu0
    %v2808 = vsel %vm184, %v2803, -inf
    %2809 = vmax.xlane.f32.xlu0 %v2808
    %v2810 = vpop.xlane.xlu0 %2809
    %v2811 = vsel %vm184, %v2806, -inf
    %2812 = vmax.xlane.f32.xlu0 %v2811
    %v2813 = vpop.xlane.xlu0 %2812
    %v2814 = vsub.f32 %v2803, %v2810
    %v2815 = vsub.f32 %v2806, %v2813
    %v2816 = vmul.f32 %v2814, 1.442695
    %v2817 = vpow.pop %v2816
    %v2818 = vmul.f32 %v2815, 1.442695
    %v2819 = vpow.pop %v2818
    %v2820 = vsel %vm184, %v2817, 0.0
    %2821 = vadd.xlane.f32.xlu0 %v2820
    %v2822 = vpop.xlane.xlu0 %2821
    %v2823 = vsel %vm184, %v2819, 0.0
    %2824 = vadd.xlane.f32.xlu0 %v2823
    %v2825 = vpop.xlane.xlu0 %2824
    %v2826 = vrcp.pop %v2822
    %v2827 = vrcp.pop %v2825
    %v2828 = vmul.f32 %v2817, %v2826
    %v2829 = vmul.f32 %v2819, %v2827
    %2830 = vrot.lane.b32.xlu0 %v215, 8
    %v2831 = vpop.permute.xlu0 %2830
    %2832 = vrot.lane.b32.xlu0 %v218, 8
    %v2833 = vpop.permute.xlu0 %2832
    %2834 = vrot.lane.b32.xlu0 %v221, 8
    %v2835 = vpop.permute.xlu0 %2834
    %2836 = vrot.lane.b32.xlu0 %v224, 8
    %v2837 = vpop.permute.xlu0 %2836
    %v2843 = vsel %vm184, %v2828, 0
    %v2846 = vsel %vm184, %v2829, 0
    %2848 = vmatpush.msra.mxu0 0.0
    %2849 = vmatpush.msra.mxu0 0.0
    %2850 = vmatpush.msra.mxu0 0.0
    %2851 = vmatpush.msra.mxu0 0.0
    %2852 = vmatpush.msra.mxu0 0.0
    %2853 = vmatpush.msra.mxu0 0.0
    %2854 = vmatpush.msra.mxu0 0.0
    %2855 = vmatpush.msra.mxu0 0.0
    %2856 = vmatpush.msra.mxu0 0.0
    %2857 = vmatpush.msra.mxu0 0.0
    %2858 = vmatpush.msra.mxu0 0.0
    %2859 = vmatpush.msra.mxu0 0.0
    %2860 = vmatpush.msra.mxu0 %v2837
    %2861 = vmatpush.msra.mxu0 %v2835
    %2862 = vmatpush.msra.mxu0 %v2833
    %2863 = vmatpush.msra.mxu0 %v2831
    %2864 = vmatmul.f32.gmra.mxu0 %v2843
    %v2865 = vpop.f32.mrf.mxu0
    %v2866 = vadd.f32 0.0, %v2865
    %2867 = vmatmul.f32.gmra.mxu0 %v2846
    %v2868 = vpop.f32.mrf.mxu0
    %v2869 = vadd.f32 0.0, %v2868
    %2870 = vdwg.mxu0
    %2872 = vrot.lane.b32.xlu0 %v2300, 96
    %v2873 = vpop.permute.xlu0 %2872
    %v2876 = vsel %vm140, %v2866, 0
    %v2879 = vsel %vm140, %v2869, 0
    %2881 = vmatpush.msra.mxu0 0.0
    %2882 = vmatpush.msra.mxu0 0.0
    %2883 = vmatpush.msra.mxu0 0.0
    %2884 = vmatpush.msra.mxu0 0.0
    %2885 = vmatpush.msra.mxu0 0.0
    %2886 = vmatpush.msra.mxu0 0.0
    %2887 = vmatpush.msra.mxu0 0.0
    %2888 = vmatpush.msra.mxu0 0.0
    %2889 = vmatpush.msra.mxu0 0.0
    %2890 = vmatpush.msra.mxu0 0.0
    %2891 = vmatpush.msra.mxu0 0.0
    %2892 = vmatpush.msra.mxu0 0.0
    %2893 = vmatpush.msra.mxu0 0.0
    %2894 = vmatpush.msra.mxu0 0.0
    %2895 = vmatpush.msra.mxu0 0.0
    %2896 = vmatpush.msra.mxu0 %v2873
    %2897 = vmatmul.f32.gmra.mxu0 %v2876
    %v2898 = vpop.f32.mrf.mxu0
    %v2899 = vadd.f32 0.0, %v2898
    %2900 = vmatmul.f32.gmra.mxu0 %v2879
    %v2901 = vpop.f32.mrf.mxu0
    %v2902 = vadd.f32 0.0, %v2901
    %2903 = vdwg.mxu0
    %v2904 = vadd.f32 %v2759, %v2899
    %v2905 = vadd.f32 %v2760, %v2902
    %2907 = vrot.lane.b32.xlu0 %v2302, 96
    %v2908 = vpop.permute.xlu0 %2907
    %v2910 = vadd.f32 %v2904, %v2908
    %v2911 = vadd.f32 %v2905, %v2908
    %v2912 = vadd.f32 %v2295, %v2910
    %v2913 = vadd.f32 %v2296, %v2911
    %v2914 = vld [vmem:[#allocation12 + $0xa] sm:$0x1]
    %v2915 = vsel %vm184, %v2912, 0.0
    %2916 = vadd.xlane.f32.xlu0 %v2915
    %v2917 = vpop.xlane.xlu0 %2916
    %v2918 = vsel %vm184, %v2913, 0.0
    %2919 = vadd.xlane.f32.xlu0 %v2918
    %v2920 = vpop.xlane.xlu0 %2919
    %v2921 = vmul.f32 %v2917, %v801
    %v2922 = vmul.f32 %v2920, %v801
    %v2923 = vsub.f32 %v2912, %v2921
    %v2924 = vsub.f32 %v2913, %v2922
    %v2925 = vmul.f32 %v2923, %v2923
    %v2926 = vmul.f32 %v2924, %v2924
    %v2927 = vsel %vm184, %v2925, 0.0
    %2928 = vadd.xlane.f32.xlu0 %v2927
    %v2929 = vpop.xlane.xlu0 %2928
    %v2930 = vsel %vm184, %v2926, 0.0
    %2931 = vadd.xlane.f32.xlu0 %v2930
    %v2932 = vpop.xlane.xlu0 %2931
    %v2933 = vmul.f32 %v2929, 0.032258064
    %v2934 = vmul.f32 %v2932, 0.032258064
    %v2935 = vrsqrt.pop %v2933
    %v2936 = vmul.f32 %v2935, %v2933
    %v2937 = vmul.f32 %v2936, %v2935
    %v2938 = vmul.f32 0.5, %v2937
    %v2939 = vsub.f32 1.5, %v2938
    %v2940 = vmul.f32 %v2935, %v2939
    %v2941 = vmul.f32 %v2933, %v2940
    %vm2942 = vcmp.eq.f32.partialorder %v2933, inf
    %v2943 = vsel %vm2942, %v2933, %v2941
    %vm2944 = vcmp.eq.f32.partialorder %v2933, 0.0
    %v2945 = vand.u32 %v2933, 2147483648
    %v2946 = vsel %vm2944, %v2945, %v2943
    %v2947 = vrsqrt.pop %v2934
    %v2948 = vmul.f32 %v2947, %v2934
    %v2949 = vmul.f32 %v2948, %v2947
    %v2950 = vmul.f32 0.5, %v2949
    %v2951 = vsub.f32 1.5, %v2950
    %v2952 = vmul.f32 %v2947, %v2951
    %v2953 = vmul.f32 %v2934, %v2952
    %vm2954 = vcmp.eq.f32.partialorder %v2934, inf
    %v2955 = vsel %vm2954, %v2934, %v2953
    %vm2956 = vcmp.eq.f32.partialorder %v2934, 0.0
    %v2957 = vand.u32 %v2934, 2147483648
    %v2958 = vsel %vm2956, %v2957, %v2955
    %v2959 = vadd.f32 %v2946, 1e-06
    %v2960 = vadd.f32 %v2958, 1e-06
    %v2961 = vrcp.pop %v2959
    %v2962 = vrcp.pop %v2960
    %v2963 = vperm.slane %v2914, 0
    %v2964 = vmul.f32 %v2963, %v2923
    %v2965 = vmul.f32 %v2963, %v2924
    %v2966 = vmul.f32 %v2964, %v2961
    %v2967 = vmul.f32 %v2965, %v2962
    %2969 = vrot.lane.b32.xlu0 %v2963, 96
    %v2970 = vpop.permute.xlu0 %2969
    %v2972 = vadd.f32 %v2966, %v2970
    %v2973 = vadd.f32 %v2967, %v2970
    %2974 = vrot.lane.b32.xlu0 %v2297, 64
    %v2975 = vpop.permute.xlu0 %2974
    %2976 = vrot.lane.b32.xlu0 %v2298, 64
    %v2977 = vpop.permute.xlu0 %2976
    %2978 = vrot.lane.b32.xlu0 %v2299, 64
    %v2979 = vpop.permute.xlu0 %2978
    %2980 = vrot.lane.b32.xlu0 %v2300, 64
    %v2981 = vpop.permute.xlu0 %2980
    %2986 = vrot.lane.b32.xlu0 %v2302, 64
    %v2987 = vpop.permute.xlu0 %2986
    %v2990 = vsel %vm184, %v2972, 0
    %v2993 = vsel %vm184, %v2973, 0
    %2995 = vmatpush.msra.mxu0 0.0
    %2996 = vmatpush.msra.mxu0 0.0
    %2997 = vmatpush.msra.mxu0 0.0
    %2998 = vmatpush.msra.mxu0 0.0
    %2999 = vmatpush.msra.mxu0 0.0
    %3000 = vmatpush.msra.mxu0 0.0
    %3001 = vmatpush.msra.mxu0 0.0
    %3002 = vmatpush.msra.mxu0 0.0
    %3003 = vmatpush.msra.mxu0 0.0
    %3004 = vmatpush.msra.mxu0 0.0
    %3005 = vmatpush.msra.mxu0 0.0
    %3006 = vmatpush.msra.mxu0 0.0
    %3007 = vmatpush.msra.mxu0 %v2981
    %3008 = vmatpush.msra.mxu0 %v2979
    %3009 = vmatpush.msra.mxu0 %v2977
    %3010 = vmatpush.msra.mxu0 %v2975
    %3011 = vmatmul.f32.gmra.mxu0 %v2990
    %v3012 = vpop.f32.mrf.mxu0
    %v3013 = vadd.f32 %v2987, %v3012
    %3014 = vmatmul.f32.gmra.mxu0 %v2993
    %v3015 = vpop.f32.mrf.mxu0
    %v3016 = vadd.f32 %v2987, %v3015
    %3017 = vdwg.mxu0
    %v3018 = vmax.f32 %v3013, 0.0
    %v3019 = vmax.f32 %v3016, 0.0
    %3028 = vrot.lane.b32.xlu0 %v1574, 96
    %v3029 = vpop.permute.xlu0 %3028
    %3030 = vrot.lane.b32.xlu0 %v1575, 96
    %v3031 = vpop.permute.xlu0 %3030
    %3032 = vrot.lane.b32.xlu0 %v1576, 96
    %v3033 = vpop.permute.xlu0 %3032
    %3034 = vrot.lane.b32.xlu0 %v1577, 96
    %v3035 = vpop.permute.xlu0 %3034
    %3036 = vrot.lane.b32.xlu0 %v1578, 96
    %v3037 = vpop.permute.xlu0 %3036
    %3038 = vrot.lane.b32.xlu0 %v1579, 96
    %v3039 = vpop.permute.xlu0 %3038
    %3040 = vrot.lane.b32.xlu0 %v1580, 96
    %v3041 = vpop.permute.xlu0 %3040
    %3042 = vrot.lane.b32.xlu0 %v1581, 96
    %v3043 = vpop.permute.xlu0 %3042
    %3053 = vrot.lane.b32.xlu0 %v1583, 96
    %v3054 = vpop.permute.xlu0 %3053
    %v3057 = vsel %vm1584, %v3018, 0
    %v3060 = vsel %vm1584, %v3019, 0
    %3062 = vmatpush.msra.mxu0 0.0
    %3063 = vmatpush.msra.mxu0 0.0
    %3064 = vmatpush.msra.mxu0 0.0
    %3065 = vmatpush.msra.mxu0 0.0
    %3066 = vmatpush.msra.mxu0 0.0
    %3067 = vmatpush.msra.mxu0 0.0
    %3068 = vmatpush.msra.mxu0 0.0
    %3069 = vmatpush.msra.mxu0 0.0
    %3070 = vmatpush.msra.mxu0 %v3043
    %3071 = vmatpush.msra.mxu0 %v3041
    %3072 = vmatpush.msra.mxu0 %v3039
    %3073 = vmatpush.msra.mxu0 %v3037
    %3074 = vmatpush.msra.mxu0 %v3035
    %3075 = vmatpush.msra.mxu0 %v3033
    %3076 = vmatpush.msra.mxu0 %v3031
    %3077 = vmatpush.msra.mxu0 %v3029
    %3078 = vmatmul.f32.gmra.mxu0 %v3057
    %v3079 = vpop.f32.mrf.mxu0
    %v3080 = vadd.f32 %v3054, %v3079
    %3081 = vmatmul.f32.gmra.mxu0 %v3060
    %v3082 = vpop.f32.mrf.mxu0
    %v3083 = vadd.f32 %v3054, %v3082
    %3084 = vdwg.mxu0
    %v3085 = vadd.f32 %v2972, %v3080
    %v3086 = vadd.f32 %v2973, %v3083
    %v3087 = vld [vmem:[#allocation12 + $0xb] sm:$0x1]
    %v3088 = vsel %vm184, %v3085, 0.0
    %3089 = vadd.xlane.f32.xlu0 %v3088
    %v3090 = vpop.xlane.xlu0 %3089
    %v3091 = vsel %vm184, %v3086, 0.0
    %3092 = vadd.xlane.f32.xlu0 %v3091
    %v3093 = vpop.xlane.xlu0 %3092
    %v3094 = vmul.f32 %v3090, %v801
    %v3095 = vmul.f32 %v3093, %v801
    %v3096 = vsub.f32 %v3085, %v3094
    %v3097 = vsub.f32 %v3086, %v3095
    %v3098 = vmul.f32 %v3096, %v3096
    %v3099 = vmul.f32 %v3097, %v3097
    %v3100 = vsel %vm184, %v3098, 0.0
    %3101 = vadd.xlane.f32.xlu0 %v3100
    %v3102 = vpop.xlane.xlu0 %3101
    %v3103 = vsel %vm184, %v3099, 0.0
    %3104 = vadd.xlane.f32.xlu0 %v3103
    %v3105 = vpop.xlane.xlu0 %3104
    %v3106 = vmul.f32 %v3102, 0.032258064
    %v3107 = vmul.f32 %v3105, 0.032258064
    %v3108 = vrsqrt.pop %v3106
    %v3109 = vmul.f32 %v3108, %v3106
    %v3110 = vmul.f32 %v3109, %v3108
    %v3111 = vmul.f32 0.5, %v3110
    %v3112 = vsub.f32 1.5, %v3111
    %v3113 = vmul.f32 %v3108, %v3112
    %v3114 = vmul.f32 %v3106, %v3113
    %vm3115 = vcmp.eq.f32.partialorder %v3106, inf
    %v3116 = vsel %vm3115, %v3106, %v3114
    %vm3117 = vcmp.eq.f32.partialorder %v3106, 0.0
    %v3118 = vand.u32 %v3106, 2147483648
    %v3119 = vsel %vm3117, %v3118, %v3116
    %v3120 = vrsqrt.pop %v3107
    %v3121 = vmul.f32 %v3120, %v3107
    %v3122 = vmul.f32 %v3121, %v3120
    %v3123 = vmul.f32 0.5, %v3122
    %v3124 = vsub.f32 1.5, %v3123
    %v3125 = vmul.f32 %v3120, %v3124
    %v3126 = vmul.f32 %v3107, %v3125
    %vm3127 = vcmp.eq.f32.partialorder %v3107, inf
    %v3128 = vsel %vm3127, %v3107, %v3126
    %vm3129 = vcmp.eq.f32.partialorder %v3107, 0.0
    %v3130 = vand.u32 %v3107, 2147483648
    %v3131 = vsel %vm3129, %v3130, %v3128
    %v3132 = vadd.f32 %v3119, 1e-06
    %v3133 = vadd.f32 %v3131, 1e-06
    %v3134 = vrcp.pop %v3132
    %v3135 = vrcp.pop %v3133
    %v3136 = vperm.slane %v3087, 0
    %v3137 = vmul.f32 %v3136, %v3096
    %v3138 = vmul.f32 %v3136, %v3097
    %v3139 = vmul.f32 %v3137, %v3134
    %v3140 = vmul.f32 %v3138, %v3135
    %3142 = vrot.lane.b32.xlu0 %v3136, 96
    %v3143 = vpop.permute.xlu0 %3142
    %v3145 = vadd.f32 %v3139, %v3143
    %v3146 = vadd.f32 %v3140, %v3143
    %v3147 = vsel %vm184, %v3145, 0.0
    %3148 = vadd.xlane.f32.xlu0 %v3147
    %v3149 = vpop.xlane.xlu0 %3148
    %v3150 = vsel %vm184, %v3146, 0.0
    %3151 = vadd.xlane.f32.xlu0 %v3150
    %v3152 = vpop.xlane.xlu0 %3151
    %v3153 = vmul.f32 %v3149, %v801
    %v3154 = vmul.f32 %v3152, %v801
    %v3155 = vsub.f32 %v3145, %v3153
    %v3156 = vsub.f32 %v3146, %v3154
    %v3157 = vmul.f32 %v3155, %v3155
    %v3158 = vmul.f32 %v3156, %v3156
    %v3159 = vsel %vm184, %v3157, 0.0
    %3160 = vadd.xlane.f32.xlu0 %v3159
    %v3161 = vpop.xlane.xlu0 %3160
    %v3162 = vsel %vm184, %v3158, 0.0
    %3163 = vadd.xlane.f32.xlu0 %v3162
    %v3164 = vpop.xlane.xlu0 %3163
    %v3165 = vmul.f32 %v3161, 0.032258064
    %v3166 = vmul.f32 %v3164, 0.032258064
    %v3167 = vrsqrt.pop %v3165
    %v3168 = vmul.f32 %v3167, %v3165
    %v3169 = vmul.f32 %v3168, %v3167
    %v3170 = vmul.f32 0.5, %v3169
    %v3171 = vsub.f32 1.5, %v3170
    %v3172 = vmul.f32 %v3167, %v3171
    %v3173 = vmul.f32 %v3165, %v3172
    %vm3174 = vcmp.eq.f32.partialorder %v3165, inf
    %v3175 = vsel %vm3174, %v3165, %v3173
    %vm3176 = vcmp.eq.f32.partialorder %v3165, 0.0
    %v3177 = vand.u32 %v3165, 2147483648
    %v3178 = vsel %vm3176, %v3177, %v3175
    %v3179 = vrsqrt.pop %v3166
    %v3180 = vmul.f32 %v3179, %v3166
    %v3181 = vmul.f32 %v3180, %v3179
    %v3182 = vmul.f32 0.5, %v3181
    %v3183 = vsub.f32 1.5, %v3182
    %v3184 = vmul.f32 %v3179, %v3183
    %v3185 = vmul.f32 %v3166, %v3184
    %vm3186 = vcmp.eq.f32.partialorder %v3166, inf
    %v3187 = vsel %vm3186, %v3166, %v3185
    %vm3188 = vcmp.eq.f32.partialorder %v3166, 0.0
    %v3189 = vand.u32 %v3166, 2147483648
    %v3190 = vsel %vm3188, %v3189, %v3187
    %v3191 = vadd.f32 %v3178, 1e-06
    %v3192 = vadd.f32 %v3190, 1e-06
    %v3193 = vrcp.pop %v3191
    %v3194 = vrcp.pop %v3192
    %3197 = vrot.lane.b32.xlu0 %v3155, 64
    %v3198 = vpop.permute.xlu0 %3197
    %3199 = vrot.lane.b32.xlu0 %v3156, 64
    %v3200 = vpop.permute.xlu0 %3199
    %v3203 = vmul.f32 %v1583, %v3198
    %v3204 = vmul.f32 %v1583, %v3200
    %v3205 = vmul.f32 %v3203, %v3193
    %v3206 = vmul.f32 %v3204, %v3194
    %v3207 = vadd.f32 %v3205, %v3054
    %v3208 = vadd.f32 %v3206, %v3054
    %v3209 = vld [vmem:[#allocation9 + $0x30] sm:$0xff]
    %v3210 = vld [vmem:[#allocation9 + $0x68] sm:$0xff]
    %v3211 = vld [vmem:[#allocation9 + $0xa0] sm:$0xff]
    %v3212 = vld [vmem:[#allocation9 + $0xd8] sm:$0xff]
    %v3213 = vld [vmem:[#allocation12 + $0xc] sm:$0x1]
    %v3214 = vperm.slane %v3213, 0
    %3217 = vrot.lane.b32.xlu0 %v3207, 64
    %v3218 = vpop.permute.xlu0 %3217
    %3219 = vrot.lane.b32.xlu0 %v3208, 64
    %v3220 = vpop.permute.xlu0 %3219
    %v3221 = vsel %vm184, %v3218, 0
    %v3223 = vsel %vm184, %v3220, 0
    %3225 = vmatpush.msra.mxu0 0.0
    %3226 = vmatpush.msra.mxu0 0.0
    %3227 = vmatpush.msra.mxu0 0.0
    %3228 = vmatpush.msra.mxu0 0.0
    %3229 = vmatpush.msra.mxu0 0.0
    %3230 = vmatpush.msra.mxu0 0.0
    %3231 = vmatpush.msra.mxu0 0.0
    %3232 = vmatpush.msra.mxu0 0.0
    %3233 = vmatpush.msra.mxu0 0.0
    %3234 = vmatpush.msra.mxu0 0.0
    %3235 = vmatpush.msra.mxu0 0.0
    %3236 = vmatpush.msra.mxu0 0.0
    %3237 = vmatpush.msra.mxu0 %v3212
    %3238 = vmatpush.msra.mxu0 %v3211
    %3239 = vmatpush.msra.mxu0 %v3210
    %3240 = vmatpush.msra.mxu0 %v3209
    %3241 = vmatmul.f32.gmra.mxu0 %v3221
    %v3242 = vpop.f32.mrf.mxu0
    %v3243 = vadd.f32 %v3214, %v3242
    %3244 = vmatmul.f32.gmra.mxu0 %v3223
    %v3245 = vpop.f32.mrf.mxu0
    %v3246 = vadd.f32 %v3214, %v3245
    %3247 = vdwg.mxu0
    %3248 = vst [vmem:[%s7] sm:$0xff] %v3243
    %3249 = vst [vmem:[%s7 + $0x8] sm:$0xff] %v3246
    // Predicated region
    $region58: #{trans_decoder_forward.1} parent=1 // pred_check
      _
    $region59: #{trans_decoder_forward.1} parent=1 // pred_check_branch
      %3251 = sbr.rel (0) target = $region61
    $region60: #{trans_decoder_forward.1} parent=1 // pred_region
      _
    $region61: #{trans_decoder_forward.1} parent=1 // pred_fallthru
      _
    // Predicated region
    $region62: #{trans_decoder_forward.1} parent=1 // pred_check
      _
    $region63: #{trans_decoder_forward.1} parent=1 // pred_check_branch
      %3253 = sbr.rel (0) target = $region65
    $region64: #{trans_decoder_forward.1} parent=1 // pred_region
      _
    $region65: #{trans_decoder_forward.1} parent=1 // pred_fallthru
      _
    %3254 = vsyncpa [#allocation3], 1
    %3255 = vsyncpa [#allocation5], 1
    %3256 = vsyncpa [#allocation8], 1
    %3257 = vsyncpa [#allocation11], 1

</llo_original>
